<compile_context>
chip_gen: v7x
topology: tpu7x:2x2x1
jax: 0.10.0
libtpu: 0.0.40
codegen_flags: <defaults>
</compile_context>

<pallas_src>
import functools

import jax
import jax.numpy as jnp
from jax import lax
from jax.experimental import pallas as pl
from jax.experimental.pallas import tpu as pltpu


def _round_up(x, m):
    return (x + m - 1) // m * m


def _pad_gate_lastdim(w, h, h_pad):
    """(..., 3*h) -> (..., 3*h_pad): zero-pad each gate block [r|z|n] on the lane axis."""
    lead = w.shape[:-1]
    w3 = w.reshape(lead + (3, h))
    w3 = jnp.pad(w3, [(0, 0)] * len(lead) + [(0, 0), (0, h_pad - h)])
    return w3.reshape(lead + (3 * h_pad,))


# ---------------------------------------------------------------------------
# Pallas kernel: GRU recurrence over one time chunk.
#   gates_ref : (T_CHUNK, TB, 3*Hp)  precomputed x_t @ W_ih^T + b_ih + [b_hr|b_hz|0]
#   whh_ref   : (Hp, 3*Hp)           W_hh^T (gate blocks padded to 128 lanes)
#   bhhn_ref  : (1, Hp)              n-gate hidden bias b_hn (padded)
#   h_ref     : (TB, Hp)             hidden state; output block is the resident
#                                    VMEM accumulator across the time axis
# ---------------------------------------------------------------------------
def _gru_recurrent_kernel(gates_ref, whh_ref, bhhn_ref, h_ref):
    t_chunk = gates_ref.shape[0]
    tb, hp = h_ref.shape

    @pl.when(pl.program_id(1) == 0)
    def _init():
        h_ref[...] = jnp.zeros_like(h_ref)      # initialize_hidden(): zeros

    whh = whh_ref[...]                                            # (Hp, 3Hp) resident
    bhh_n = jnp.broadcast_to(bhhn_ref[...].astype(jnp.float32), (tb, hp))  # hoisted

    def step(t, h):
        gi = gates_ref[t].astype(jnp.float32)                     # (TB, 3Hp)
        gh = jnp.dot(h.astype(whh.dtype), whh,
                     preferred_element_type=jnp.float32)          # MXU, f32 accum
        # PyTorch gate order [r | z | n]; slices are 128-lane aligned (Hp = k*128).
        r = jax.nn.sigmoid(gi[:, 0 * hp:1 * hp] + gh[:, 0 * hp:1 * hp])
        z = jax.nn.sigmoid(gi[:, 1 * hp:2 * hp] + gh[:, 1 * hp:2 * hp])
        n = jnp.tanh(gi[:, 2 * hp:3 * hp] + r * (gh[:, 2 * hp:3 * hp] + bhh_n))
        return n + z * (h - n)                                    # == (1-z)*n + z*h

    # Fully unrolled chunk: lets the LLO scheduler co-issue MXU/VPU/EUP work
    # across time steps instead of paying ~600 cycles of grid overhead per step.
    h_ref[...] = lax.fori_loop(0, t_chunk, step, h_ref[...], unroll=True)


def gru_forward_pallas(embeds, params, *, use_bf16=True,
                       vmem_gates_budget=20 * 1024 * 1024):
    """embeds: (T, B, E) float32 -> logits (B, C) float32."""
    T, B, E = embeds.shape
    H = params["w_hh_t"].shape[0]
    mxu_dtype = jnp.bfloat16 if use_bf16 else jnp.float32
    itemsize = 2 if use_bf16 else 4

    # ---- padded / tiled sizes ----------------------------------------------
    Hp = _round_up(H, 128)                      # gate block width -> lane aligned
    TB = min(128, _round_up(B, 8))              # batch tile (sublane aligned)
    Bp = _round_up(B, TB)

    # ---- time chunk: collapse the time grid if the gates block fits VMEM -----
    # Budget is conservative (<< 32 MiB scoped default, safe on v7x's 64 MiB
    # physical pool); gates are double-buffered, W_hh/bias are single-buffered.
    gates_step_bytes = 2 * TB * 3 * Hp * itemsize
    max_chunk = max(1, vmem_gates_budget // gates_step_bytes)
    if T <= max_chunk:
        t_chunk = T                             # grid time axis collapses to 1
    else:
        t_chunk = max(d for d in range(1, max_chunk + 1) if T % d == 0)

    # ---- hoisted input projection: ONE big matmul over all (T*Bp) rows -------
    w_ih_p = _pad_gate_lastdim(params["w_ih_t"], H, Hp)           # (E, 3Hp)
    b_ih_p = _pad_gate_lastdim(params["b_ih"], H, Hp)             # (1, 3Hp)
    b_hh_p = _pad_gate_lastdim(params["b_hh"], H, Hp)             # (1, 3Hp)
    # fold the r/z hidden biases into the precompute; keep only the n-gate bias
    b_rz_fold = b_hh_p.at[:, 2 * Hp:].set(0.0)
    b_hh_n = b_hh_p[:, 2 * Hp:3 * Hp].astype(jnp.float32)         # (1, Hp)

    # pad the narrow embeds (E lanes) on the batch axis instead of the 3Hp-wide
    # gates tensor -> no second full-size HBM round trip.
    embeds_p = jnp.pad(embeds, ((0, 0), (0, Bp - B), (0, 0)))     # (T, Bp, E)
    gates = (jnp.einsum("tbe,eg->tbg", embeds_p, w_ih_p,
                        preferred_element_type=jnp.float32)
             + b_ih_p + b_rz_fold).astype(mxu_dtype)              # (T, Bp, 3Hp)

    # ---- padded recurrent weights (zero rows/cols keep the math exact) ------
    w_hh_p = _pad_gate_lastdim(params["w_hh_t"], H, Hp)           # (H, 3Hp)
    w_hh_p = jnp.pad(w_hh_p, ((0, Hp - H), (0, 0))).astype(mxu_dtype)  # (Hp, 3Hp)

    h_last = pl.pallas_call(
        _gru_recurrent_kernel,
        out_shape=jax.ShapeDtypeStruct((Bp, Hp), jnp.float32),
        grid_spec=pltpu.PrefetchScalarGridSpec(
            num_scalar_prefetch=0,
            grid=(Bp // TB, T // t_chunk),       # (batch tiles, time chunks)
            in_specs=[
                pl.BlockSpec((t_chunk, TB, 3 * Hp), lambda b, c: (c, b, 0)),  # gates
                pl.BlockSpec((Hp, 3 * Hp), lambda b, c: (0, 0),
                             pipeline_mode=pl.Buffered(1)),                   # W_hh^T
                pl.BlockSpec((1, Hp), lambda b, c: (0, 0),
                             pipeline_mode=pl.Buffered(1)),                   # b_hn
            ],
            out_specs=pl.BlockSpec((TB, Hp), lambda b, c: (b, 0)),            # h state
        ),
        compiler_params=pltpu.CompilerParams(
            dimension_semantics=("parallel", "arbitrary"),
        ),
    )(gates, w_hh_p, b_hh_n)

    # ---- final Linear (dim_hidden -> classes) on the last hidden state ------
    h_last = h_last[:B, :H]
    return h_last @ params["w2_t"] + params["b2"]


# ---------------------------------------------------------------------------
# Module wrapper (embedding lookup + kernel + labels passthrough)
# ---------------------------------------------------------------------------
def gru_module_forward(sentences, labels, params, *, use_bf16=True):
    # nn.Embedding lookup (gather) stays in XLA.
    embeds = jnp.take(params["embedding"], sentences, axis=0).astype(jnp.float32)  # (T,B,E)
    logits = gru_forward_pallas(embeds, params, use_bf16=use_bf16)
    return logits, labels


# ---------------------------------------------------------------------------
# Deterministic parameter init (shapes follow the PyTorch module __init__)
# ---------------------------------------------------------------------------
def init_params(key, vocab, dim_embedding, dim_hidden, classes):
    k_emb, k1, k2, k3, k4, k5, k6 = jax.random.split(key, 7)
    bound = 1.0 / jnp.sqrt(dim_hidden)
    params = {
        # nn.Embedding(vocab, E): N(0, 1)
        "embedding": jax.random.normal(k_emb, (vocab, dim_embedding), jnp.float32),
        # nn.GRU(E, H): weight_ih (3H, E), weight_hh (3H, H) -> stored transposed
        "w_ih_t": jax.random.uniform(k1, (dim_embedding, 3 * dim_hidden),
                                     jnp.float32, -bound, bound),
        "w_hh_t": jax.random.uniform(k2, (dim_hidden, 3 * dim_hidden),
                                     jnp.float32, -bound, bound),
        "b_ih": jax.random.uniform(k3, (1, 3 * dim_hidden), jnp.float32, -bound, bound),
        "b_hh": jax.random.uniform(k4, (1, 3 * dim_hidden), jnp.float32, -bound, bound),
        # nn.Linear(H, classes) -> stored transposed
        "w2_t": jax.random.uniform(k5, (dim_hidden, classes), jnp.float32, -bound, bound),
        "b2": jax.random.uniform(k6, (1, classes), jnp.float32, -bound, bound),
    }
    return params


# ---------------------------------------------------------------------------
# Pure-JAX reference (lax.scan) for correctness checking
# ---------------------------------------------------------------------------
def gru_forward_ref(embeds, params):
    T, B, E = embeds.shape
    H = params["w_hh_t"].shape[0]

    def step(h, x):
        gi = x @ params["w_ih_t"] + params["b_ih"]
        gh = h @ params["w_hh_t"] + params["b_hh"]
        r = jax.nn.sigmoid(gi[:, :H] + gh[:, :H])
        z = jax.nn.sigmoid(gi[:, H:2 * H] + gh[:, H:2 * H])
        n = jnp.tanh(gi[:, 2 * H:] + r * gh[:, 2 * H:])
        h_new = (1.0 - z) * n + z * h
        return h_new, None

    h0 = jnp.zeros((B, H), jnp.float32)
    h_last, _ = jax.lax.scan(step, h0, embeds)
    return h_last @ params["w2_t"] + params["b2"]


if __name__ == "__main__":
    # Small shapes consistent with the module's forward:
    # sentences: (seq_len, batch) int ids; hidden (1, batch, H); output (batch, classes)
    seq_len = 24
    batch = 8
    vocab = 200
    dim_embedding = 70
    dim_hidden = 40        # matches the PyTorch spec; exercises H -> 128 lane padding
    classes = 2

    key = jax.random.PRNGKey(0)
    k_params, k_sent, k_lab = jax.random.split(key, 3)

    params = init_params(k_params, vocab, dim_embedding, dim_hidden, classes)
    sentences = jax.random.randint(k_sent, (seq_len, batch), 0, vocab, jnp.int32)
    labels = jax.random.randint(k_lab, (batch,), 0, classes, jnp.int32)

    embeds = jnp.take(params["embedding"], sentences, axis=0).astype(jnp.float32)
    ref = jax.block_until_ready(gru_forward_ref(embeds, params))

    # 1) f32 kernel path: tight check against the pure-JAX lax.scan reference.
    logits_f32 = jax.block_until_ready(
        gru_forward_pallas(embeds, params, use_bf16=False))
    assert logits_f32.shape == (batch, classes)
    assert jnp.allclose(logits_f32, ref, atol=1e-4, rtol=1e-4), "f32 mismatch vs reference"

    # 2) default (bf16-fed MXU) perf path: deliberately loosened tolerance,
    #    since gates/W_hh are streamed in bfloat16 (accumulation stays f32).
    logits_bf16, labels_out = gru_module_forward(sentences, labels, params)
    logits_bf16 = jax.block_until_ready(logits_bf16)
    assert logits_bf16.shape == (batch, classes)
    assert jnp.allclose(logits_bf16, ref, atol=1e-1, rtol=1e-1), "bf16 path diverged"

    print("KERNEL_OK")
</pallas_src>

<mosaic_0001>
module attributes {stable_mosaic.version = 11 : i64} {
  func.func @_gru_recurrent_kernel(%arg0: i32, %arg1: i32, %arg2: memref<24x8x384xf32, #tpu.memory_space<vmem>>, %arg3: memref<128x384xf32, #tpu.memory_space<vmem>>, %arg4: memref<1x128xf32, #tpu.memory_space<vmem>>, %arg5: memref<8x128xf32, #tpu.memory_space<vmem>>) attributes {dimension_semantics = [#tpu.dimension_semantics<parallel>, #tpu.dimension_semantics<arbitrary>], iteration_bounds = array<i64: 1, 1>, scalar_prefetch = 0 : i64, scratch_operands = 0 : i64, tpu.core_type = #tpu.core_type<tc>, window_params = [{transform_indices = @transform_0, window_bounds = array<i64: 24, 8, 384>}, {pipeline_mode = #tpu.pipeline_mode<synchronous>, transform_indices = @transform_1, window_bounds = array<i64: 128, 384>}, {pipeline_mode = #tpu.pipeline_mode<synchronous>, transform_indices = @transform_2, window_bounds = array<i64: 1, 128>}, {transform_indices = @transform_3, window_bounds = array<i64: 8, 128>}]} {
    %c0_i32 = arith.constant 0 : i32
    %0 = arith.cmpi eq, %arg1, %c0_i32 : i32
    %1 = arith.extui %0 : i1 to i32
    %c0_i32_0 = arith.constant 0 : i32
    %2 = arith.cmpi ne, %1, %c0_i32_0 : i32
    scf.if %2 {
      %cst_128 = arith.constant 0.000000e+00 : f32
      %705 = vector.broadcast %cst_128 : f32 to vector<8x128xf32>
      %c0_129 = arith.constant 0 : index
      %c0_130 = arith.constant 0 : index
      %706 = vector.load %arg5[%c0_129, %c0_130] : memref<8x128xf32, #tpu.memory_space<vmem>>, vector<8x128xf32>
      tpu.vector_store %arg5[%c0_129, %c0_130], %705 {strides = array<i32>} : memref<8x128xf32, #tpu.memory_space<vmem>>, vector<8x128xf32>,
    } else {
    }
    %c0 = arith.constant 0 : index
    %c0_1 = arith.constant 0 : index
    %3 = vector.load %arg3[%c0, %c0_1] : memref<128x384xf32, #tpu.memory_space<vmem>>, vector<128x384xf32>
    %c0_2 = arith.constant 0 : index
    %c0_3 = arith.constant 0 : index
    %4 = vector.load %arg4[%c0_2, %c0_3] : memref<1x128xf32, #tpu.memory_space<vmem>>, vector<1x128xf32>
    %5 = vector.shape_cast %4 : vector<1x128xf32> to vector<1x128xf32>
    %6 = vector.broadcast %5 : vector<1x128xf32> to vector<8x128xf32>
    %c0_4 = arith.constant 0 : index
    %c0_5 = arith.constant 0 : index
    %7 = vector.load %arg5[%c0_4, %c0_5] : memref<8x128xf32, #tpu.memory_space<vmem>>, vector<8x128xf32>
    %c0_i32_6 = arith.constant 0 : i32
    %8 = arith.index_cast %c0_i32_6 : i32 to index
    %c0_7 = arith.constant 0 : index
    %c0_8 = arith.constant 0 : index
    %9 = vector.load %arg2[%8, %c0_7, %c0_8] : memref<24x8x384xf32, #tpu.memory_space<vmem>>, vector<1x8x384xf32>
    %10 = vector.shape_cast %9 : vector<1x8x384xf32> to vector<8x384xf32>
    %cst = arith.constant dense<0.000000e+00> : vector<8x384xf32>
    %11 = tpu.matmul %7, %3, %cst {dimension_numbers = #tpu.dot_dimension_numbers<[1], [0], [0], [1], [0, 0, 1, 1], [], []>} : vector<8x128xf32>, vector<128x384xf32>, vector<8x384xf32> -> vector<8x384xf32>
    %12 = vector.extract_strided_slice %10 {offsets = [0, 0], sizes = [8, 128], strides = [1, 1]} : vector<8x384xf32> to vector<8x128xf32>
    %13 = vector.extract_strided_slice %11 {offsets = [0, 0], sizes = [8, 128], strides = [1, 1]} : vector<8x384xf32> to vector<8x128xf32>
    %14 = arith.addf %12, %13 : vector<8x128xf32>
    %15 = arith.negf %14 : vector<8x128xf32>
    %16 = math.exp %15 : vector<8x128xf32>
    %cst_9 = arith.constant 1.000000e+00 : f32
    %17 = vector.broadcast %cst_9 : f32 to vector<8x128xf32>
    %18 = arith.addf %17, %16 : vector<8x128xf32>
    %19 = arith.divf %17, %18 : vector<8x128xf32>
    %20 = vector.extract_strided_slice %10 {offsets = [0, 128], sizes = [8, 128], strides = [1, 1]} : vector<8x384xf32> to vector<8x128xf32>
    %21 = vector.extract_strided_slice %11 {offsets = [0, 128], sizes = [8, 128], strides = [1, 1]} : vector<8x384xf32> to vector<8x128xf32>
    %22 = arith.addf %20, %21 : vector<8x128xf32>
    %23 = arith.negf %22 : vector<8x128xf32>
    %24 = math.exp %23 : vector<8x128xf32>
    %cst_10 = arith.constant 1.000000e+00 : f32
    %25 = vector.broadcast %cst_10 : f32 to vector<8x128xf32>
    %26 = arith.addf %25, %24 : vector<8x128xf32>
    %27 = arith.divf %25, %26 : vector<8x128xf32>
    %28 = vector.extract_strided_slice %10 {offsets = [0, 256], sizes = [8, 128], strides = [1, 1]} : vector<8x384xf32> to vector<8x128xf32>
    %29 = vector.extract_strided_slice %11 {offsets = [0, 256], sizes = [8, 128], strides = [1, 1]} : vector<8x384xf32> to vector<8x128xf32>
    %30 = arith.addf %29, %6 : vector<8x128xf32>
    %31 = arith.mulf %19, %30 : vector<8x128xf32>
    %32 = arith.addf %28, %31 : vector<8x128xf32>
    %33 = math.tanh %32 : vector<8x128xf32>
    %34 = arith.subf %7, %33 : vector<8x128xf32>
    %35 = arith.mulf %27, %34 : vector<8x128xf32>
    %36 = arith.addf %33, %35 : vector<8x128xf32>
    %c1_i32 = arith.constant 1 : i32
    %37 = arith.index_cast %c1_i32 : i32 to index
    %c0_11 = arith.constant 0 : index
    %c0_12 = arith.constant 0 : index
    %38 = vector.load %arg2[%37, %c0_11, %c0_12] : memref<24x8x384xf32, #tpu.memory_space<vmem>>, vector<1x8x384xf32>
    %39 = vector.shape_cast %38 : vector<1x8x384xf32> to vector<8x384xf32>
    %cst_13 = arith.constant dense<0.000000e+00> : vector<8x384xf32>
    %40 = tpu.matmul %36, %3, %cst_13 {dimension_numbers = #tpu.dot_dimension_numbers<[1], [0], [0], [1], [0, 0, 1, 1], [], []>} : vector<8x128xf32>, vector<128x384xf32>, vector<8x384xf32> -> vector<8x384xf32>
    %41 = vector.extract_strided_slice %39 {offsets = [0, 0], sizes = [8, 128], strides = [1, 1]} : vector<8x384xf32> to vector<8x128xf32>
    %42 = vector.extract_strided_slice %40 {offsets = [0, 0], sizes = [8, 128], strides = [1, 1]} : vector<8x384xf32> to vector<8x128xf32>
    %43 = arith.addf %41, %42 : vector<8x128xf32>
    %44 = arith.negf %43 : vector<8x128xf32>
    %45 = math.exp %44 : vector<8x128xf32>
    %cst_14 = arith.constant 1.000000e+00 : f32
    %46 = vector.broadcast %cst_14 : f32 to vector<8x128xf32>
    %47 = arith.addf %46, %45 : vector<8x128xf32>
    %48 = arith.divf %46, %47 : vector<8x128xf32>
    %49 = vector.extract_strided_slice %39 {offsets = [0, 128], sizes = [8, 128], strides = [1, 1]} : vector<8x384xf32> to vector<8x128xf32>
    %50 = vector.extract_strided_slice %40 {offsets = [0, 128], sizes = [8, 128], strides = [1, 1]} : vector<8x384xf32> to vector<8x128xf32>
    %51 = arith.addf %49, %50 : vector<8x128xf32>
    %52 = arith.negf %51 : vector<8x128xf32>
    %53 = math.exp %52 : vector<8x128xf32>
    %cst_15 = arith.constant 1.000000e+00 : f32
    %54 = vector.broadcast %cst_15 : f32 to vector<8x128xf32>
    %55 = arith.addf %54, %53 : vector<8x128xf32>
    %56 = arith.divf %54, %55 : vector<8x128xf32>
    %57 = vector.extract_strided_slice %39 {offsets = [0, 256], sizes = [8, 128], strides = [1, 1]} : vector<8x384xf32> to vector<8x128xf32>
    %58 = vector.extract_strided_slice %40 {offsets = [0, 256], sizes = [8, 128], strides = [1, 1]} : vector<8x384xf32> to vector<8x128xf32>
    %59 = arith.addf %58, %6 : vector<8x128xf32>
    %60 = arith.mulf %48, %59 : vector<8x128xf32>
    %61 = arith.addf %57, %60 : vector<8x128xf32>
    %62 = math.tanh %61 : vector<8x128xf32>
    %63 = arith.subf %36, %62 : vector<8x128xf32>
    %64 = arith.mulf %56, %63 : vector<8x128xf32>
    %65 = arith.addf %62, %64 : vector<8x128xf32>
    %c2_i32 = arith.constant 2 : i32
    %66 = arith.index_cast %c2_i32 : i32 to index
    %c0_16 = arith.constant 0 : index
    %c0_17 = arith.constant 0 : index
    %67 = vector.load %arg2[%66, %c0_16, %c0_17] : memref<24x8x384xf32, #tpu.memory_space<vmem>>, vector<1x8x384xf32>
    %68 = vector.shape_cast %67 : vector<1x8x384xf32> to vector<8x384xf32>
    %cst_18 = arith.constant dense<0.000000e+00> : vector<8x384xf32>
    %69 = tpu.matmul %65, %3, %cst_18 {dimension_numbers = #tpu.dot_dimension_numbers<[1], [0], [0], [1], [0, 0, 1, 1], [], []>} : vector<8x128xf32>, vector<128x384xf32>, vector<8x384xf32> -> vector<8x384xf32>
    %70 = vector.extract_strided_slice %68 {offsets = [0, 0], sizes = [8, 128], strides = [1, 1]} : vector<8x384xf32> to vector<8x128xf32>
    %71 = vector.extract_strided_slice %69 {offsets = [0, 0], sizes = [8, 128], strides = [1, 1]} : vector<8x384xf32> to vector<8x128xf32>
    %72 = arith.addf %70, %71 : vector<8x128xf32>
    %73 = arith.negf %72 : vector<8x128xf32>
    %74 = math.exp %73 : vector<8x128xf32>
    %cst_19 = arith.constant 1.000000e+00 : f32
    %75 = vector.broadcast %cst_19 : f32 to vector<8x128xf32>
    %76 = arith.addf %75, %74 : vector<8x128xf32>
    %77 = arith.divf %75, %76 : vector<8x128xf32>
    %78 = vector.extract_strided_slice %68 {offsets = [0, 128], sizes = [8, 128], strides = [1, 1]} : vector<8x384xf32> to vector<8x128xf32>
    %79 = vector.extract_strided_slice %69 {offsets = [0, 128], sizes = [8, 128], strides = [1, 1]} : vector<8x384xf32> to vector<8x128xf32>
    %80 = arith.addf %78, %79 : vector<8x128xf32>
    %81 = arith.negf %80 : vector<8x128xf32>
    %82 = math.exp %81 : vector<8x128xf32>
    %cst_20 = arith.constant 1.000000e+00 : f32
    %83 = vector.broadcast %cst_20 : f32 to vector<8x128xf32>
    %84 = arith.addf %83, %82 : vector<8x128xf32>
    %85 = arith.divf %83, %84 : vector<8x128xf32>
    %86 = vector.extract_strided_slice %68 {offsets = [0, 256], sizes = [8, 128], strides = [1, 1]} : vector<8x384xf32> to vector<8x128xf32>
    %87 = vector.extract_strided_slice %69 {offsets = [0, 256], sizes = [8, 128], strides = [1, 1]} : vector<8x384xf32> to vector<8x128xf32>
    %88 = arith.addf %87, %6 : vector<8x128xf32>
    %89 = arith.mulf %77, %88 : vector<8x128xf32>
    %90 = arith.addf %86, %89 : vector<8x128xf32>
    %91 = math.tanh %90 : vector<8x128xf32>
    %92 = arith.subf %65, %91 : vector<8x128xf32>
    %93 = arith.mulf %85, %92 : vector<8x128xf32>
    %94 = arith.addf %91, %93 : vector<8x128xf32>
    %c3_i32 = arith.constant 3 : i32
    %95 = arith.index_cast %c3_i32 : i32 to index
    %c0_21 = arith.constant 0 : index
    %c0_22 = arith.constant 0 : index
    %96 = vector.load %arg2[%95, %c0_21, %c0_22] : memref<24x8x384xf32, #tpu.memory_space<vmem>>, vector<1x8x384xf32>
    %97 = vector.shape_cast %96 : vector<1x8x384xf32> to vector<8x384xf32>
    %cst_23 = arith.constant dense<0.000000e+00> : vector<8x384xf32>
    %98 = tpu.matmul %94, %3, %cst_23 {dimension_numbers = #tpu.dot_dimension_numbers<[1], [0], [0], [1], [0, 0, 1, 1], [], []>} : vector<8x128xf32>, vector<128x384xf32>, vector<8x384xf32> -> vector<8x384xf32>
    %99 = vector.extract_strided_slice %97 {offsets = [0, 0], sizes = [8, 128], strides = [1, 1]} : vector<8x384xf32> to vector<8x128xf32>
    %100 = vector.extract_strided_slice %98 {offsets = [0, 0], sizes = [8, 128], strides = [1, 1]} : vector<8x384xf32> to vector<8x128xf32>
    %101 = arith.addf %99, %100 : vector<8x128xf32>
    %102 = arith.negf %101 : vector<8x128xf32>
    %103 = math.exp %102 : vector<8x128xf32>
    %cst_24 = arith.constant 1.000000e+00 : f32
    %104 = vector.broadcast %cst_24 : f32 to vector<8x128xf32>
    %105 = arith.addf %104, %103 : vector<8x128xf32>
    %106 = arith.divf %104, %105 : vector<8x128xf32>
    %107 = vector.extract_strided_slice %97 {offsets = [0, 128], sizes = [8, 128], strides = [1, 1]} : vector<8x384xf32> to vector<8x128xf32>
    %108 = vector.extract_strided_slice %98 {offsets = [0, 128], sizes = [8, 128], strides = [1, 1]} : vector<8x384xf32> to vector<8x128xf32>
    %109 = arith.addf %107, %108 : vector<8x128xf32>
    %110 = arith.negf %109 : vector<8x128xf32>
    %111 = math.exp %110 : vector<8x128xf32>
    %cst_25 = arith.constant 1.000000e+00 : f32
    %112 = vector.broadcast %cst_25 : f32 to vector<8x128xf32>
    %113 = arith.addf %112, %111 : vector<8x128xf32>
    %114 = arith.divf %112, %113 : vector<8x128xf32>
    %115 = vector.extract_strided_slice %97 {offsets = [0, 256], sizes = [8, 128], strides = [1, 1]} : vector<8x384xf32> to vector<8x128xf32>
    %116 = vector.extract_strided_slice %98 {offsets = [0, 256], sizes = [8, 128], strides = [1, 1]} : vector<8x384xf32> to vector<8x128xf32>
    %117 = arith.addf %116, %6 : vector<8x128xf32>
    %118 = arith.mulf %106, %117 : vector<8x128xf32>
    %119 = arith.addf %115, %118 : vector<8x128xf32>
    %120 = math.tanh %119 : vector<8x128xf32>
    %121 = arith.subf %94, %120 : vector<8x128xf32>
    %122 = arith.mulf %114, %121 : vector<8x128xf32>
    %123 = arith.addf %120, %122 : vector<8x128xf32>
    %c4_i32 = arith.constant 4 : i32
    %124 = arith.index_cast %c4_i32 : i32 to index
    %c0_26 = arith.constant 0 : index
    %c0_27 = arith.constant 0 : index
    %125 = vector.load %arg2[%124, %c0_26, %c0_27] : memref<24x8x384xf32, #tpu.memory_space<vmem>>, vector<1x8x384xf32>
    %126 = vector.shape_cast %125 : vector<1x8x384xf32> to vector<8x384xf32>
    %cst_28 = arith.constant dense<0.000000e+00> : vector<8x384xf32>
    %127 = tpu.matmul %123, %3, %cst_28 {dimension_numbers = #tpu.dot_dimension_numbers<[1], [0], [0], [1], [0, 0, 1, 1], [], []>} : vector<8x128xf32>, vector<128x384xf32>, vector<8x384xf32> -> vector<8x384xf32>
    %128 = vector.extract_strided_slice %126 {offsets = [0, 0], sizes = [8, 128], strides = [1, 1]} : vector<8x384xf32> to vector<8x128xf32>
    %129 = vector.extract_strided_slice %127 {offsets = [0, 0], sizes = [8, 128], strides = [1, 1]} : vector<8x384xf32> to vector<8x128xf32>
    %130 = arith.addf %128, %129 : vector<8x128xf32>
    %131 = arith.negf %130 : vector<8x128xf32>
    %132 = math.exp %131 : vector<8x128xf32>
    %cst_29 = arith.constant 1.000000e+00 : f32
    %133 = vector.broadcast %cst_29 : f32 to vector<8x128xf32>
    %134 = arith.addf %133, %132 : vector<8x128xf32>
    %135 = arith.divf %133, %134 : vector<8x128xf32>
    %136 = vector.extract_strided_slice %126 {offsets = [0, 128], sizes = [8, 128], strides = [1, 1]} : vector<8x384xf32> to vector<8x128xf32>
    %137 = vector.extract_strided_slice %127 {offsets = [0, 128], sizes = [8, 128], strides = [1, 1]} : vector<8x384xf32> to vector<8x128xf32>
    %138 = arith.addf %136, %137 : vector<8x128xf32>
    %139 = arith.negf %138 : vector<8x128xf32>
    %140 = math.exp %139 : vector<8x128xf32>
    %cst_30 = arith.constant 1.000000e+00 : f32
    %141 = vector.broadcast %cst_30 : f32 to vector<8x128xf32>
    %142 = arith.addf %141, %140 : vector<8x128xf32>
    %143 = arith.divf %141, %142 : vector<8x128xf32>
    %144 = vector.extract_strided_slice %126 {offsets = [0, 256], sizes = [8, 128], strides = [1, 1]} : vector<8x384xf32> to vector<8x128xf32>
    %145 = vector.extract_strided_slice %127 {offsets = [0, 256], sizes = [8, 128], strides = [1, 1]} : vector<8x384xf32> to vector<8x128xf32>
    %146 = arith.addf %145, %6 : vector<8x128xf32>
    %147 = arith.mulf %135, %146 : vector<8x128xf32>
    %148 = arith.addf %144, %147 : vector<8x128xf32>
    %149 = math.tanh %148 : vector<8x128xf32>
    %150 = arith.subf %123, %149 : vector<8x128xf32>
    %151 = arith.mulf %143, %150 : vector<8x128xf32>
    %152 = arith.addf %149, %151 : vector<8x128xf32>
    %c5_i32 = arith.constant 5 : i32
    %153 = arith.index_cast %c5_i32 : i32 to index
    %c0_31 = arith.constant 0 : index
    %c0_32 = arith.constant 0 : index
    %154 = vector.load %arg2[%153, %c0_31, %c0_32] : memref<24x8x384xf32, #tpu.memory_space<vmem>>, vector<1x8x384xf32>
    %155 = vector.shape_cast %154 : vector<1x8x384xf32> to vector<8x384xf32>
    %cst_33 = arith.constant dense<0.000000e+00> : vector<8x384xf32>
    %156 = tpu.matmul %152, %3, %cst_33 {dimension_numbers = #tpu.dot_dimension_numbers<[1], [0], [0], [1], [0, 0, 1, 1], [], []>} : vector<8x128xf32>, vector<128x384xf32>, vector<8x384xf32> -> vector<8x384xf32>
    %157 = vector.extract_strided_slice %155 {offsets = [0, 0], sizes = [8, 128], strides = [1, 1]} : vector<8x384xf32> to vector<8x128xf32>
    %158 = vector.extract_strided_slice %156 {offsets = [0, 0], sizes = [8, 128], strides = [1, 1]} : vector<8x384xf32> to vector<8x128xf32>
    %159 = arith.addf %157, %158 : vector<8x128xf32>
    %160 = arith.negf %159 : vector<8x128xf32>
    %161 = math.exp %160 : vector<8x128xf32>
    %cst_34 = arith.constant 1.000000e+00 : f32
    %162 = vector.broadcast %cst_34 : f32 to vector<8x128xf32>
    %163 = arith.addf %162, %161 : vector<8x128xf32>
    %164 = arith.divf %162, %163 : vector<8x128xf32>
    %165 = vector.extract_strided_slice %155 {offsets = [0, 128], sizes = [8, 128], strides = [1, 1]} : vector<8x384xf32> to vector<8x128xf32>
    %166 = vector.extract_strided_slice %156 {offsets = [0, 128], sizes = [8, 128], strides = [1, 1]} : vector<8x384xf32> to vector<8x128xf32>
    %167 = arith.addf %165, %166 : vector<8x128xf32>
    %168 = arith.negf %167 : vector<8x128xf32>
    %169 = math.exp %168 : vector<8x128xf32>
    %cst_35 = arith.constant 1.000000e+00 : f32
    %170 = vector.broadcast %cst_35 : f32 to vector<8x128xf32>
    %171 = arith.addf %170, %169 : vector<8x128xf32>
    %172 = arith.divf %170, %171 : vector<8x128xf32>
    %173 = vector.extract_strided_slice %155 {offsets = [0, 256], sizes = [8, 128], strides = [1, 1]} : vector<8x384xf32> to vector<8x128xf32>
    %174 = vector.extract_strided_slice %156 {offsets = [0, 256], sizes = [8, 128], strides = [1, 1]} : vector<8x384xf32> to vector<8x128xf32>
    %175 = arith.addf %174, %6 : vector<8x128xf32>
    %176 = arith.mulf %164, %175 : vector<8x128xf32>
    %177 = arith.addf %173, %176 : vector<8x128xf32>
    %178 = math.tanh %177 : vector<8x128xf32>
    %179 = arith.subf %152, %178 : vector<8x128xf32>
    %180 = arith.mulf %172, %179 : vector<8x128xf32>
    %181 = arith.addf %178, %180 : vector<8x128xf32>
    %c6_i32 = arith.constant 6 : i32
    %182 = arith.index_cast %c6_i32 : i32 to index
    %c0_36 = arith.constant 0 : index
    %c0_37 = arith.constant 0 : index
    %183 = vector.load %arg2[%182, %c0_36, %c0_37] : memref<24x8x384xf32, #tpu.memory_space<vmem>>, vector<1x8x384xf32>
    %184 = vector.shape_cast %183 : vector<1x8x384xf32> to vector<8x384xf32>
    %cst_38 = arith.constant dense<0.000000e+00> : vector<8x384xf32>
    %185 = tpu.matmul %181, %3, %cst_38 {dimension_numbers = #tpu.dot_dimension_numbers<[1], [0], [0], [1], [0, 0, 1, 1], [], []>} : vector<8x128xf32>, vector<128x384xf32>, vector<8x384xf32> -> vector<8x384xf32>
    %186 = vector.extract_strided_slice %184 {offsets = [0, 0], sizes = [8, 128], strides = [1, 1]} : vector<8x384xf32> to vector<8x128xf32>
    %187 = vector.extract_strided_slice %185 {offsets = [0, 0], sizes = [8, 128], strides = [1, 1]} : vector<8x384xf32> to vector<8x128xf32>
    %188 = arith.addf %186, %187 : vector<8x128xf32>
    %189 = arith.negf %188 : vector<8x128xf32>
    %190 = math.exp %189 : vector<8x128xf32>
    %cst_39 = arith.constant 1.000000e+00 : f32
    %191 = vector.broadcast %cst_39 : f32 to vector<8x128xf32>
    %192 = arith.addf %191, %190 : vector<8x128xf32>
    %193 = arith.divf %191, %192 : vector<8x128xf32>
    %194 = vector.extract_strided_slice %184 {offsets = [0, 128], sizes = [8, 128], strides = [1, 1]} : vector<8x384xf32> to vector<8x128xf32>
    %195 = vector.extract_strided_slice %185 {offsets = [0, 128], sizes = [8, 128], strides = [1, 1]} : vector<8x384xf32> to vector<8x128xf32>
    %196 = arith.addf %194, %195 : vector<8x128xf32>
    %197 = arith.negf %196 : vector<8x128xf32>
    %198 = math.exp %197 : vector<8x128xf32>
    %cst_40 = arith.constant 1.000000e+00 : f32
    %199 = vector.broadcast %cst_40 : f32 to vector<8x128xf32>
    %200 = arith.addf %199, %198 : vector<8x128xf32>
    %201 = arith.divf %199, %200 : vector<8x128xf32>
    %202 = vector.extract_strided_slice %184 {offsets = [0, 256], sizes = [8, 128], strides = [1, 1]} : vector<8x384xf32> to vector<8x128xf32>
    %203 = vector.extract_strided_slice %185 {offsets = [0, 256], sizes = [8, 128], strides = [1, 1]} : vector<8x384xf32> to vector<8x128xf32>
    %204 = arith.addf %203, %6 : vector<8x128xf32>
    %205 = arith.mulf %193, %204 : vector<8x128xf32>
    %206 = arith.addf %202, %205 : vector<8x128xf32>
    %207 = math.tanh %206 : vector<8x128xf32>
    %208 = arith.subf %181, %207 : vector<8x128xf32>
    %209 = arith.mulf %201, %208 : vector<8x128xf32>
    %210 = arith.addf %207, %209 : vector<8x128xf32>
    %c7_i32 = arith.constant 7 : i32
    %211 = arith.index_cast %c7_i32 : i32 to index
    %c0_41 = arith.constant 0 : index
    %c0_42 = arith.constant 0 : index
    %212 = vector.load %arg2[%211, %c0_41, %c0_42] : memref<24x8x384xf32, #tpu.memory_space<vmem>>, vector<1x8x384xf32>
    %213 = vector.shape_cast %212 : vector<1x8x384xf32> to vector<8x384xf32>
    %cst_43 = arith.constant dense<0.000000e+00> : vector<8x384xf32>
    %214 = tpu.matmul %210, %3, %cst_43 {dimension_numbers = #tpu.dot_dimension_numbers<[1], [0], [0], [1], [0, 0, 1, 1], [], []>} : vector<8x128xf32>, vector<128x384xf32>, vector<8x384xf32> -> vector<8x384xf32>
    %215 = vector.extract_strided_slice %213 {offsets = [0, 0], sizes = [8, 128], strides = [1, 1]} : vector<8x384xf32> to vector<8x128xf32>
    %216 = vector.extract_strided_slice %214 {offsets = [0, 0], sizes = [8, 128], strides = [1, 1]} : vector<8x384xf32> to vector<8x128xf32>
    %217 = arith.addf %215, %216 : vector<8x128xf32>
    %218 = arith.negf %217 : vector<8x128xf32>
    %219 = math.exp %218 : vector<8x128xf32>
    %cst_44 = arith.constant 1.000000e+00 : f32
    %220 = vector.broadcast %cst_44 : f32 to vector<8x128xf32>
    %221 = arith.addf %220, %219 : vector<8x128xf32>
    %222 = arith.divf %220, %221 : vector<8x128xf32>
    %223 = vector.extract_strided_slice %213 {offsets = [0, 128], sizes = [8, 128], strides = [1, 1]} : vector<8x384xf32> to vector<8x128xf32>
    %224 = vector.extract_strided_slice %214 {offsets = [0, 128], sizes = [8, 128], strides = [1, 1]} : vector<8x384xf32> to vector<8x128xf32>
    %225 = arith.addf %223, %224 : vector<8x128xf32>
    %226 = arith.negf %225 : vector<8x128xf32>
    %227 = math.exp %226 : vector<8x128xf32>
    %cst_45 = arith.constant 1.000000e+00 : f32
    %228 = vector.broadcast %cst_45 : f32 to vector<8x128xf32>
    %229 = arith.addf %228, %227 : vector<8x128xf32>
    %230 = arith.divf %228, %229 : vector<8x128xf32>
    %231 = vector.extract_strided_slice %213 {offsets = [0, 256], sizes = [8, 128], strides = [1, 1]} : vector<8x384xf32> to vector<8x128xf32>
    %232 = vector.extract_strided_slice %214 {offsets = [0, 256], sizes = [8, 128], strides = [1, 1]} : vector<8x384xf32> to vector<8x128xf32>
    %233 = arith.addf %232, %6 : vector<8x128xf32>
    %234 = arith.mulf %222, %233 : vector<8x128xf32>
    %235 = arith.addf %231, %234 : vector<8x128xf32>
    %236 = math.tanh %235 : vector<8x128xf32>
    %237 = arith.subf %210, %236 : vector<8x128xf32>
    %238 = arith.mulf %230, %237 : vector<8x128xf32>
    %239 = arith.addf %236, %238 : vector<8x128xf32>
    %c8_i32 = arith.constant 8 : i32
    %240 = arith.index_cast %c8_i32 : i32 to index
    %c0_46 = arith.constant 0 : index
    %c0_47 = arith.constant 0 : index
    %241 = vector.load %arg2[%240, %c0_46, %c0_47] : memref<24x8x384xf32, #tpu.memory_space<vmem>>, vector<1x8x384xf32>
    %242 = vector.shape_cast %241 : vector<1x8x384xf32> to vector<8x384xf32>
    %cst_48 = arith.constant dense<0.000000e+00> : vector<8x384xf32>
    %243 = tpu.matmul %239, %3, %cst_48 {dimension_numbers = #tpu.dot_dimension_numbers<[1], [0], [0], [1], [0, 0, 1, 1], [], []>} : vector<8x128xf32>, vector<128x384xf32>, vector<8x384xf32> -> vector<8x384xf32>
    %244 = vector.extract_strided_slice %242 {offsets = [0, 0], sizes = [8, 128], strides = [1, 1]} : vector<8x384xf32> to vector<8x128xf32>
    %245 = vector.extract_strided_slice %243 {offsets = [0, 0], sizes = [8, 128], strides = [1, 1]} : vector<8x384xf32> to vector<8x128xf32>
    %246 = arith.addf %244, %245 : vector<8x128xf32>
    %247 = arith.negf %246 : vector<8x128xf32>
    %248 = math.exp %247 : vector<8x128xf32>
    %cst_49 = arith.constant 1.000000e+00 : f32
    %249 = vector.broadcast %cst_49 : f32 to vector<8x128xf32>
    %250 = arith.addf %249, %248 : vector<8x128xf32>
    %251 = arith.divf %249, %250 : vector<8x128xf32>
    %252 = vector.extract_strided_slice %242 {offsets = [0, 128], sizes = [8, 128], strides = [1, 1]} : vector<8x384xf32> to vector<8x128xf32>
    %253 = vector.extract_strided_slice %243 {offsets = [0, 128], sizes = [8, 128], strides = [1, 1]} : vector<8x384xf32> to vector<8x128xf32>
    %254 = arith.addf %252, %253 : vector<8x128xf32>
    %255 = arith.negf %254 : vector<8x128xf32>
    %256 = math.exp %255 : vector<8x128xf32>
    %cst_50 = arith.constant 1.000000e+00 : f32
    %257 = vector.broadcast %cst_50 : f32 to vector<8x128xf32>
    %258 = arith.addf %257, %256 : vector<8x128xf32>
    %259 = arith.divf %257, %258 : vector<8x128xf32>
    %260 = vector.extract_strided_slice %242 {offsets = [0, 256], sizes = [8, 128], strides = [1, 1]} : vector<8x384xf32> to vector<8x128xf32>
    %261 = vector.extract_strided_slice %243 {offsets = [0, 256], sizes = [8, 128], strides = [1, 1]} : vector<8x384xf32> to vector<8x128xf32>
    %262 = arith.addf %261, %6 : vector<8x128xf32>
    %263 = arith.mulf %251, %262 : vector<8x128xf32>
    %264 = arith.addf %260, %263 : vector<8x128xf32>
    %265 = math.tanh %264 : vector<8x128xf32>
    %266 = arith.subf %239, %265 : vector<8x128xf32>
    %267 = arith.mulf %259, %266 : vector<8x128xf32>
    %268 = arith.addf %265, %267 : vector<8x128xf32>
    %c9_i32 = arith.constant 9 : i32
    %269 = arith.index_cast %c9_i32 : i32 to index
    %c0_51 = arith.constant 0 : index
    %c0_52 = arith.constant 0 : index
    %270 = vector.load %arg2[%269, %c0_51, %c0_52] : memref<24x8x384xf32, #tpu.memory_space<vmem>>, vector<1x8x384xf32>
    %271 = vector.shape_cast %270 : vector<1x8x384xf32> to vector<8x384xf32>
    %cst_53 = arith.constant dense<0.000000e+00> : vector<8x384xf32>
    %272 = tpu.matmul %268, %3, %cst_53 {dimension_numbers = #tpu.dot_dimension_numbers<[1], [0], [0], [1], [0, 0, 1, 1], [], []>} : vector<8x128xf32>, vector<128x384xf32>, vector<8x384xf32> -> vector<8x384xf32>
    %273 = vector.extract_strided_slice %271 {offsets = [0, 0], sizes = [8, 128], strides = [1, 1]} : vector<8x384xf32> to vector<8x128xf32>
    %274 = vector.extract_strided_slice %272 {offsets = [0, 0], sizes = [8, 128], strides = [1, 1]} : vector<8x384xf32> to vector<8x128xf32>
    %275 = arith.addf %273, %274 : vector<8x128xf32>
    %276 = arith.negf %275 : vector<8x128xf32>
    %277 = math.exp %276 : vector<8x128xf32>
    %cst_54 = arith.constant 1.000000e+00 : f32
    %278 = vector.broadcast %cst_54 : f32 to vector<8x128xf32>
    %279 = arith.addf %278, %277 : vector<8x128xf32>
    %280 = arith.divf %278, %279 : vector<8x128xf32>
    %281 = vector.extract_strided_slice %271 {offsets = [0, 128], sizes = [8, 128], strides = [1, 1]} : vector<8x384xf32> to vector<8x128xf32>
    %282 = vector.extract_strided_slice %272 {offsets = [0, 128], sizes = [8, 128], strides = [1, 1]} : vector<8x384xf32> to vector<8x128xf32>
    %283 = arith.addf %281, %282 : vector<8x128xf32>
    %284 = arith.negf %283 : vector<8x128xf32>
    %285 = math.exp %284 : vector<8x128xf32>
    %cst_55 = arith.constant 1.000000e+00 : f32
    %286 = vector.broadcast %cst_55 : f32 to vector<8x128xf32>
    %287 = arith.addf %286, %285 : vector<8x128xf32>
    %288 = arith.divf %286, %287 : vector<8x128xf32>
    %289 = vector.extract_strided_slice %271 {offsets = [0, 256], sizes = [8, 128], strides = [1, 1]} : vector<8x384xf32> to vector<8x128xf32>
    %290 = vector.extract_strided_slice %272 {offsets = [0, 256], sizes = [8, 128], strides = [1, 1]} : vector<8x384xf32> to vector<8x128xf32>
    %291 = arith.addf %290, %6 : vector<8x128xf32>
    %292 = arith.mulf %280, %291 : vector<8x128xf32>
    %293 = arith.addf %289, %292 : vector<8x128xf32>
    %294 = math.tanh %293 : vector<8x128xf32>
    %295 = arith.subf %268, %294 : vector<8x128xf32>
    %296 = arith.mulf %288, %295 : vector<8x128xf32>
    %297 = arith.addf %294, %296 : vector<8x128xf32>
    %c10_i32 = arith.constant 10 : i32
    %298 = arith.index_cast %c10_i32 : i32 to index
    %c0_56 = arith.constant 0 : index
    %c0_57 = arith.constant 0 : index
    %299 = vector.load %arg2[%298, %c0_56, %c0_57] : memref<24x8x384xf32, #tpu.memory_space<vmem>>, vector<1x8x384xf32>
    %300 = vector.shape_cast %299 : vector<1x8x384xf32> to vector<8x384xf32>
    %cst_58 = arith.constant dense<0.000000e+00> : vector<8x384xf32>
    %301 = tpu.matmul %297, %3, %cst_58 {dimension_numbers = #tpu.dot_dimension_numbers<[1], [0], [0], [1], [0, 0, 1, 1], [], []>} : vector<8x128xf32>, vector<128x384xf32>, vector<8x384xf32> -> vector<8x384xf32>
    %302 = vector.extract_strided_slice %300 {offsets = [0, 0], sizes = [8, 128], strides = [1, 1]} : vector<8x384xf32> to vector<8x128xf32>
    %303 = vector.extract_strided_slice %301 {offsets = [0, 0], sizes = [8, 128], strides = [1, 1]} : vector<8x384xf32> to vector<8x128xf32>
    %304 = arith.addf %302, %303 : vector<8x128xf32>
    %305 = arith.negf %304 : vector<8x128xf32>
    %306 = math.exp %305 : vector<8x128xf32>
    %cst_59 = arith.constant 1.000000e+00 : f32
    %307 = vector.broadcast %cst_59 : f32 to vector<8x128xf32>
    %308 = arith.addf %307, %306 : vector<8x128xf32>
    %309 = arith.divf %307, %308 : vector<8x128xf32>
    %310 = vector.extract_strided_slice %300 {offsets = [0, 128], sizes = [8, 128], strides = [1, 1]} : vector<8x384xf32> to vector<8x128xf32>
    %311 = vector.extract_strided_slice %301 {offsets = [0, 128], sizes = [8, 128], strides = [1, 1]} : vector<8x384xf32> to vector<8x128xf32>
    %312 = arith.addf %310, %311 : vector<8x128xf32>
    %313 = arith.negf %312 : vector<8x128xf32>
    %314 = math.exp %313 : vector<8x128xf32>
    %cst_60 = arith.constant 1.000000e+00 : f32
    %315 = vector.broadcast %cst_60 : f32 to vector<8x128xf32>
    %316 = arith.addf %315, %314 : vector<8x128xf32>
    %317 = arith.divf %315, %316 : vector<8x128xf32>
    %318 = vector.extract_strided_slice %300 {offsets = [0, 256], sizes = [8, 128], strides = [1, 1]} : vector<8x384xf32> to vector<8x128xf32>
    %319 = vector.extract_strided_slice %301 {offsets = [0, 256], sizes = [8, 128], strides = [1, 1]} : vector<8x384xf32> to vector<8x128xf32>
    %320 = arith.addf %319, %6 : vector<8x128xf32>
    %321 = arith.mulf %309, %320 : vector<8x128xf32>
    %322 = arith.addf %318, %321 : vector<8x128xf32>
    %323 = math.tanh %322 : vector<8x128xf32>
    %324 = arith.subf %297, %323 : vector<8x128xf32>
    %325 = arith.mulf %317, %324 : vector<8x128xf32>
    %326 = arith.addf %323, %325 : vector<8x128xf32>
    %c11_i32 = arith.constant 11 : i32
    %327 = arith.index_cast %c11_i32 : i32 to index
    %c0_61 = arith.constant 0 : index
    %c0_62 = arith.constant 0 : index
    %328 = vector.load %arg2[%327, %c0_61, %c0_62] : memref<24x8x384xf32, #tpu.memory_space<vmem>>, vector<1x8x384xf32>
    %329 = vector.shape_cast %328 : vector<1x8x384xf32> to vector<8x384xf32>
    %cst_63 = arith.constant dense<0.000000e+00> : vector<8x384xf32>
    %330 = tpu.matmul %326, %3, %cst_63 {dimension_numbers = #tpu.dot_dimension_numbers<[1], [0], [0], [1], [0, 0, 1, 1], [], []>} : vector<8x128xf32>, vector<128x384xf32>, vector<8x384xf32> -> vector<8x384xf32>
    %331 = vector.extract_strided_slice %329 {offsets = [0, 0], sizes = [8, 128], strides = [1, 1]} : vector<8x384xf32> to vector<8x128xf32>
    %332 = vector.extract_strided_slice %330 {offsets = [0, 0], sizes = [8, 128], strides = [1, 1]} : vector<8x384xf32> to vector<8x128xf32>
    %333 = arith.addf %331, %332 : vector<8x128xf32>
    %334 = arith.negf %333 : vector<8x128xf32>
    %335 = math.exp %334 : vector<8x128xf32>
    %cst_64 = arith.constant 1.000000e+00 : f32
    %336 = vector.broadcast %cst_64 : f32 to vector<8x128xf32>
    %337 = arith.addf %336, %335 : vector<8x128xf32>
    %338 = arith.divf %336, %337 : vector<8x128xf32>
    %339 = vector.extract_strided_slice %329 {offsets = [0, 128], sizes = [8, 128], strides = [1, 1]} : vector<8x384xf32> to vector<8x128xf32>
    %340 = vector.extract_strided_slice %330 {offsets = [0, 128], sizes = [8, 128], strides = [1, 1]} : vector<8x384xf32> to vector<8x128xf32>
    %341 = arith.addf %339, %340 : vector<8x128xf32>
    %342 = arith.negf %341 : vector<8x128xf32>
    %343 = math.exp %342 : vector<8x128xf32>
    %cst_65 = arith.constant 1.000000e+00 : f32
    %344 = vector.broadcast %cst_65 : f32 to vector<8x128xf32>
    %345 = arith.addf %344, %343 : vector<8x128xf32>
    %346 = arith.divf %344, %345 : vector<8x128xf32>
    %347 = vector.extract_strided_slice %329 {offsets = [0, 256], sizes = [8, 128], strides = [1, 1]} : vector<8x384xf32> to vector<8x128xf32>
    %348 = vector.extract_strided_slice %330 {offsets = [0, 256], sizes = [8, 128], strides = [1, 1]} : vector<8x384xf32> to vector<8x128xf32>
    %349 = arith.addf %348, %6 : vector<8x128xf32>
    %350 = arith.mulf %338, %349 : vector<8x128xf32>
    %351 = arith.addf %347, %350 : vector<8x128xf32>
    %352 = math.tanh %351 : vector<8x128xf32>
    %353 = arith.subf %326, %352 : vector<8x128xf32>
    %354 = arith.mulf %346, %353 : vector<8x128xf32>
    %355 = arith.addf %352, %354 : vector<8x128xf32>
    %c12_i32 = arith.constant 12 : i32
    %356 = arith.index_cast %c12_i32 : i32 to index
    %c0_66 = arith.constant 0 : index
    %c0_67 = arith.constant 0 : index
    %357 = vector.load %arg2[%356, %c0_66, %c0_67] : memref<24x8x384xf32, #tpu.memory_space<vmem>>, vector<1x8x384xf32>
    %358 = vector.shape_cast %357 : vector<1x8x384xf32> to vector<8x384xf32>
    %cst_68 = arith.constant dense<0.000000e+00> : vector<8x384xf32>
    %359 = tpu.matmul %355, %3, %cst_68 {dimension_numbers = #tpu.dot_dimension_numbers<[1], [0], [0], [1], [0, 0, 1, 1], [], []>} : vector<8x128xf32>, vector<128x384xf32>, vector<8x384xf32> -> vector<8x384xf32>
    %360 = vector.extract_strided_slice %358 {offsets = [0, 0], sizes = [8, 128], strides = [1, 1]} : vector<8x384xf32> to vector<8x128xf32>
    %361 = vector.extract_strided_slice %359 {offsets = [0, 0], sizes = [8, 128], strides = [1, 1]} : vector<8x384xf32> to vector<8x128xf32>
    %362 = arith.addf %360, %361 : vector<8x128xf32>
    %363 = arith.negf %362 : vector<8x128xf32>
    %364 = math.exp %363 : vector<8x128xf32>
    %cst_69 = arith.constant 1.000000e+00 : f32
    %365 = vector.broadcast %cst_69 : f32 to vector<8x128xf32>
    %366 = arith.addf %365, %364 : vector<8x128xf32>
    %367 = arith.divf %365, %366 : vector<8x128xf32>
    %368 = vector.extract_strided_slice %358 {offsets = [0, 128], sizes = [8, 128], strides = [1, 1]} : vector<8x384xf32> to vector<8x128xf32>
    %369 = vector.extract_strided_slice %359 {offsets = [0, 128], sizes = [8, 128], strides = [1, 1]} : vector<8x384xf32> to vector<8x128xf32>
    %370 = arith.addf %368, %369 : vector<8x128xf32>
    %371 = arith.negf %370 : vector<8x128xf32>
    %372 = math.exp %371 : vector<8x128xf32>
    %cst_70 = arith.constant 1.000000e+00 : f32
    %373 = vector.broadcast %cst_70 : f32 to vector<8x128xf32>
    %374 = arith.addf %373, %372 : vector<8x128xf32>
    %375 = arith.divf %373, %374 : vector<8x128xf32>
    %376 = vector.extract_strided_slice %358 {offsets = [0, 256], sizes = [8, 128], strides = [1, 1]} : vector<8x384xf32> to vector<8x128xf32>
    %377 = vector.extract_strided_slice %359 {offsets = [0, 256], sizes = [8, 128], strides = [1, 1]} : vector<8x384xf32> to vector<8x128xf32>
    %378 = arith.addf %377, %6 : vector<8x128xf32>
    %379 = arith.mulf %367, %378 : vector<8x128xf32>
    %380 = arith.addf %376, %379 : vector<8x128xf32>
    %381 = math.tanh %380 : vector<8x128xf32>
    %382 = arith.subf %355, %381 : vector<8x128xf32>
    %383 = arith.mulf %375, %382 : vector<8x128xf32>
    %384 = arith.addf %381, %383 : vector<8x128xf32>
    %c13_i32 = arith.constant 13 : i32
    %385 = arith.index_cast %c13_i32 : i32 to index
    %c0_71 = arith.constant 0 : index
    %c0_72 = arith.constant 0 : index
    %386 = vector.load %arg2[%385, %c0_71, %c0_72] : memref<24x8x384xf32, #tpu.memory_space<vmem>>, vector<1x8x384xf32>
    %387 = vector.shape_cast %386 : vector<1x8x384xf32> to vector<8x384xf32>
    %cst_73 = arith.constant dense<0.000000e+00> : vector<8x384xf32>
    %388 = tpu.matmul %384, %3, %cst_73 {dimension_numbers = #tpu.dot_dimension_numbers<[1], [0], [0], [1], [0, 0, 1, 1], [], []>} : vector<8x128xf32>, vector<128x384xf32>, vector<8x384xf32> -> vector<8x384xf32>
    %389 = vector.extract_strided_slice %387 {offsets = [0, 0], sizes = [8, 128], strides = [1, 1]} : vector<8x384xf32> to vector<8x128xf32>
    %390 = vector.extract_strided_slice %388 {offsets = [0, 0], sizes = [8, 128], strides = [1, 1]} : vector<8x384xf32> to vector<8x128xf32>
    %391 = arith.addf %389, %390 : vector<8x128xf32>
    %392 = arith.negf %391 : vector<8x128xf32>
    %393 = math.exp %392 : vector<8x128xf32>
    %cst_74 = arith.constant 1.000000e+00 : f32
    %394 = vector.broadcast %cst_74 : f32 to vector<8x128xf32>
    %395 = arith.addf %394, %393 : vector<8x128xf32>
    %396 = arith.divf %394, %395 : vector<8x128xf32>
    %397 = vector.extract_strided_slice %387 {offsets = [0, 128], sizes = [8, 128], strides = [1, 1]} : vector<8x384xf32> to vector<8x128xf32>
    %398 = vector.extract_strided_slice %388 {offsets = [0, 128], sizes = [8, 128], strides = [1, 1]} : vector<8x384xf32> to vector<8x128xf32>
    %399 = arith.addf %397, %398 : vector<8x128xf32>
    %400 = arith.negf %399 : vector<8x128xf32>
    %401 = math.exp %400 : vector<8x128xf32>
    %cst_75 = arith.constant 1.000000e+00 : f32
    %402 = vector.broadcast %cst_75 : f32 to vector<8x128xf32>
    %403 = arith.addf %402, %401 : vector<8x128xf32>
    %404 = arith.divf %402, %403 : vector<8x128xf32>
    %405 = vector.extract_strided_slice %387 {offsets = [0, 256], sizes = [8, 128], strides = [1, 1]} : vector<8x384xf32> to vector<8x128xf32>
    %406 = vector.extract_strided_slice %388 {offsets = [0, 256], sizes = [8, 128], strides = [1, 1]} : vector<8x384xf32> to vector<8x128xf32>
    %407 = arith.addf %406, %6 : vector<8x128xf32>
    %408 = arith.mulf %396, %407 : vector<8x128xf32>
    %409 = arith.addf %405, %408 : vector<8x128xf32>
    %410 = math.tanh %409 : vector<8x128xf32>
    %411 = arith.subf %384, %410 : vector<8x128xf32>
    %412 = arith.mulf %404, %411 : vector<8x128xf32>
    %413 = arith.addf %410, %412 : vector<8x128xf32>
    %c14_i32 = arith.constant 14 : i32
    %414 = arith.index_cast %c14_i32 : i32 to index
    %c0_76 = arith.constant 0 : index
    %c0_77 = arith.constant 0 : index
    %415 = vector.load %arg2[%414, %c0_76, %c0_77] : memref<24x8x384xf32, #tpu.memory_space<vmem>>, vector<1x8x384xf32>
    %416 = vector.shape_cast %415 : vector<1x8x384xf32> to vector<8x384xf32>
    %cst_78 = arith.constant dense<0.000000e+00> : vector<8x384xf32>
    %417 = tpu.matmul %413, %3, %cst_78 {dimension_numbers = #tpu.dot_dimension_numbers<[1], [0], [0], [1], [0, 0, 1, 1], [], []>} : vector<8x128xf32>, vector<128x384xf32>, vector<8x384xf32> -> vector<8x384xf32>
    %418 = vector.extract_strided_slice %416 {offsets = [0, 0], sizes = [8, 128], strides = [1, 1]} : vector<8x384xf32> to vector<8x128xf32>
    %419 = vector.extract_strided_slice %417 {offsets = [0, 0], sizes = [8, 128], strides = [1, 1]} : vector<8x384xf32> to vector<8x128xf32>
    %420 = arith.addf %418, %419 : vector<8x128xf32>
    %421 = arith.negf %420 : vector<8x128xf32>
    %422 = math.exp %421 : vector<8x128xf32>
    %cst_79 = arith.constant 1.000000e+00 : f32
    %423 = vector.broadcast %cst_79 : f32 to vector<8x128xf32>
    %424 = arith.addf %423, %422 : vector<8x128xf32>
    %425 = arith.divf %423, %424 : vector<8x128xf32>
    %426 = vector.extract_strided_slice %416 {offsets = [0, 128], sizes = [8, 128], strides = [1, 1]} : vector<8x384xf32> to vector<8x128xf32>
    %427 = vector.extract_strided_slice %417 {offsets = [0, 128], sizes = [8, 128], strides = [1, 1]} : vector<8x384xf32> to vector<8x128xf32>
    %428 = arith.addf %426, %427 : vector<8x128xf32>
    %429 = arith.negf %428 : vector<8x128xf32>
    %430 = math.exp %429 : vector<8x128xf32>
    %cst_80 = arith.constant 1.000000e+00 : f32
    %431 = vector.broadcast %cst_80 : f32 to vector<8x128xf32>
    %432 = arith.addf %431, %430 : vector<8x128xf32>
    %433 = arith.divf %431, %432 : vector<8x128xf32>
    %434 = vector.extract_strided_slice %416 {offsets = [0, 256], sizes = [8, 128], strides = [1, 1]} : vector<8x384xf32> to vector<8x128xf32>
    %435 = vector.extract_strided_slice %417 {offsets = [0, 256], sizes = [8, 128], strides = [1, 1]} : vector<8x384xf32> to vector<8x128xf32>
    %436 = arith.addf %435, %6 : vector<8x128xf32>
    %437 = arith.mulf %425, %436 : vector<8x128xf32>
    %438 = arith.addf %434, %437 : vector<8x128xf32>
    %439 = math.tanh %438 : vector<8x128xf32>
    %440 = arith.subf %413, %439 : vector<8x128xf32>
    %441 = arith.mulf %433, %440 : vector<8x128xf32>
    %442 = arith.addf %439, %441 : vector<8x128xf32>
    %c15_i32 = arith.constant 15 : i32
    %443 = arith.index_cast %c15_i32 : i32 to index
    %c0_81 = arith.constant 0 : index
    %c0_82 = arith.constant 0 : index
    %444 = vector.load %arg2[%443, %c0_81, %c0_82] : memref<24x8x384xf32, #tpu.memory_space<vmem>>, vector<1x8x384xf32>
    %445 = vector.shape_cast %444 : vector<1x8x384xf32> to vector<8x384xf32>
    %cst_83 = arith.constant dense<0.000000e+00> : vector<8x384xf32>
    %446 = tpu.matmul %442, %3, %cst_83 {dimension_numbers = #tpu.dot_dimension_numbers<[1], [0], [0], [1], [0, 0, 1, 1], [], []>} : vector<8x128xf32>, vector<128x384xf32>, vector<8x384xf32> -> vector<8x384xf32>
    %447 = vector.extract_strided_slice %445 {offsets = [0, 0], sizes = [8, 128], strides = [1, 1]} : vector<8x384xf32> to vector<8x128xf32>
    %448 = vector.extract_strided_slice %446 {offsets = [0, 0], sizes = [8, 128], strides = [1, 1]} : vector<8x384xf32> to vector<8x128xf32>
    %449 = arith.addf %447, %448 : vector<8x128xf32>
    %450 = arith.negf %449 : vector<8x128xf32>
    %451 = math.exp %450 : vector<8x128xf32>
    %cst_84 = arith.constant 1.000000e+00 : f32
    %452 = vector.broadcast %cst_84 : f32 to vector<8x128xf32>
    %453 = arith.addf %452, %451 : vector<8x128xf32>
    %454 = arith.divf %452, %453 : vector<8x128xf32>
    %455 = vector.extract_strided_slice %445 {offsets = [0, 128], sizes = [8, 128], strides = [1, 1]} : vector<8x384xf32> to vector<8x128xf32>
    %456 = vector.extract_strided_slice %446 {offsets = [0, 128], sizes = [8, 128], strides = [1, 1]} : vector<8x384xf32> to vector<8x128xf32>
    %457 = arith.addf %455, %456 : vector<8x128xf32>
    %458 = arith.negf %457 : vector<8x128xf32>
    %459 = math.exp %458 : vector<8x128xf32>
    %cst_85 = arith.constant 1.000000e+00 : f32
    %460 = vector.broadcast %cst_85 : f32 to vector<8x128xf32>
    %461 = arith.addf %460, %459 : vector<8x128xf32>
    %462 = arith.divf %460, %461 : vector<8x128xf32>
    %463 = vector.extract_strided_slice %445 {offsets = [0, 256], sizes = [8, 128], strides = [1, 1]} : vector<8x384xf32> to vector<8x128xf32>
    %464 = vector.extract_strided_slice %446 {offsets = [0, 256], sizes = [8, 128], strides = [1, 1]} : vector<8x384xf32> to vector<8x128xf32>
    %465 = arith.addf %464, %6 : vector<8x128xf32>
    %466 = arith.mulf %454, %465 : vector<8x128xf32>
    %467 = arith.addf %463, %466 : vector<8x128xf32>
    %468 = math.tanh %467 : vector<8x128xf32>
    %469 = arith.subf %442, %468 : vector<8x128xf32>
    %470 = arith.mulf %462, %469 : vector<8x128xf32>
    %471 = arith.addf %468, %470 : vector<8x128xf32>
    %c16_i32 = arith.constant 16 : i32
    %472 = arith.index_cast %c16_i32 : i32 to index
    %c0_86 = arith.constant 0 : index
    %c0_87 = arith.constant 0 : index
    %473 = vector.load %arg2[%472, %c0_86, %c0_87] : memref<24x8x384xf32, #tpu.memory_space<vmem>>, vector<1x8x384xf32>
    %474 = vector.shape_cast %473 : vector<1x8x384xf32> to vector<8x384xf32>
    %cst_88 = arith.constant dense<0.000000e+00> : vector<8x384xf32>
    %475 = tpu.matmul %471, %3, %cst_88 {dimension_numbers = #tpu.dot_dimension_numbers<[1], [0], [0], [1], [0, 0, 1, 1], [], []>} : vector<8x128xf32>, vector<128x384xf32>, vector<8x384xf32> -> vector<8x384xf32>
    %476 = vector.extract_strided_slice %474 {offsets = [0, 0], sizes = [8, 128], strides = [1, 1]} : vector<8x384xf32> to vector<8x128xf32>
    %477 = vector.extract_strided_slice %475 {offsets = [0, 0], sizes = [8, 128], strides = [1, 1]} : vector<8x384xf32> to vector<8x128xf32>
    %478 = arith.addf %476, %477 : vector<8x128xf32>
    %479 = arith.negf %478 : vector<8x128xf32>
    %480 = math.exp %479 : vector<8x128xf32>
    %cst_89 = arith.constant 1.000000e+00 : f32
    %481 = vector.broadcast %cst_89 : f32 to vector<8x128xf32>
    %482 = arith.addf %481, %480 : vector<8x128xf32>
    %483 = arith.divf %481, %482 : vector<8x128xf32>
    %484 = vector.extract_strided_slice %474 {offsets = [0, 128], sizes = [8, 128], strides = [1, 1]} : vector<8x384xf32> to vector<8x128xf32>
    %485 = vector.extract_strided_slice %475 {offsets = [0, 128], sizes = [8, 128], strides = [1, 1]} : vector<8x384xf32> to vector<8x128xf32>
    %486 = arith.addf %484, %485 : vector<8x128xf32>
    %487 = arith.negf %486 : vector<8x128xf32>
    %488 = math.exp %487 : vector<8x128xf32>
    %cst_90 = arith.constant 1.000000e+00 : f32
    %489 = vector.broadcast %cst_90 : f32 to vector<8x128xf32>
    %490 = arith.addf %489, %488 : vector<8x128xf32>
    %491 = arith.divf %489, %490 : vector<8x128xf32>
    %492 = vector.extract_strided_slice %474 {offsets = [0, 256], sizes = [8, 128], strides = [1, 1]} : vector<8x384xf32> to vector<8x128xf32>
    %493 = vector.extract_strided_slice %475 {offsets = [0, 256], sizes = [8, 128], strides = [1, 1]} : vector<8x384xf32> to vector<8x128xf32>
    %494 = arith.addf %493, %6 : vector<8x128xf32>
    %495 = arith.mulf %483, %494 : vector<8x128xf32>
    %496 = arith.addf %492, %495 : vector<8x128xf32>
    %497 = math.tanh %496 : vector<8x128xf32>
    %498 = arith.subf %471, %497 : vector<8x128xf32>
    %499 = arith.mulf %491, %498 : vector<8x128xf32>
    %500 = arith.addf %497, %499 : vector<8x128xf32>
    %c17_i32 = arith.constant 17 : i32
    %501 = arith.index_cast %c17_i32 : i32 to index
    %c0_91 = arith.constant 0 : index
    %c0_92 = arith.constant 0 : index
    %502 = vector.load %arg2[%501, %c0_91, %c0_92] : memref<24x8x384xf32, #tpu.memory_space<vmem>>, vector<1x8x384xf32>
    %503 = vector.shape_cast %502 : vector<1x8x384xf32> to vector<8x384xf32>
    %cst_93 = arith.constant dense<0.000000e+00> : vector<8x384xf32>
    %504 = tpu.matmul %500, %3, %cst_93 {dimension_numbers = #tpu.dot_dimension_numbers<[1], [0], [0], [1], [0, 0, 1, 1], [], []>} : vector<8x128xf32>, vector<128x384xf32>, vector<8x384xf32> -> vector<8x384xf32>
    %505 = vector.extract_strided_slice %503 {offsets = [0, 0], sizes = [8, 128], strides = [1, 1]} : vector<8x384xf32> to vector<8x128xf32>
    %506 = vector.extract_strided_slice %504 {offsets = [0, 0], sizes = [8, 128], strides = [1, 1]} : vector<8x384xf32> to vector<8x128xf32>
    %507 = arith.addf %505, %506 : vector<8x128xf32>
    %508 = arith.negf %507 : vector<8x128xf32>
    %509 = math.exp %508 : vector<8x128xf32>
    %cst_94 = arith.constant 1.000000e+00 : f32
    %510 = vector.broadcast %cst_94 : f32 to vector<8x128xf32>
    %511 = arith.addf %510, %509 : vector<8x128xf32>
    %512 = arith.divf %510, %511 : vector<8x128xf32>
    %513 = vector.extract_strided_slice %503 {offsets = [0, 128], sizes = [8, 128], strides = [1, 1]} : vector<8x384xf32> to vector<8x128xf32>
    %514 = vector.extract_strided_slice %504 {offsets = [0, 128], sizes = [8, 128], strides = [1, 1]} : vector<8x384xf32> to vector<8x128xf32>
    %515 = arith.addf %513, %514 : vector<8x128xf32>
    %516 = arith.negf %515 : vector<8x128xf32>
    %517 = math.exp %516 : vector<8x128xf32>
    %cst_95 = arith.constant 1.000000e+00 : f32
    %518 = vector.broadcast %cst_95 : f32 to vector<8x128xf32>
    %519 = arith.addf %518, %517 : vector<8x128xf32>
    %520 = arith.divf %518, %519 : vector<8x128xf32>
    %521 = vector.extract_strided_slice %503 {offsets = [0, 256], sizes = [8, 128], strides = [1, 1]} : vector<8x384xf32> to vector<8x128xf32>
    %522 = vector.extract_strided_slice %504 {offsets = [0, 256], sizes = [8, 128], strides = [1, 1]} : vector<8x384xf32> to vector<8x128xf32>
    %523 = arith.addf %522, %6 : vector<8x128xf32>
    %524 = arith.mulf %512, %523 : vector<8x128xf32>
    %525 = arith.addf %521, %524 : vector<8x128xf32>
    %526 = math.tanh %525 : vector<8x128xf32>
    %527 = arith.subf %500, %526 : vector<8x128xf32>
    %528 = arith.mulf %520, %527 : vector<8x128xf32>
    %529 = arith.addf %526, %528 : vector<8x128xf32>
    %c18_i32 = arith.constant 18 : i32
    %530 = arith.index_cast %c18_i32 : i32 to index
    %c0_96 = arith.constant 0 : index
    %c0_97 = arith.constant 0 : index
    %531 = vector.load %arg2[%530, %c0_96, %c0_97] : memref<24x8x384xf32, #tpu.memory_space<vmem>>, vector<1x8x384xf32>
    %532 = vector.shape_cast %531 : vector<1x8x384xf32> to vector<8x384xf32>
    %cst_98 = arith.constant dense<0.000000e+00> : vector<8x384xf32>
    %533 = tpu.matmul %529, %3, %cst_98 {dimension_numbers = #tpu.dot_dimension_numbers<[1], [0], [0], [1], [0, 0, 1, 1], [], []>} : vector<8x128xf32>, vector<128x384xf32>, vector<8x384xf32> -> vector<8x384xf32>
    %534 = vector.extract_strided_slice %532 {offsets = [0, 0], sizes = [8, 128], strides = [1, 1]} : vector<8x384xf32> to vector<8x128xf32>
    %535 = vector.extract_strided_slice %533 {offsets = [0, 0], sizes = [8, 128], strides = [1, 1]} : vector<8x384xf32> to vector<8x128xf32>
    %536 = arith.addf %534, %535 : vector<8x128xf32>
    %537 = arith.negf %536 : vector<8x128xf32>
    %538 = math.exp %537 : vector<8x128xf32>
    %cst_99 = arith.constant 1.000000e+00 : f32
    %539 = vector.broadcast %cst_99 : f32 to vector<8x128xf32>
    %540 = arith.addf %539, %538 : vector<8x128xf32>
    %541 = arith.divf %539, %540 : vector<8x128xf32>
    %542 = vector.extract_strided_slice %532 {offsets = [0, 128], sizes = [8, 128], strides = [1, 1]} : vector<8x384xf32> to vector<8x128xf32>
    %543 = vector.extract_strided_slice %533 {offsets = [0, 128], sizes = [8, 128], strides = [1, 1]} : vector<8x384xf32> to vector<8x128xf32>
    %544 = arith.addf %542, %543 : vector<8x128xf32>
    %545 = arith.negf %544 : vector<8x128xf32>
    %546 = math.exp %545 : vector<8x128xf32>
    %cst_100 = arith.constant 1.000000e+00 : f32
    %547 = vector.broadcast %cst_100 : f32 to vector<8x128xf32>
    %548 = arith.addf %547, %546 : vector<8x128xf32>
    %549 = arith.divf %547, %548 : vector<8x128xf32>
    %550 = vector.extract_strided_slice %532 {offsets = [0, 256], sizes = [8, 128], strides = [1, 1]} : vector<8x384xf32> to vector<8x128xf32>
    %551 = vector.extract_strided_slice %533 {offsets = [0, 256], sizes = [8, 128], strides = [1, 1]} : vector<8x384xf32> to vector<8x128xf32>
    %552 = arith.addf %551, %6 : vector<8x128xf32>
    %553 = arith.mulf %541, %552 : vector<8x128xf32>
    %554 = arith.addf %550, %553 : vector<8x128xf32>
    %555 = math.tanh %554 : vector<8x128xf32>
    %556 = arith.subf %529, %555 : vector<8x128xf32>
    %557 = arith.mulf %549, %556 : vector<8x128xf32>
    %558 = arith.addf %555, %557 : vector<8x128xf32>
    %c19_i32 = arith.constant 19 : i32
    %559 = arith.index_cast %c19_i32 : i32 to index
    %c0_101 = arith.constant 0 : index
    %c0_102 = arith.constant 0 : index
    %560 = vector.load %arg2[%559, %c0_101, %c0_102] : memref<24x8x384xf32, #tpu.memory_space<vmem>>, vector<1x8x384xf32>
    %561 = vector.shape_cast %560 : vector<1x8x384xf32> to vector<8x384xf32>
    %cst_103 = arith.constant dense<0.000000e+00> : vector<8x384xf32>
    %562 = tpu.matmul %558, %3, %cst_103 {dimension_numbers = #tpu.dot_dimension_numbers<[1], [0], [0], [1], [0, 0, 1, 1], [], []>} : vector<8x128xf32>, vector<128x384xf32>, vector<8x384xf32> -> vector<8x384xf32>
    %563 = vector.extract_strided_slice %561 {offsets = [0, 0], sizes = [8, 128], strides = [1, 1]} : vector<8x384xf32> to vector<8x128xf32>
    %564 = vector.extract_strided_slice %562 {offsets = [0, 0], sizes = [8, 128], strides = [1, 1]} : vector<8x384xf32> to vector<8x128xf32>
    %565 = arith.addf %563, %564 : vector<8x128xf32>
    %566 = arith.negf %565 : vector<8x128xf32>
    %567 = math.exp %566 : vector<8x128xf32>
    %cst_104 = arith.constant 1.000000e+00 : f32
    %568 = vector.broadcast %cst_104 : f32 to vector<8x128xf32>
    %569 = arith.addf %568, %567 : vector<8x128xf32>
    %570 = arith.divf %568, %569 : vector<8x128xf32>
    %571 = vector.extract_strided_slice %561 {offsets = [0, 128], sizes = [8, 128], strides = [1, 1]} : vector<8x384xf32> to vector<8x128xf32>
    %572 = vector.extract_strided_slice %562 {offsets = [0, 128], sizes = [8, 128], strides = [1, 1]} : vector<8x384xf32> to vector<8x128xf32>
    %573 = arith.addf %571, %572 : vector<8x128xf32>
    %574 = arith.negf %573 : vector<8x128xf32>
    %575 = math.exp %574 : vector<8x128xf32>
    %cst_105 = arith.constant 1.000000e+00 : f32
    %576 = vector.broadcast %cst_105 : f32 to vector<8x128xf32>
    %577 = arith.addf %576, %575 : vector<8x128xf32>
    %578 = arith.divf %576, %577 : vector<8x128xf32>
    %579 = vector.extract_strided_slice %561 {offsets = [0, 256], sizes = [8, 128], strides = [1, 1]} : vector<8x384xf32> to vector<8x128xf32>
    %580 = vector.extract_strided_slice %562 {offsets = [0, 256], sizes = [8, 128], strides = [1, 1]} : vector<8x384xf32> to vector<8x128xf32>
    %581 = arith.addf %580, %6 : vector<8x128xf32>
    %582 = arith.mulf %570, %581 : vector<8x128xf32>
    %583 = arith.addf %579, %582 : vector<8x128xf32>
    %584 = math.tanh %583 : vector<8x128xf32>
    %585 = arith.subf %558, %584 : vector<8x128xf32>
    %586 = arith.mulf %578, %585 : vector<8x128xf32>
    %587 = arith.addf %584, %586 : vector<8x128xf32>
    %c20_i32 = arith.constant 20 : i32
    %588 = arith.index_cast %c20_i32 : i32 to index
    %c0_106 = arith.constant 0 : index
    %c0_107 = arith.constant 0 : index
    %589 = vector.load %arg2[%588, %c0_106, %c0_107] : memref<24x8x384xf32, #tpu.memory_space<vmem>>, vector<1x8x384xf32>
    %590 = vector.shape_cast %589 : vector<1x8x384xf32> to vector<8x384xf32>
    %cst_108 = arith.constant dense<0.000000e+00> : vector<8x384xf32>
    %591 = tpu.matmul %587, %3, %cst_108 {dimension_numbers = #tpu.dot_dimension_numbers<[1], [0], [0], [1], [0, 0, 1, 1], [], []>} : vector<8x128xf32>, vector<128x384xf32>, vector<8x384xf32> -> vector<8x384xf32>
    %592 = vector.extract_strided_slice %590 {offsets = [0, 0], sizes = [8, 128], strides = [1, 1]} : vector<8x384xf32> to vector<8x128xf32>
    %593 = vector.extract_strided_slice %591 {offsets = [0, 0], sizes = [8, 128], strides = [1, 1]} : vector<8x384xf32> to vector<8x128xf32>
    %594 = arith.addf %592, %593 : vector<8x128xf32>
    %595 = arith.negf %594 : vector<8x128xf32>
    %596 = math.exp %595 : vector<8x128xf32>
    %cst_109 = arith.constant 1.000000e+00 : f32
    %597 = vector.broadcast %cst_109 : f32 to vector<8x128xf32>
    %598 = arith.addf %597, %596 : vector<8x128xf32>
    %599 = arith.divf %597, %598 : vector<8x128xf32>
    %600 = vector.extract_strided_slice %590 {offsets = [0, 128], sizes = [8, 128], strides = [1, 1]} : vector<8x384xf32> to vector<8x128xf32>
    %601 = vector.extract_strided_slice %591 {offsets = [0, 128], sizes = [8, 128], strides = [1, 1]} : vector<8x384xf32> to vector<8x128xf32>
    %602 = arith.addf %600, %601 : vector<8x128xf32>
    %603 = arith.negf %602 : vector<8x128xf32>
    %604 = math.exp %603 : vector<8x128xf32>
    %cst_110 = arith.constant 1.000000e+00 : f32
    %605 = vector.broadcast %cst_110 : f32 to vector<8x128xf32>
    %606 = arith.addf %605, %604 : vector<8x128xf32>
    %607 = arith.divf %605, %606 : vector<8x128xf32>
    %608 = vector.extract_strided_slice %590 {offsets = [0, 256], sizes = [8, 128], strides = [1, 1]} : vector<8x384xf32> to vector<8x128xf32>
    %609 = vector.extract_strided_slice %591 {offsets = [0, 256], sizes = [8, 128], strides = [1, 1]} : vector<8x384xf32> to vector<8x128xf32>
    %610 = arith.addf %609, %6 : vector<8x128xf32>
    %611 = arith.mulf %599, %610 : vector<8x128xf32>
    %612 = arith.addf %608, %611 : vector<8x128xf32>
    %613 = math.tanh %612 : vector<8x128xf32>
    %614 = arith.subf %587, %613 : vector<8x128xf32>
    %615 = arith.mulf %607, %614 : vector<8x128xf32>
    %616 = arith.addf %613, %615 : vector<8x128xf32>
    %c21_i32 = arith.constant 21 : i32
    %617 = arith.index_cast %c21_i32 : i32 to index
    %c0_111 = arith.constant 0 : index
    %c0_112 = arith.constant 0 : index
    %618 = vector.load %arg2[%617, %c0_111, %c0_112] : memref<24x8x384xf32, #tpu.memory_space<vmem>>, vector<1x8x384xf32>
    %619 = vector.shape_cast %618 : vector<1x8x384xf32> to vector<8x384xf32>
    %cst_113 = arith.constant dense<0.000000e+00> : vector<8x384xf32>
    %620 = tpu.matmul %616, %3, %cst_113 {dimension_numbers = #tpu.dot_dimension_numbers<[1], [0], [0], [1], [0, 0, 1, 1], [], []>} : vector<8x128xf32>, vector<128x384xf32>, vector<8x384xf32> -> vector<8x384xf32>
    %621 = vector.extract_strided_slice %619 {offsets = [0, 0], sizes = [8, 128], strides = [1, 1]} : vector<8x384xf32> to vector<8x128xf32>
    %622 = vector.extract_strided_slice %620 {offsets = [0, 0], sizes = [8, 128], strides = [1, 1]} : vector<8x384xf32> to vector<8x128xf32>
    %623 = arith.addf %621, %622 : vector<8x128xf32>
    %624 = arith.negf %623 : vector<8x128xf32>
    %625 = math.exp %624 : vector<8x128xf32>
    %cst_114 = arith.constant 1.000000e+00 : f32
    %626 = vector.broadcast %cst_114 : f32 to vector<8x128xf32>
    %627 = arith.addf %626, %625 : vector<8x128xf32>
    %628 = arith.divf %626, %627 : vector<8x128xf32>
    %629 = vector.extract_strided_slice %619 {offsets = [0, 128], sizes = [8, 128], strides = [1, 1]} : vector<8x384xf32> to vector<8x128xf32>
    %630 = vector.extract_strided_slice %620 {offsets = [0, 128], sizes = [8, 128], strides = [1, 1]} : vector<8x384xf32> to vector<8x128xf32>
    %631 = arith.addf %629, %630 : vector<8x128xf32>
    %632 = arith.negf %631 : vector<8x128xf32>
    %633 = math.exp %632 : vector<8x128xf32>
    %cst_115 = arith.constant 1.000000e+00 : f32
    %634 = vector.broadcast %cst_115 : f32 to vector<8x128xf32>
    %635 = arith.addf %634, %633 : vector<8x128xf32>
    %636 = arith.divf %634, %635 : vector<8x128xf32>
    %637 = vector.extract_strided_slice %619 {offsets = [0, 256], sizes = [8, 128], strides = [1, 1]} : vector<8x384xf32> to vector<8x128xf32>
    %638 = vector.extract_strided_slice %620 {offsets = [0, 256], sizes = [8, 128], strides = [1, 1]} : vector<8x384xf32> to vector<8x128xf32>
    %639 = arith.addf %638, %6 : vector<8x128xf32>
    %640 = arith.mulf %628, %639 : vector<8x128xf32>
    %641 = arith.addf %637, %640 : vector<8x128xf32>
    %642 = math.tanh %641 : vector<8x128xf32>
    %643 = arith.subf %616, %642 : vector<8x128xf32>
    %644 = arith.mulf %636, %643 : vector<8x128xf32>
    %645 = arith.addf %642, %644 : vector<8x128xf32>
    %c22_i32 = arith.constant 22 : i32
    %646 = arith.index_cast %c22_i32 : i32 to index
    %c0_116 = arith.constant 0 : index
    %c0_117 = arith.constant 0 : index
    %647 = vector.load %arg2[%646, %c0_116, %c0_117] : memref<24x8x384xf32, #tpu.memory_space<vmem>>, vector<1x8x384xf32>
    %648 = vector.shape_cast %647 : vector<1x8x384xf32> to vector<8x384xf32>
    %cst_118 = arith.constant dense<0.000000e+00> : vector<8x384xf32>
    %649 = tpu.matmul %645, %3, %cst_118 {dimension_numbers = #tpu.dot_dimension_numbers<[1], [0], [0], [1], [0, 0, 1, 1], [], []>} : vector<8x128xf32>, vector<128x384xf32>, vector<8x384xf32> -> vector<8x384xf32>
    %650 = vector.extract_strided_slice %648 {offsets = [0, 0], sizes = [8, 128], strides = [1, 1]} : vector<8x384xf32> to vector<8x128xf32>
    %651 = vector.extract_strided_slice %649 {offsets = [0, 0], sizes = [8, 128], strides = [1, 1]} : vector<8x384xf32> to vector<8x128xf32>
    %652 = arith.addf %650, %651 : vector<8x128xf32>
    %653 = arith.negf %652 : vector<8x128xf32>
    %654 = math.exp %653 : vector<8x128xf32>
    %cst_119 = arith.constant 1.000000e+00 : f32
    %655 = vector.broadcast %cst_119 : f32 to vector<8x128xf32>
    %656 = arith.addf %655, %654 : vector<8x128xf32>
    %657 = arith.divf %655, %656 : vector<8x128xf32>
    %658 = vector.extract_strided_slice %648 {offsets = [0, 128], sizes = [8, 128], strides = [1, 1]} : vector<8x384xf32> to vector<8x128xf32>
    %659 = vector.extract_strided_slice %649 {offsets = [0, 128], sizes = [8, 128], strides = [1, 1]} : vector<8x384xf32> to vector<8x128xf32>
    %660 = arith.addf %658, %659 : vector<8x128xf32>
    %661 = arith.negf %660 : vector<8x128xf32>
    %662 = math.exp %661 : vector<8x128xf32>
    %cst_120 = arith.constant 1.000000e+00 : f32
    %663 = vector.broadcast %cst_120 : f32 to vector<8x128xf32>
    %664 = arith.addf %663, %662 : vector<8x128xf32>
    %665 = arith.divf %663, %664 : vector<8x128xf32>
    %666 = vector.extract_strided_slice %648 {offsets = [0, 256], sizes = [8, 128], strides = [1, 1]} : vector<8x384xf32> to vector<8x128xf32>
    %667 = vector.extract_strided_slice %649 {offsets = [0, 256], sizes = [8, 128], strides = [1, 1]} : vector<8x384xf32> to vector<8x128xf32>
    %668 = arith.addf %667, %6 : vector<8x128xf32>
    %669 = arith.mulf %657, %668 : vector<8x128xf32>
    %670 = arith.addf %666, %669 : vector<8x128xf32>
    %671 = math.tanh %670 : vector<8x128xf32>
    %672 = arith.subf %645, %671 : vector<8x128xf32>
    %673 = arith.mulf %665, %672 : vector<8x128xf32>
    %674 = arith.addf %671, %673 : vector<8x128xf32>
    %c23_i32 = arith.constant 23 : i32
    %675 = arith.index_cast %c23_i32 : i32 to index
    %c0_121 = arith.constant 0 : index
    %c0_122 = arith.constant 0 : index
    %676 = vector.load %arg2[%675, %c0_121, %c0_122] : memref<24x8x384xf32, #tpu.memory_space<vmem>>, vector<1x8x384xf32>
    %677 = vector.shape_cast %676 : vector<1x8x384xf32> to vector<8x384xf32>
    %cst_123 = arith.constant dense<0.000000e+00> : vector<8x384xf32>
    %678 = tpu.matmul %674, %3, %cst_123 {dimension_numbers = #tpu.dot_dimension_numbers<[1], [0], [0], [1], [0, 0, 1, 1], [], []>} : vector<8x128xf32>, vector<128x384xf32>, vector<8x384xf32> -> vector<8x384xf32>
    %679 = vector.extract_strided_slice %677 {offsets = [0, 0], sizes = [8, 128], strides = [1, 1]} : vector<8x384xf32> to vector<8x128xf32>
    %680 = vector.extract_strided_slice %678 {offsets = [0, 0], sizes = [8, 128], strides = [1, 1]} : vector<8x384xf32> to vector<8x128xf32>
    %681 = arith.addf %679, %680 : vector<8x128xf32>
    %682 = arith.negf %681 : vector<8x128xf32>
    %683 = math.exp %682 : vector<8x128xf32>
    %cst_124 = arith.constant 1.000000e+00 : f32
    %684 = vector.broadcast %cst_124 : f32 to vector<8x128xf32>
    %685 = arith.addf %684, %683 : vector<8x128xf32>
    %686 = arith.divf %684, %685 : vector<8x128xf32>
    %687 = vector.extract_strided_slice %677 {offsets = [0, 128], sizes = [8, 128], strides = [1, 1]} : vector<8x384xf32> to vector<8x128xf32>
    %688 = vector.extract_strided_slice %678 {offsets = [0, 128], sizes = [8, 128], strides = [1, 1]} : vector<8x384xf32> to vector<8x128xf32>
    %689 = arith.addf %687, %688 : vector<8x128xf32>
    %690 = arith.negf %689 : vector<8x128xf32>
    %691 = math.exp %690 : vector<8x128xf32>
    %cst_125 = arith.constant 1.000000e+00 : f32
    %692 = vector.broadcast %cst_125 : f32 to vector<8x128xf32>
    %693 = arith.addf %692, %691 : vector<8x128xf32>
    %694 = arith.divf %692, %693 : vector<8x128xf32>
    %695 = vector.extract_strided_slice %677 {offsets = [0, 256], sizes = [8, 128], strides = [1, 1]} : vector<8x384xf32> to vector<8x128xf32>
    %696 = vector.extract_strided_slice %678 {offsets = [0, 256], sizes = [8, 128], strides = [1, 1]} : vector<8x384xf32> to vector<8x128xf32>
    %697 = arith.addf %696, %6 : vector<8x128xf32>
    %698 = arith.mulf %686, %697 : vector<8x128xf32>
    %699 = arith.addf %695, %698 : vector<8x128xf32>
    %700 = math.tanh %699 : vector<8x128xf32>
    %701 = arith.subf %674, %700 : vector<8x128xf32>
    %702 = arith.mulf %694, %701 : vector<8x128xf32>
    %703 = arith.addf %700, %702 : vector<8x128xf32>
    %c24_i32 = arith.constant 24 : i32
    %c0_126 = arith.constant 0 : index
    %c0_127 = arith.constant 0 : index
    %704 = vector.load %arg5[%c0_126, %c0_127] : memref<8x128xf32, #tpu.memory_space<vmem>>, vector<8x128xf32>
    tpu.vector_store %arg5[%c0_126, %c0_127], %703 {strides = array<i32>} : memref<8x128xf32, #tpu.memory_space<vmem>>, vector<8x128xf32>,
    return
  }
  func.func @transform_0(%arg0: i32, %arg1: i32) -> (i32, i32, i32) {
    %c0_i32 = arith.constant 0 : i32
    %c0_i32_0 = arith.constant 0 : i32
    return %arg1, %arg0, %c0_i32 : i32, i32, i32
  }
  func.func @transform_1(%arg0: i32, %arg1: i32) -> (i32, i32) {
    %c0_i32 = arith.constant 0 : i32
    %c0_i32_0 = arith.constant 0 : i32
    %c0_i32_1 = arith.constant 0 : i32
    return %c0_i32, %c0_i32_0 : i32, i32
  }
  func.func @transform_2(%arg0: i32, %arg1: i32) -> (i32, i32) {
    %c0_i32 = arith.constant 0 : i32
    %c0_i32_0 = arith.constant 0 : i32
    %c0_i32_1 = arith.constant 0 : i32
    return %c0_i32, %c0_i32_0 : i32, i32
  }
  func.func @transform_3(%arg0: i32, %arg1: i32) -> (i32, i32) {
    %c0_i32 = arith.constant 0 : i32
    %c0_i32_0 = arith.constant 0 : i32
    return %arg0, %c0_i32 : i32, i32
  }
}

</mosaic_0001>

<llo_original>
// kernel: tpu_custom_call.1
$region0: #{tpu_custom_call.1}
  #allocation0 [shape = 'u32[]', space=smem, size = 0x4, offset = 0x4, fixed_abs, tag = 'smem constant byte address 0x4 - core index']
  #allocation1 [shape = 'u32[144,128]{1,0:T(1,128)}', space=vmem, size = 0x12000, scoped, tag = 'internal scratch']
  %s0 = inlined_call_operand.hbm [shape: f32[24,8,384], index: 0, kind: input, shape index: {}]
  %s1 = inlined_call_operand.hbm [shape: f32[128,384], index: 1, kind: input, shape index: {}]
  %s2 = inlined_call_operand.vmem [shape: f32[1,128], index: 2, kind: input, shape index: {}]
  %s3 = inlined_call_operand.hbm [shape: f32[8,128], index: 3, kind: output, shape index: {}]
  %s4 = sld [smem:[#allocation0]]
  $region34: #{tpu_custom_call.1} parent=0
    _
  %s6 = ssub.s32 1, %s4
  %s7 = scalar_select 0, %s6, %s4
  $region1: #{tpu_custom_call.1} parent=0
    #allocation2 [shape = 'u8[294912]{0}', space=vmem, size = 0x48000, scoped, tag = 'input window, operand 0, single buffered']
    #allocation3 [shape = 's32[1]{0}', space=sflag, size = 0x4, scoped, tag = 'scoped memory for tpu_custom_call.1']
    #allocation4 [shape = 's32[1]{0}', space=sflag, size = 0x4, scoped, tag = 'scoped memory for tpu_custom_call.1']
    #allocation5 [shape = 'u8[196608]{0}', space=vmem, size = 0x30000, scoped, tag = 'input window, operand 1, single buffered']
    #allocation6 [shape = 's32[1]{0}', space=sflag, size = 0x4, scoped, tag = 'scoped memory for tpu_custom_call.1']
    #allocation7 [shape = 'u8[4096]{0}', space=vmem, size = 0x1000, scoped, tag = 'output window, operand 0, single buffered']
    %8 = vsyncpa [#allocation3], 0
    %9 = vsyncpa [#allocation6], 0
    %10 = vsyncpa [#allocation4], 0
    // Predicated region
    $region2: #{tpu_custom_call.1} parent=1 // pred_check
      _
    $region3: #{tpu_custom_call.1} parent=1 // pred_check_branch
      %12 = sbr.rel (0) target = $region5
    $region4: #{tpu_custom_call.1} parent=1 // pred_region
      %s14 = ssub.s32 9216, 9216
      %15 = vsyncadd [#allocation3], %s14
      %s16 = sshll.u32 [#allocation2], 4
      %s17 = int_to_ptr.vmem [resolvable:$true] %s16
      %22 = dma.hbm_to_vmem [thread:$0]  %s0, 9216, %s17, [#allocation3], 384, 384, 24
    $region5: #{tpu_custom_call.1} parent=1 // pred_fallthru
      _
    // Predicated region
    $region6: #{tpu_custom_call.1} parent=1 // pred_check
      _
    $region7: #{tpu_custom_call.1} parent=1 // pred_check_branch
      %24 = sbr.rel (0) target = $region9
    $region8: #{tpu_custom_call.1} parent=1 // pred_region
      %s26 = ssub.s32 6144, 6144
      %27 = vsyncadd [#allocation6], %s26
      %s28 = sshll.u32 [#allocation5], 4
      %s29 = int_to_ptr.vmem [resolvable:$true] %s28
      %34 = dma.hbm_to_vmem [thread:$0]  %s1, 6144, %s29, [#allocation6], 384, 384, 24
    $region9: #{tpu_custom_call.1} parent=1 // pred_fallthru
      _
    // Predicated region
    $region10: #{tpu_custom_call.1} parent=1 // pred_check
      _
    $region11: #{tpu_custom_call.1} parent=1 // pred_check_branch
      %36 = sbr.rel (0) target = $region13
    $region12: #{tpu_custom_call.1} parent=1 // pred_region
      _
    $region13: #{tpu_custom_call.1} parent=1 // pred_fallthru
      _
    // Predicated region
    $region14: #{tpu_custom_call.1} parent=1 // pred_check
      _
    $region15: #{tpu_custom_call.1} parent=1 // pred_check_branch
      %38 = sbr.rel (0) target = $region17
    $region16: #{tpu_custom_call.1} parent=1 // pred_region
      %39 = dma.done [#allocation3], 9216
    $region17: #{tpu_custom_call.1} parent=1 // pred_fallthru
      _
    // Predicated region
    $region18: #{tpu_custom_call.1} parent=1 // pred_check
      _
    $region19: #{tpu_custom_call.1} parent=1 // pred_check_branch
      %41 = sbr.rel (0) target = $region21
    $region20: #{tpu_custom_call.1} parent=1 // pred_region
      %42 = dma.done [#allocation6], 6144
    $region21: #{tpu_custom_call.1} parent=1 // pred_fallthru
      _
    %p43 = scmp.eq.s32.totalorder 0, 0
    // Predicated region
    $region22: #{tpu_custom_call.1} parent=1 // pred_check
      %p44 = pneg %p43
    $region23: #{tpu_custom_call.1} parent=1 // pred_check_branch
      %46 = sbr.rel (%p44) target = $region25
    $region24: #{tpu_custom_call.1} parent=1 // pred_region
      %47 = vst [vmem:[#allocation7] sm:$0xff] 0.0
    $region25: #{tpu_custom_call.1} parent=1 // pred_fallthru
      _
    %v48 = vld [vmem:[#allocation5] sm:$0xff]
    %v49 = vld [vmem:[#allocation5 + $0x8] sm:$0xff]
    %v50 = vld [vmem:[#allocation5 + $0x10] sm:$0xff]
    %v51 = vld [vmem:[#allocation5 + $0x18] sm:$0xff]
    %v52 = vld [vmem:[#allocation5 + $0x20] sm:$0xff]
    %v53 = vld [vmem:[#allocation5 + $0x28] sm:$0xff]
    %v54 = vld [vmem:[#allocation5 + $0x30] sm:$0xff]
    %v55 = vld [vmem:[#allocation5 + $0x38] sm:$0xff]
    %v56 = vld [vmem:[#allocation5 + $0x40] sm:$0xff]
    %v57 = vld [vmem:[#allocation5 + $0x48] sm:$0xff]
    %v58 = vld [vmem:[#allocation5 + $0x50] sm:$0xff]
    %v59 = vld [vmem:[#allocation5 + $0x58] sm:$0xff]
    %v60 = vld [vmem:[#allocation5 + $0x60] sm:$0xff]
    %v61 = vld [vmem:[#allocation5 + $0x68] sm:$0xff]
    %v62 = vld [vmem:[#allocation5 + $0x70] sm:$0xff]
    %v63 = vld [vmem:[#allocation5 + $0x78] sm:$0xff]
    %v64 = vld [vmem:[#allocation5 + $0x80] sm:$0xff]
    %v65 = vld [vmem:[#allocation5 + $0x88] sm:$0xff]
    %v66 = vld [vmem:[#allocation5 + $0x90] sm:$0xff]
    %v67 = vld [vmem:[#allocation5 + $0x98] sm:$0xff]
    %v68 = vld [vmem:[#allocation5 + $0xa0] sm:$0xff]
    %v69 = vld [vmem:[#allocation5 + $0xa8] sm:$0xff]
    %v70 = vld [vmem:[#allocation5 + $0xb0] sm:$0xff]
    %v71 = vld [vmem:[#allocation5 + $0xb8] sm:$0xff]
    %v72 = vld [vmem:[#allocation5 + $0xc0] sm:$0xff]
    %v73 = vld [vmem:[#allocation5 + $0xc8] sm:$0xff]
    %v74 = vld [vmem:[#allocation5 + $0xd0] sm:$0xff]
    %v75 = vld [vmem:[#allocation5 + $0xd8] sm:$0xff]
    %v76 = vld [vmem:[#allocation5 + $0xe0] sm:$0xff]
    %v77 = vld [vmem:[#allocation5 + $0xe8] sm:$0xff]
    %v78 = vld [vmem:[#allocation5 + $0xf0] sm:$0xff]
    %v79 = vld [vmem:[#allocation5 + $0xf8] sm:$0xff]
    %v80 = vld [vmem:[#allocation5 + $0x100] sm:$0xff]
    %v81 = vld [vmem:[#allocation5 + $0x108] sm:$0xff]
    %v82 = vld [vmem:[#allocation5 + $0x110] sm:$0xff]
    %v83 = vld [vmem:[#allocation5 + $0x118] sm:$0xff]
    %v84 = vld [vmem:[#allocation5 + $0x120] sm:$0xff]
    %v85 = vld [vmem:[#allocation5 + $0x128] sm:$0xff]
    %v86 = vld [vmem:[#allocation5 + $0x130] sm:$0xff]
    %v87 = vld [vmem:[#allocation5 + $0x138] sm:$0xff]
    %v88 = vld [vmem:[#allocation5 + $0x140] sm:$0xff]
    %v89 = vld [vmem:[#allocation5 + $0x148] sm:$0xff]
    %v90 = vld [vmem:[#allocation5 + $0x150] sm:$0xff]
    %v91 = vld [vmem:[#allocation5 + $0x158] sm:$0xff]
    %v92 = vld [vmem:[#allocation5 + $0x160] sm:$0xff]
    %v93 = vld [vmem:[#allocation5 + $0x168] sm:$0xff]
    %v94 = vld [vmem:[#allocation5 + $0x170] sm:$0xff]
    %v95 = vld [vmem:[#allocation5 + $0x178] sm:$0xff]
    %v96 = vld [vmem:[%s2] sm:$0x1]
    %v98 = vlaneseq
    %v99 = vshrl.u32 %v98, 7
    %v100 = vsub.s32 0, %v99
    %v101 = vrot.slane %v96, %v100
    %v103 = vld [vmem:[#allocation7] sm:$0xff]
    %v104 = vld [vmem:[#allocation2] sm:$0xff]
    %v105 = vld [vmem:[#allocation2 + $0x8] sm:$0xff]
    %v106 = vld [vmem:[#allocation2 + $0x10] sm:$0xff]
    %107 = vmatprep.subr.mxu0 %v49
    %108 = vmatpush1.msra.mxu0 %v48
    %109 = vmatprep.subr.mxu0 %v52
    %110 = vmatpush1.msra.mxu0 %v51
    %111 = vmatprep.subr.mxu0 %v55
    %112 = vmatpush1.msra.mxu0 %v54
    %113 = vmatprep.subr.mxu0 %v58
    %114 = vmatpush1.msra.mxu0 %v57
    %115 = vmatprep.subr.mxu0 %v61
    %116 = vmatpush1.msra.mxu0 %v60
    %117 = vmatprep.subr.mxu0 %v64
    %118 = vmatpush1.msra.mxu0 %v63
    %119 = vmatprep.subr.mxu0 %v67
    %120 = vmatpush1.msra.mxu0 %v66
    %121 = vmatprep.subr.mxu0 %v70
    %122 = vmatpush1.msra.mxu0 %v69
    %123 = vmatprep.subr.mxu0 %v73
    %124 = vmatpush1.msra.mxu0 %v72
    %125 = vmatprep.subr.mxu0 %v76
    %126 = vmatpush1.msra.mxu0 %v75
    %127 = vmatprep.subr.mxu0 %v79
    %128 = vmatpush1.msra.mxu0 %v78
    %129 = vmatprep.subr.mxu0 %v82
    %130 = vmatpush1.msra.mxu0 %v81
    %131 = vmatprep.subr.mxu0 %v85
    %132 = vmatpush1.msra.mxu0 %v84
    %133 = vmatprep.subr.mxu0 %v88
    %134 = vmatpush1.msra.mxu0 %v87
    %135 = vmatprep.subr.mxu0 %v91
    %136 = vmatpush1.msra.mxu0 %v90
    %137 = vmatprep.subr.mxu0 %v94
    %138 = vmatpush1.msra.mxu0 %v93
    %139 = vmatprep.subr.mxu0 0.0
    %140 = vmatpush1.msra.mxu0 0.0
    %141 = vmatprep.subr.mxu0 0.0
    %142 = vmatpush1.msra.mxu0 0.0
    %143 = vmatprep.subr.mxu0 0.0
    %144 = vmatpush1.msra.mxu0 0.0
    %145 = vmatprep.subr.mxu0 0.0
    %146 = vmatpush1.msra.mxu0 0.0
    %147 = vmatprep.subr.mxu0 0.0
    %148 = vmatpush1.msra.mxu0 0.0
    %149 = vmatprep.subr.mxu0 0.0
    %150 = vmatpush1.msra.mxu0 0.0
    %151 = vmatprep.subr.mxu0 0.0
    %152 = vmatpush1.msra.mxu0 0.0
    %153 = vmatprep.subr.mxu0 0.0
    %154 = vmatpush1.msra.mxu0 0.0
    %155 = vmatprep.subr.mxu0 0.0
    %156 = vmatpush1.msra.mxu0 0.0
    %157 = vmatprep.subr.mxu0 0.0
    %158 = vmatpush1.msra.mxu0 0.0
    %159 = vmatprep.subr.mxu0 0.0
    %160 = vmatpush1.msra.mxu0 0.0
    %161 = vmatprep.subr.mxu0 0.0
    %162 = vmatpush1.msra.mxu0 0.0
    %163 = vmatprep.subr.mxu0 0.0
    %164 = vmatpush1.msra.mxu0 0.0
    %165 = vmatprep.subr.mxu0 0.0
    %166 = vmatpush1.msra.mxu0 0.0
    %167 = vmatprep.subr.mxu0 0.0
    %168 = vmatpush1.msra.mxu0 0.0
    %169 = vmatprep.subr.mxu0 0.0
    %170 = vmatpush1.msra.mxu0 0.0
    %171 = vmatprep.mubr.f32.mxu0 0.0
    %172 = vmatmul.mubr.f32.gmra.mrb[0].mxu0 %v103
    %v173 = vpop.f32.mrb[0].mxu0
    %v174 = vadd.f32 0.0, %v173
    %v175 = vpop.f32.mrb[0].mxu0
    %v176 = vadd.f32 0.0, %v175
    %177 = vdwg.mxu0
    %178 = vmatprep.subr.mxu0 0.0
    %179 = vmatpush1.msra.mxu0 %v50
    %180 = vmatprep.subr.mxu0 0.0
    %181 = vmatpush1.msra.mxu0 %v53
    %182 = vmatprep.subr.mxu0 0.0
    %183 = vmatpush1.msra.mxu0 %v56
    %184 = vmatprep.subr.mxu0 0.0
    %185 = vmatpush1.msra.mxu0 %v59
    %186 = vmatprep.subr.mxu0 0.0
    %187 = vmatpush1.msra.mxu0 %v62
    %188 = vmatprep.subr.mxu0 0.0
    %189 = vmatpush1.msra.mxu0 %v65
    %190 = vmatprep.subr.mxu0 0.0
    %191 = vmatpush1.msra.mxu0 %v68
    %192 = vmatprep.subr.mxu0 0.0
    %193 = vmatpush1.msra.mxu0 %v71
    %194 = vmatprep.subr.mxu0 0.0
    %195 = vmatpush1.msra.mxu0 %v74
    %196 = vmatprep.subr.mxu0 0.0
    %197 = vmatpush1.msra.mxu0 %v77
    %198 = vmatprep.subr.mxu0 0.0
    %199 = vmatpush1.msra.mxu0 %v80
    %200 = vmatprep.subr.mxu0 0.0
    %201 = vmatpush1.msra.mxu0 %v83
    %202 = vmatprep.subr.mxu0 0.0
    %203 = vmatpush1.msra.mxu0 %v86
    %204 = vmatprep.subr.mxu0 0.0
    %205 = vmatpush1.msra.mxu0 %v89
    %206 = vmatprep.subr.mxu0 0.0
    %207 = vmatpush1.msra.mxu0 %v92
    %208 = vmatprep.subr.mxu0 0.0
    %209 = vmatpush1.msra.mxu0 %v95
    %210 = vmatprep.subr.mxu0 0.0
    %211 = vmatpush1.msra.mxu0 0.0
    %212 = vmatprep.subr.mxu0 0.0
    %213 = vmatpush1.msra.mxu0 0.0
    %214 = vmatprep.subr.mxu0 0.0
    %215 = vmatpush1.msra.mxu0 0.0
    %216 = vmatprep.subr.mxu0 0.0
    %217 = vmatpush1.msra.mxu0 0.0
    %218 = vmatprep.subr.mxu0 0.0
    %219 = vmatpush1.msra.mxu0 0.0
    %220 = vmatprep.subr.mxu0 0.0
    %221 = vmatpush1.msra.mxu0 0.0
    %222 = vmatprep.subr.mxu0 0.0
    %223 = vmatpush1.msra.mxu0 0.0
    %224 = vmatprep.subr.mxu0 0.0
    %225 = vmatpush1.msra.mxu0 0.0
    %226 = vmatprep.subr.mxu0 0.0
    %227 = vmatpush1.msra.mxu0 0.0
    %228 = vmatprep.subr.mxu0 0.0
    %229 = vmatpush1.msra.mxu0 0.0
    %230 = vmatprep.subr.mxu0 0.0
    %231 = vmatpush1.msra.mxu0 0.0
    %232 = vmatprep.subr.mxu0 0.0
    %233 = vmatpush1.msra.mxu0 0.0
    %234 = vmatprep.subr.mxu0 0.0
    %235 = vmatpush1.msra.mxu0 0.0
    %236 = vmatprep.subr.mxu0 0.0
    %237 = vmatpush1.msra.mxu0 0.0
    %238 = vmatprep.subr.mxu0 0.0
    %239 = vmatpush1.msra.mxu0 0.0
    %240 = vmatprep.subr.mxu0 0.0
    %241 = vmatpush1.msra.mxu0 0.0
    %242 = vmatprep.mubr.f32.mxu0 0.0
    %243 = vmatmul.mubr.f32.gmra.mrb[0].mxu0 %v103
    %v244 = vpop.f32.mrb[0].mxu0
    %v245 = vadd.f32 0.0, %v244
    %v246 = vpop.f32.mrb[0].mxu0
    %247 = vdwg.mxu0
    %v248 = vadd.f32 %v104, %v174
    %v249 = vxor.u32 %v248, 2147483648
    %v250 = vmul.f32 %v249, 1.442695
    %v251 = vpow.pop %v250
    %v252 = vadd.f32 %v251, 1.0
    %v253 = vrcp.pop %v252
    %v254 = vmul.f32 1.0, %v253
    %v255 = vadd.f32 %v105, %v176
    %v256 = vxor.u32 %v255, 2147483648
    %v257 = vmul.f32 %v256, 1.442695
    %v258 = vpow.pop %v257
    %v259 = vadd.f32 %v258, 1.0
    %v260 = vrcp.pop %v259
    %v261 = vmul.f32 1.0, %v260
    %v262 = vadd.f32 %v245, %v101
    %v263 = vmul.f32 %v254, %v262
    %v264 = vadd.f32 %v106, %v263
    %v265 = vtanh.pop %v264
    %v266 = vsub.f32 %v103, %v265
    %v267 = vmul.f32 %v261, %v266
    %v268 = vadd.f32 %v265, %v267
    %s269 = scalar_lea.vmem [#allocation2], 24
    %v270 = vld [vmem:[%s269] sm:$0xff]
    %v271 = vld [vmem:[%s269 + $0x8] sm:$0xff]
    %v272 = vld [vmem:[%s269 + $0x10] sm:$0xff]
    %273 = vmatprep.subr.mxu0 %v49
    %274 = vmatpush1.msra.mxu0 %v48
    %275 = vmatprep.subr.mxu0 %v52
    %276 = vmatpush1.msra.mxu0 %v51
    %277 = vmatprep.subr.mxu0 %v55
    %278 = vmatpush1.msra.mxu0 %v54
    %279 = vmatprep.subr.mxu0 %v58
    %280 = vmatpush1.msra.mxu0 %v57
    %281 = vmatprep.subr.mxu0 %v61
    %282 = vmatpush1.msra.mxu0 %v60
    %283 = vmatprep.subr.mxu0 %v64
    %284 = vmatpush1.msra.mxu0 %v63
    %285 = vmatprep.subr.mxu0 %v67
    %286 = vmatpush1.msra.mxu0 %v66
    %287 = vmatprep.subr.mxu0 %v70
    %288 = vmatpush1.msra.mxu0 %v69
    %289 = vmatprep.subr.mxu0 %v73
    %290 = vmatpush1.msra.mxu0 %v72
    %291 = vmatprep.subr.mxu0 %v76
    %292 = vmatpush1.msra.mxu0 %v75
    %293 = vmatprep.subr.mxu0 %v79
    %294 = vmatpush1.msra.mxu0 %v78
    %295 = vmatprep.subr.mxu0 %v82
    %296 = vmatpush1.msra.mxu0 %v81
    %297 = vmatprep.subr.mxu0 %v85
    %298 = vmatpush1.msra.mxu0 %v84
    %299 = vmatprep.subr.mxu0 %v88
    %300 = vmatpush1.msra.mxu0 %v87
    %301 = vmatprep.subr.mxu0 %v91
    %302 = vmatpush1.msra.mxu0 %v90
    %303 = vmatprep.subr.mxu0 %v94
    %304 = vmatpush1.msra.mxu0 %v93
    %305 = vmatprep.subr.mxu0 0.0
    %306 = vmatpush1.msra.mxu0 0.0
    %307 = vmatprep.subr.mxu0 0.0
    %308 = vmatpush1.msra.mxu0 0.0
    %309 = vmatprep.subr.mxu0 0.0
    %310 = vmatpush1.msra.mxu0 0.0
    %311 = vmatprep.subr.mxu0 0.0
    %312 = vmatpush1.msra.mxu0 0.0
    %313 = vmatprep.subr.mxu0 0.0
    %314 = vmatpush1.msra.mxu0 0.0
    %315 = vmatprep.subr.mxu0 0.0
    %316 = vmatpush1.msra.mxu0 0.0
    %317 = vmatprep.subr.mxu0 0.0
    %318 = vmatpush1.msra.mxu0 0.0
    %319 = vmatprep.subr.mxu0 0.0
    %320 = vmatpush1.msra.mxu0 0.0
    %321 = vmatprep.subr.mxu0 0.0
    %322 = vmatpush1.msra.mxu0 0.0
    %323 = vmatprep.subr.mxu0 0.0
    %324 = vmatpush1.msra.mxu0 0.0
    %325 = vmatprep.subr.mxu0 0.0
    %326 = vmatpush1.msra.mxu0 0.0
    %327 = vmatprep.subr.mxu0 0.0
    %328 = vmatpush1.msra.mxu0 0.0
    %329 = vmatprep.subr.mxu0 0.0
    %330 = vmatpush1.msra.mxu0 0.0
    %331 = vmatprep.subr.mxu0 0.0
    %332 = vmatpush1.msra.mxu0 0.0
    %333 = vmatprep.subr.mxu0 0.0
    %334 = vmatpush1.msra.mxu0 0.0
    %335 = vmatprep.subr.mxu0 0.0
    %336 = vmatpush1.msra.mxu0 0.0
    %337 = vmatprep.mubr.f32.mxu0 0.0
    %338 = vmatmul.mubr.f32.gmra.mrb[0].mxu0 %v268
    %v339 = vpop.f32.mrb[0].mxu0
    %v340 = vadd.f32 0.0, %v339
    %v341 = vpop.f32.mrb[0].mxu0
    %v342 = vadd.f32 0.0, %v341
    %343 = vdwg.mxu0
    %344 = vmatprep.subr.mxu0 0.0
    %345 = vmatpush1.msra.mxu0 %v50
    %346 = vmatprep.subr.mxu0 0.0
    %347 = vmatpush1.msra.mxu0 %v53
    %348 = vmatprep.subr.mxu0 0.0
    %349 = vmatpush1.msra.mxu0 %v56
    %350 = vmatprep.subr.mxu0 0.0
    %351 = vmatpush1.msra.mxu0 %v59
    %352 = vmatprep.subr.mxu0 0.0
    %353 = vmatpush1.msra.mxu0 %v62
    %354 = vmatprep.subr.mxu0 0.0
    %355 = vmatpush1.msra.mxu0 %v65
    %356 = vmatprep.subr.mxu0 0.0
    %357 = vmatpush1.msra.mxu0 %v68
    %358 = vmatprep.subr.mxu0 0.0
    %359 = vmatpush1.msra.mxu0 %v71
    %360 = vmatprep.subr.mxu0 0.0
    %361 = vmatpush1.msra.mxu0 %v74
    %362 = vmatprep.subr.mxu0 0.0
    %363 = vmatpush1.msra.mxu0 %v77
    %364 = vmatprep.subr.mxu0 0.0
    %365 = vmatpush1.msra.mxu0 %v80
    %366 = vmatprep.subr.mxu0 0.0
    %367 = vmatpush1.msra.mxu0 %v83
    %368 = vmatprep.subr.mxu0 0.0
    %369 = vmatpush1.msra.mxu0 %v86
    %370 = vmatprep.subr.mxu0 0.0
    %371 = vmatpush1.msra.mxu0 %v89
    %372 = vmatprep.subr.mxu0 0.0
    %373 = vmatpush1.msra.mxu0 %v92
    %374 = vmatprep.subr.mxu0 0.0
    %375 = vmatpush1.msra.mxu0 %v95
    %376 = vmatprep.subr.mxu0 0.0
    %377 = vmatpush1.msra.mxu0 0.0
    %378 = vmatprep.subr.mxu0 0.0
    %379 = vmatpush1.msra.mxu0 0.0
    %380 = vmatprep.subr.mxu0 0.0
    %381 = vmatpush1.msra.mxu0 0.0
    %382 = vmatprep.subr.mxu0 0.0
    %383 = vmatpush1.msra.mxu0 0.0
    %384 = vmatprep.subr.mxu0 0.0
    %385 = vmatpush1.msra.mxu0 0.0
    %386 = vmatprep.subr.mxu0 0.0
    %387 = vmatpush1.msra.mxu0 0.0
    %388 = vmatprep.subr.mxu0 0.0
    %389 = vmatpush1.msra.mxu0 0.0
    %390 = vmatprep.subr.mxu0 0.0
    %391 = vmatpush1.msra.mxu0 0.0
    %392 = vmatprep.subr.mxu0 0.0
    %393 = vmatpush1.msra.mxu0 0.0
    %394 = vmatprep.subr.mxu0 0.0
    %395 = vmatpush1.msra.mxu0 0.0
    %396 = vmatprep.subr.mxu0 0.0
    %397 = vmatpush1.msra.mxu0 0.0
    %398 = vmatprep.subr.mxu0 0.0
    %399 = vmatpush1.msra.mxu0 0.0
    %400 = vmatprep.subr.mxu0 0.0
    %401 = vmatpush1.msra.mxu0 0.0
    %402 = vmatprep.subr.mxu0 0.0
    %403 = vmatpush1.msra.mxu0 0.0
    %404 = vmatprep.subr.mxu0 0.0
    %405 = vmatpush1.msra.mxu0 0.0
    %406 = vmatprep.subr.mxu0 0.0
    %407 = vmatpush1.msra.mxu0 0.0
    %408 = vmatprep.mubr.f32.mxu0 0.0
    %409 = vmatmul.mubr.f32.gmra.mrb[0].mxu0 %v268
    %v410 = vpop.f32.mrb[0].mxu0
    %v411 = vadd.f32 0.0, %v410
    %v412 = vpop.f32.mrb[0].mxu0
    %413 = vdwg.mxu0
    %v414 = vadd.f32 %v270, %v340
    %v415 = vxor.u32 %v414, 2147483648
    %v416 = vmul.f32 %v415, 1.442695
    %v417 = vpow.pop %v416
    %v418 = vadd.f32 %v417, 1.0
    %v419 = vrcp.pop %v418
    %v420 = vmul.f32 1.0, %v419
    %v421 = vadd.f32 %v271, %v342
    %v422 = vxor.u32 %v421, 2147483648
    %v423 = vmul.f32 %v422, 1.442695
    %v424 = vpow.pop %v423
    %v425 = vadd.f32 %v424, 1.0
    %v426 = vrcp.pop %v425
    %v427 = vmul.f32 1.0, %v426
    %v428 = vadd.f32 %v411, %v101
    %v429 = vmul.f32 %v420, %v428
    %v430 = vadd.f32 %v272, %v429
    %v431 = vtanh.pop %v430
    %v432 = vsub.f32 %v268, %v431
    %v433 = vmul.f32 %v427, %v432
    %v434 = vadd.f32 %v431, %v433
    %s435 = scalar_lea.vmem [#allocation2], 48
    %v436 = vld [vmem:[%s435] sm:$0xff]
    %v437 = vld [vmem:[%s435 + $0x8] sm:$0xff]
    %v438 = vld [vmem:[%s435 + $0x10] sm:$0xff]
    %439 = vmatprep.subr.mxu0 %v49
    %440 = vmatpush1.msra.mxu0 %v48
    %441 = vmatprep.subr.mxu0 %v52
    %442 = vmatpush1.msra.mxu0 %v51
    %443 = vmatprep.subr.mxu0 %v55
    %444 = vmatpush1.msra.mxu0 %v54
    %445 = vmatprep.subr.mxu0 %v58
    %446 = vmatpush1.msra.mxu0 %v57
    %447 = vmatprep.subr.mxu0 %v61
    %448 = vmatpush1.msra.mxu0 %v60
    %449 = vmatprep.subr.mxu0 %v64
    %450 = vmatpush1.msra.mxu0 %v63
    %451 = vmatprep.subr.mxu0 %v67
    %452 = vmatpush1.msra.mxu0 %v66
    %453 = vmatprep.subr.mxu0 %v70
    %454 = vmatpush1.msra.mxu0 %v69
    %455 = vmatprep.subr.mxu0 %v73
    %456 = vmatpush1.msra.mxu0 %v72
    %457 = vmatprep.subr.mxu0 %v76
    %458 = vmatpush1.msra.mxu0 %v75
    %459 = vmatprep.subr.mxu0 %v79
    %460 = vmatpush1.msra.mxu0 %v78
    %461 = vmatprep.subr.mxu0 %v82
    %462 = vmatpush1.msra.mxu0 %v81
    %463 = vmatprep.subr.mxu0 %v85
    %464 = vmatpush1.msra.mxu0 %v84
    %465 = vmatprep.subr.mxu0 %v88
    %466 = vmatpush1.msra.mxu0 %v87
    %467 = vmatprep.subr.mxu0 %v91
    %468 = vmatpush1.msra.mxu0 %v90
    %469 = vmatprep.subr.mxu0 %v94
    %470 = vmatpush1.msra.mxu0 %v93
    %471 = vmatprep.subr.mxu0 0.0
    %472 = vmatpush1.msra.mxu0 0.0
    %473 = vmatprep.subr.mxu0 0.0
    %474 = vmatpush1.msra.mxu0 0.0
    %475 = vmatprep.subr.mxu0 0.0
    %476 = vmatpush1.msra.mxu0 0.0
    %477 = vmatprep.subr.mxu0 0.0
    %478 = vmatpush1.msra.mxu0 0.0
    %479 = vmatprep.subr.mxu0 0.0
    %480 = vmatpush1.msra.mxu0 0.0
    %481 = vmatprep.subr.mxu0 0.0
    %482 = vmatpush1.msra.mxu0 0.0
    %483 = vmatprep.subr.mxu0 0.0
    %484 = vmatpush1.msra.mxu0 0.0
    %485 = vmatprep.subr.mxu0 0.0
    %486 = vmatpush1.msra.mxu0 0.0
    %487 = vmatprep.subr.mxu0 0.0
    %488 = vmatpush1.msra.mxu0 0.0
    %489 = vmatprep.subr.mxu0 0.0
    %490 = vmatpush1.msra.mxu0 0.0
    %491 = vmatprep.subr.mxu0 0.0
    %492 = vmatpush1.msra.mxu0 0.0
    %493 = vmatprep.subr.mxu0 0.0
    %494 = vmatpush1.msra.mxu0 0.0
    %495 = vmatprep.subr.mxu0 0.0
    %496 = vmatpush1.msra.mxu0 0.0
    %497 = vmatprep.subr.mxu0 0.0
    %498 = vmatpush1.msra.mxu0 0.0
    %499 = vmatprep.subr.mxu0 0.0
    %500 = vmatpush1.msra.mxu0 0.0
    %501 = vmatprep.subr.mxu0 0.0
    %502 = vmatpush1.msra.mxu0 0.0
    %503 = vmatprep.mubr.f32.mxu0 0.0
    %504 = vmatmul.mubr.f32.gmra.mrb[0].mxu0 %v434
    %v505 = vpop.f32.mrb[0].mxu0
    %v506 = vadd.f32 0.0, %v505
    %v507 = vpop.f32.mrb[0].mxu0
    %v508 = vadd.f32 0.0, %v507
    %509 = vdwg.mxu0
    %510 = vmatprep.subr.mxu0 0.0
    %511 = vmatpush1.msra.mxu0 %v50
    %512 = vmatprep.subr.mxu0 0.0
    %513 = vmatpush1.msra.mxu0 %v53
    %514 = vmatprep.subr.mxu0 0.0
    %515 = vmatpush1.msra.mxu0 %v56
    %516 = vmatprep.subr.mxu0 0.0
    %517 = vmatpush1.msra.mxu0 %v59
    %518 = vmatprep.subr.mxu0 0.0
    %519 = vmatpush1.msra.mxu0 %v62
    %520 = vmatprep.subr.mxu0 0.0
    %521 = vmatpush1.msra.mxu0 %v65
    %522 = vmatprep.subr.mxu0 0.0
    %523 = vmatpush1.msra.mxu0 %v68
    %524 = vmatprep.subr.mxu0 0.0
    %525 = vmatpush1.msra.mxu0 %v71
    %526 = vmatprep.subr.mxu0 0.0
    %527 = vmatpush1.msra.mxu0 %v74
    %528 = vmatprep.subr.mxu0 0.0
    %529 = vmatpush1.msra.mxu0 %v77
    %530 = vmatprep.subr.mxu0 0.0
    %531 = vmatpush1.msra.mxu0 %v80
    %532 = vmatprep.subr.mxu0 0.0
    %533 = vmatpush1.msra.mxu0 %v83
    %534 = vmatprep.subr.mxu0 0.0
    %535 = vmatpush1.msra.mxu0 %v86
    %536 = vmatprep.subr.mxu0 0.0
    %537 = vmatpush1.msra.mxu0 %v89
    %538 = vmatprep.subr.mxu0 0.0
    %539 = vmatpush1.msra.mxu0 %v92
    %540 = vmatprep.subr.mxu0 0.0
    %541 = vmatpush1.msra.mxu0 %v95
    %542 = vmatprep.subr.mxu0 0.0
    %543 = vmatpush1.msra.mxu0 0.0
    %544 = vmatprep.subr.mxu0 0.0
    %545 = vmatpush1.msra.mxu0 0.0
    %546 = vmatprep.subr.mxu0 0.0
    %547 = vmatpush1.msra.mxu0 0.0
    %548 = vmatprep.subr.mxu0 0.0
    %549 = vmatpush1.msra.mxu0 0.0
    %550 = vmatprep.subr.mxu0 0.0
    %551 = vmatpush1.msra.mxu0 0.0
    %552 = vmatprep.subr.mxu0 0.0
    %553 = vmatpush1.msra.mxu0 0.0
    %554 = vmatprep.subr.mxu0 0.0
    %555 = vmatpush1.msra.mxu0 0.0
    %556 = vmatprep.subr.mxu0 0.0
    %557 = vmatpush1.msra.mxu0 0.0
    %558 = vmatprep.subr.mxu0 0.0
    %559 = vmatpush1.msra.mxu0 0.0
    %560 = vmatprep.subr.mxu0 0.0
    %561 = vmatpush1.msra.mxu0 0.0
    %562 = vmatprep.subr.mxu0 0.0
    %563 = vmatpush1.msra.mxu0 0.0
    %564 = vmatprep.subr.mxu0 0.0
    %565 = vmatpush1.msra.mxu0 0.0
    %566 = vmatprep.subr.mxu0 0.0
    %567 = vmatpush1.msra.mxu0 0.0
    %568 = vmatprep.subr.mxu0 0.0
    %569 = vmatpush1.msra.mxu0 0.0
    %570 = vmatprep.subr.mxu0 0.0
    %571 = vmatpush1.msra.mxu0 0.0
    %572 = vmatprep.subr.mxu0 0.0
    %573 = vmatpush1.msra.mxu0 0.0
    %574 = vmatprep.mubr.f32.mxu0 0.0
    %575 = vmatmul.mubr.f32.gmra.mrb[0].mxu0 %v434
    %v576 = vpop.f32.mrb[0].mxu0
    %v577 = vadd.f32 0.0, %v576
    %v578 = vpop.f32.mrb[0].mxu0
    %579 = vdwg.mxu0
    %v580 = vadd.f32 %v436, %v506
    %v581 = vxor.u32 %v580, 2147483648
    %v582 = vmul.f32 %v581, 1.442695
    %v583 = vpow.pop %v582
    %v584 = vadd.f32 %v583, 1.0
    %v585 = vrcp.pop %v584
    %v586 = vmul.f32 1.0, %v585
    %v587 = vadd.f32 %v437, %v508
    %v588 = vxor.u32 %v587, 2147483648
    %v589 = vmul.f32 %v588, 1.442695
    %v590 = vpow.pop %v589
    %v591 = vadd.f32 %v590, 1.0
    %v592 = vrcp.pop %v591
    %v593 = vmul.f32 1.0, %v592
    %v594 = vadd.f32 %v577, %v101
    %v595 = vmul.f32 %v586, %v594
    %v596 = vadd.f32 %v438, %v595
    %v597 = vtanh.pop %v596
    %v598 = vsub.f32 %v434, %v597
    %v599 = vmul.f32 %v593, %v598
    %v600 = vadd.f32 %v597, %v599
    %s601 = scalar_lea.vmem [#allocation2], 72
    %v602 = vld [vmem:[%s601] sm:$0xff]
    %v603 = vld [vmem:[%s601 + $0x8] sm:$0xff]
    %v604 = vld [vmem:[%s601 + $0x10] sm:$0xff]
    %605 = vmatprep.subr.mxu0 %v49
    %606 = vmatpush1.msra.mxu0 %v48
    %607 = vmatprep.subr.mxu0 %v52
    %608 = vmatpush1.msra.mxu0 %v51
    %609 = vmatprep.subr.mxu0 %v55
    %610 = vmatpush1.msra.mxu0 %v54
    %611 = vmatprep.subr.mxu0 %v58
    %612 = vmatpush1.msra.mxu0 %v57
    %613 = vmatprep.subr.mxu0 %v61
    %614 = vmatpush1.msra.mxu0 %v60
    %615 = vmatprep.subr.mxu0 %v64
    %616 = vmatpush1.msra.mxu0 %v63
    %617 = vmatprep.subr.mxu0 %v67
    %618 = vmatpush1.msra.mxu0 %v66
    %619 = vmatprep.subr.mxu0 %v70
    %620 = vmatpush1.msra.mxu0 %v69
    %621 = vmatprep.subr.mxu0 %v73
    %622 = vmatpush1.msra.mxu0 %v72
    %623 = vmatprep.subr.mxu0 %v76
    %624 = vmatpush1.msra.mxu0 %v75
    %625 = vmatprep.subr.mxu0 %v79
    %626 = vmatpush1.msra.mxu0 %v78
    %627 = vmatprep.subr.mxu0 %v82
    %628 = vmatpush1.msra.mxu0 %v81
    %629 = vmatprep.subr.mxu0 %v85
    %630 = vmatpush1.msra.mxu0 %v84
    %631 = vmatprep.subr.mxu0 %v88
    %632 = vmatpush1.msra.mxu0 %v87
    %633 = vmatprep.subr.mxu0 %v91
    %634 = vmatpush1.msra.mxu0 %v90
    %635 = vmatprep.subr.mxu0 %v94
    %636 = vmatpush1.msra.mxu0 %v93
    %637 = vmatprep.subr.mxu0 0.0
    %638 = vmatpush1.msra.mxu0 0.0
    %639 = vmatprep.subr.mxu0 0.0
    %640 = vmatpush1.msra.mxu0 0.0
    %641 = vmatprep.subr.mxu0 0.0
    %642 = vmatpush1.msra.mxu0 0.0
    %643 = vmatprep.subr.mxu0 0.0
    %644 = vmatpush1.msra.mxu0 0.0
    %645 = vmatprep.subr.mxu0 0.0
    %646 = vmatpush1.msra.mxu0 0.0
    %647 = vmatprep.subr.mxu0 0.0
    %648 = vmatpush1.msra.mxu0 0.0
    %649 = vmatprep.subr.mxu0 0.0
    %650 = vmatpush1.msra.mxu0 0.0
    %651 = vmatprep.subr.mxu0 0.0
    %652 = vmatpush1.msra.mxu0 0.0
    %653 = vmatprep.subr.mxu0 0.0
    %654 = vmatpush1.msra.mxu0 0.0
    %655 = vmatprep.subr.mxu0 0.0
    %656 = vmatpush1.msra.mxu0 0.0
    %657 = vmatprep.subr.mxu0 0.0
    %658 = vmatpush1.msra.mxu0 0.0
    %659 = vmatprep.subr.mxu0 0.0
    %660 = vmatpush1.msra.mxu0 0.0
    %661 = vmatprep.subr.mxu0 0.0
    %662 = vmatpush1.msra.mxu0 0.0
    %663 = vmatprep.subr.mxu0 0.0
    %664 = vmatpush1.msra.mxu0 0.0
    %665 = vmatprep.subr.mxu0 0.0
    %666 = vmatpush1.msra.mxu0 0.0
    %667 = vmatprep.subr.mxu0 0.0
    %668 = vmatpush1.msra.mxu0 0.0
    %669 = vmatprep.mubr.f32.mxu0 0.0
    %670 = vmatmul.mubr.f32.gmra.mrb[0].mxu0 %v600
    %v671 = vpop.f32.mrb[0].mxu0
    %v672 = vadd.f32 0.0, %v671
    %v673 = vpop.f32.mrb[0].mxu0
    %v674 = vadd.f32 0.0, %v673
    %675 = vdwg.mxu0
    %676 = vmatprep.subr.mxu0 0.0
    %677 = vmatpush1.msra.mxu0 %v50
    %678 = vmatprep.subr.mxu0 0.0
    %679 = vmatpush1.msra.mxu0 %v53
    %680 = vmatprep.subr.mxu0 0.0
    %681 = vmatpush1.msra.mxu0 %v56
    %682 = vmatprep.subr.mxu0 0.0
    %683 = vmatpush1.msra.mxu0 %v59
    %684 = vmatprep.subr.mxu0 0.0
    %685 = vmatpush1.msra.mxu0 %v62
    %686 = vmatprep.subr.mxu0 0.0
    %687 = vmatpush1.msra.mxu0 %v65
    %688 = vmatprep.subr.mxu0 0.0
    %689 = vmatpush1.msra.mxu0 %v68
    %690 = vmatprep.subr.mxu0 0.0
    %691 = vmatpush1.msra.mxu0 %v71
    %692 = vmatprep.subr.mxu0 0.0
    %693 = vmatpush1.msra.mxu0 %v74
    %694 = vmatprep.subr.mxu0 0.0
    %695 = vmatpush1.msra.mxu0 %v77
    %696 = vmatprep.subr.mxu0 0.0
    %697 = vmatpush1.msra.mxu0 %v80
    %698 = vmatprep.subr.mxu0 0.0
    %699 = vmatpush1.msra.mxu0 %v83
    %700 = vmatprep.subr.mxu0 0.0
    %701 = vmatpush1.msra.mxu0 %v86
    %702 = vmatprep.subr.mxu0 0.0
    %703 = vmatpush1.msra.mxu0 %v89
    %704 = vmatprep.subr.mxu0 0.0
    %705 = vmatpush1.msra.mxu0 %v92
    %706 = vmatprep.subr.mxu0 0.0
    %707 = vmatpush1.msra.mxu0 %v95
    %708 = vmatprep.subr.mxu0 0.0
    %709 = vmatpush1.msra.mxu0 0.0
    %710 = vmatprep.subr.mxu0 0.0
    %711 = vmatpush1.msra.mxu0 0.0
    %712 = vmatprep.subr.mxu0 0.0
    %713 = vmatpush1.msra.mxu0 0.0
    %714 = vmatprep.subr.mxu0 0.0
    %715 = vmatpush1.msra.mxu0 0.0
    %716 = vmatprep.subr.mxu0 0.0
    %717 = vmatpush1.msra.mxu0 0.0
    %718 = vmatprep.subr.mxu0 0.0
    %719 = vmatpush1.msra.mxu0 0.0
    %720 = vmatprep.subr.mxu0 0.0
    %721 = vmatpush1.msra.mxu0 0.0
    %722 = vmatprep.subr.mxu0 0.0
    %723 = vmatpush1.msra.mxu0 0.0
    %724 = vmatprep.subr.mxu0 0.0
    %725 = vmatpush1.msra.mxu0 0.0
    %726 = vmatprep.subr.mxu0 0.0
    %727 = vmatpush1.msra.mxu0 0.0
    %728 = vmatprep.subr.mxu0 0.0
    %729 = vmatpush1.msra.mxu0 0.0
    %730 = vmatprep.subr.mxu0 0.0
    %731 = vmatpush1.msra.mxu0 0.0
    %732 = vmatprep.subr.mxu0 0.0
    %733 = vmatpush1.msra.mxu0 0.0
    %734 = vmatprep.subr.mxu0 0.0
    %735 = vmatpush1.msra.mxu0 0.0
    %736 = vmatprep.subr.mxu0 0.0
    %737 = vmatpush1.msra.mxu0 0.0
    %738 = vmatprep.subr.mxu0 0.0
    %739 = vmatpush1.msra.mxu0 0.0
    %740 = vmatprep.mubr.f32.mxu0 0.0
    %741 = vmatmul.mubr.f32.gmra.mrb[0].mxu0 %v600
    %v742 = vpop.f32.mrb[0].mxu0
    %v743 = vadd.f32 0.0, %v742
    %v744 = vpop.f32.mrb[0].mxu0
    %745 = vdwg.mxu0
    %v746 = vadd.f32 %v602, %v672
    %v747 = vxor.u32 %v746, 2147483648
    %v748 = vmul.f32 %v747, 1.442695
    %v749 = vpow.pop %v748
    %v750 = vadd.f32 %v749, 1.0
    %v751 = vrcp.pop %v750
    %v752 = vmul.f32 1.0, %v751
    %v753 = vadd.f32 %v603, %v674
    %v754 = vxor.u32 %v753, 2147483648
    %v755 = vmul.f32 %v754, 1.442695
    %v756 = vpow.pop %v755
    %v757 = vadd.f32 %v756, 1.0
    %v758 = vrcp.pop %v757
    %v759 = vmul.f32 1.0, %v758
    %v760 = vadd.f32 %v743, %v101
    %v761 = vmul.f32 %v752, %v760
    %v762 = vadd.f32 %v604, %v761
    %v763 = vtanh.pop %v762
    %v764 = vsub.f32 %v600, %v763
    %v765 = vmul.f32 %v759, %v764
    %v766 = vadd.f32 %v763, %v765
    %s767 = scalar_lea.vmem [#allocation2], 96
    %v768 = vld [vmem:[%s767] sm:$0xff]
    %v769 = vld [vmem:[%s767 + $0x8] sm:$0xff]
    %v770 = vld [vmem:[%s767 + $0x10] sm:$0xff]
    %771 = vmatprep.subr.mxu0 %v49
    %772 = vmatpush1.msra.mxu0 %v48
    %773 = vmatprep.subr.mxu0 %v52
    %774 = vmatpush1.msra.mxu0 %v51
    %775 = vmatprep.subr.mxu0 %v55
    %776 = vmatpush1.msra.mxu0 %v54
    %777 = vmatprep.subr.mxu0 %v58
    %778 = vmatpush1.msra.mxu0 %v57
    %779 = vmatprep.subr.mxu0 %v61
    %780 = vmatpush1.msra.mxu0 %v60
    %781 = vmatprep.subr.mxu0 %v64
    %782 = vmatpush1.msra.mxu0 %v63
    %783 = vmatprep.subr.mxu0 %v67
    %784 = vmatpush1.msra.mxu0 %v66
    %785 = vmatprep.subr.mxu0 %v70
    %786 = vmatpush1.msra.mxu0 %v69
    %787 = vmatprep.subr.mxu0 %v73
    %788 = vmatpush1.msra.mxu0 %v72
    %789 = vmatprep.subr.mxu0 %v76
    %790 = vmatpush1.msra.mxu0 %v75
    %791 = vmatprep.subr.mxu0 %v79
    %792 = vmatpush1.msra.mxu0 %v78
    %793 = vmatprep.subr.mxu0 %v82
    %794 = vmatpush1.msra.mxu0 %v81
    %795 = vmatprep.subr.mxu0 %v85
    %796 = vmatpush1.msra.mxu0 %v84
    %797 = vmatprep.subr.mxu0 %v88
    %798 = vmatpush1.msra.mxu0 %v87
    %799 = vmatprep.subr.mxu0 %v91
    %800 = vmatpush1.msra.mxu0 %v90
    %801 = vmatprep.subr.mxu0 %v94
    %802 = vmatpush1.msra.mxu0 %v93
    %803 = vmatprep.subr.mxu0 0.0
    %804 = vmatpush1.msra.mxu0 0.0
    %805 = vmatprep.subr.mxu0 0.0
    %806 = vmatpush1.msra.mxu0 0.0
    %807 = vmatprep.subr.mxu0 0.0
    %808 = vmatpush1.msra.mxu0 0.0
    %809 = vmatprep.subr.mxu0 0.0
    %810 = vmatpush1.msra.mxu0 0.0
    %811 = vmatprep.subr.mxu0 0.0
    %812 = vmatpush1.msra.mxu0 0.0
    %813 = vmatprep.subr.mxu0 0.0
    %814 = vmatpush1.msra.mxu0 0.0
    %815 = vmatprep.subr.mxu0 0.0
    %816 = vmatpush1.msra.mxu0 0.0
    %817 = vmatprep.subr.mxu0 0.0
    %818 = vmatpush1.msra.mxu0 0.0
    %819 = vmatprep.subr.mxu0 0.0
    %820 = vmatpush1.msra.mxu0 0.0
    %821 = vmatprep.subr.mxu0 0.0
    %822 = vmatpush1.msra.mxu0 0.0
    %823 = vmatprep.subr.mxu0 0.0
    %824 = vmatpush1.msra.mxu0 0.0
    %825 = vmatprep.subr.mxu0 0.0
    %826 = vmatpush1.msra.mxu0 0.0
    %827 = vmatprep.subr.mxu0 0.0
    %828 = vmatpush1.msra.mxu0 0.0
    %829 = vmatprep.subr.mxu0 0.0
    %830 = vmatpush1.msra.mxu0 0.0
    %831 = vmatprep.subr.mxu0 0.0
    %832 = vmatpush1.msra.mxu0 0.0
    %833 = vmatprep.subr.mxu0 0.0
    %834 = vmatpush1.msra.mxu0 0.0
    %835 = vmatprep.mubr.f32.mxu0 0.0
    %836 = vmatmul.mubr.f32.gmra.mrb[0].mxu0 %v766
    %v837 = vpop.f32.mrb[0].mxu0
    %v838 = vadd.f32 0.0, %v837
    %v839 = vpop.f32.mrb[0].mxu0
    %v840 = vadd.f32 0.0, %v839
    %841 = vdwg.mxu0
    %842 = vmatprep.subr.mxu0 0.0
    %843 = vmatpush1.msra.mxu0 %v50
    %844 = vmatprep.subr.mxu0 0.0
    %845 = vmatpush1.msra.mxu0 %v53
    %846 = vmatprep.subr.mxu0 0.0
    %847 = vmatpush1.msra.mxu0 %v56
    %848 = vmatprep.subr.mxu0 0.0
    %849 = vmatpush1.msra.mxu0 %v59
    %850 = vmatprep.subr.mxu0 0.0
    %851 = vmatpush1.msra.mxu0 %v62
    %852 = vmatprep.subr.mxu0 0.0
    %853 = vmatpush1.msra.mxu0 %v65
    %854 = vmatprep.subr.mxu0 0.0
    %855 = vmatpush1.msra.mxu0 %v68
    %856 = vmatprep.subr.mxu0 0.0
    %857 = vmatpush1.msra.mxu0 %v71
    %858 = vmatprep.subr.mxu0 0.0
    %859 = vmatpush1.msra.mxu0 %v74
    %860 = vmatprep.subr.mxu0 0.0
    %861 = vmatpush1.msra.mxu0 %v77
    %862 = vmatprep.subr.mxu0 0.0
    %863 = vmatpush1.msra.mxu0 %v80
    %864 = vmatprep.subr.mxu0 0.0
    %865 = vmatpush1.msra.mxu0 %v83
    %866 = vmatprep.subr.mxu0 0.0
    %867 = vmatpush1.msra.mxu0 %v86
    %868 = vmatprep.subr.mxu0 0.0
    %869 = vmatpush1.msra.mxu0 %v89
    %870 = vmatprep.subr.mxu0 0.0
    %871 = vmatpush1.msra.mxu0 %v92
    %872 = vmatprep.subr.mxu0 0.0
    %873 = vmatpush1.msra.mxu0 %v95
    %874 = vmatprep.subr.mxu0 0.0
    %875 = vmatpush1.msra.mxu0 0.0
    %876 = vmatprep.subr.mxu0 0.0
    %877 = vmatpush1.msra.mxu0 0.0
    %878 = vmatprep.subr.mxu0 0.0
    %879 = vmatpush1.msra.mxu0 0.0
    %880 = vmatprep.subr.mxu0 0.0
    %881 = vmatpush1.msra.mxu0 0.0
    %882 = vmatprep.subr.mxu0 0.0
    %883 = vmatpush1.msra.mxu0 0.0
    %884 = vmatprep.subr.mxu0 0.0
    %885 = vmatpush1.msra.mxu0 0.0
    %886 = vmatprep.subr.mxu0 0.0
    %887 = vmatpush1.msra.mxu0 0.0
    %888 = vmatprep.subr.mxu0 0.0
    %889 = vmatpush1.msra.mxu0 0.0
    %890 = vmatprep.subr.mxu0 0.0
    %891 = vmatpush1.msra.mxu0 0.0
    %892 = vmatprep.subr.mxu0 0.0
    %893 = vmatpush1.msra.mxu0 0.0
    %894 = vmatprep.subr.mxu0 0.0
    %895 = vmatpush1.msra.mxu0 0.0
    %896 = vmatprep.subr.mxu0 0.0
    %897 = vmatpush1.msra.mxu0 0.0
    %898 = vmatprep.subr.mxu0 0.0
    %899 = vmatpush1.msra.mxu0 0.0
    %900 = vmatprep.subr.mxu0 0.0
    %901 = vmatpush1.msra.mxu0 0.0
    %902 = vmatprep.subr.mxu0 0.0
    %903 = vmatpush1.msra.mxu0 0.0
    %904 = vmatprep.subr.mxu0 0.0
    %905 = vmatpush1.msra.mxu0 0.0
    %906 = vmatprep.mubr.f32.mxu0 0.0
    %907 = vmatmul.mubr.f32.gmra.mrb[0].mxu0 %v766
    %v908 = vpop.f32.mrb[0].mxu0
    %v909 = vadd.f32 0.0, %v908
    %v910 = vpop.f32.mrb[0].mxu0
    %911 = vdwg.mxu0
    %v912 = vadd.f32 %v768, %v838
    %v913 = vxor.u32 %v912, 2147483648
    %v914 = vmul.f32 %v913, 1.442695
    %v915 = vpow.pop %v914
    %v916 = vadd.f32 %v915, 1.0
    %v917 = vrcp.pop %v916
    %v918 = vmul.f32 1.0, %v917
    %v919 = vadd.f32 %v769, %v840
    %v920 = vxor.u32 %v919, 2147483648
    %v921 = vmul.f32 %v920, 1.442695
    %v922 = vpow.pop %v921
    %v923 = vadd.f32 %v922, 1.0
    %v924 = vrcp.pop %v923
    %v925 = vmul.f32 1.0, %v924
    %v926 = vadd.f32 %v909, %v101
    %v927 = vmul.f32 %v918, %v926
    %v928 = vadd.f32 %v770, %v927
    %v929 = vtanh.pop %v928
    %v930 = vsub.f32 %v766, %v929
    %v931 = vmul.f32 %v925, %v930
    %v932 = vadd.f32 %v929, %v931
    %s933 = scalar_lea.vmem [#allocation2], 120
    %v934 = vld [vmem:[%s933] sm:$0xff]
    %v935 = vld [vmem:[%s933 + $0x8] sm:$0xff]
    %v936 = vld [vmem:[%s933 + $0x10] sm:$0xff]
    %937 = vmatprep.subr.mxu0 %v49
    %938 = vmatpush1.msra.mxu0 %v48
    %939 = vmatprep.subr.mxu0 %v52
    %940 = vmatpush1.msra.mxu0 %v51
    %941 = vmatprep.subr.mxu0 %v55
    %942 = vmatpush1.msra.mxu0 %v54
    %943 = vmatprep.subr.mxu0 %v58
    %944 = vmatpush1.msra.mxu0 %v57
    %945 = vmatprep.subr.mxu0 %v61
    %946 = vmatpush1.msra.mxu0 %v60
    %947 = vmatprep.subr.mxu0 %v64
    %948 = vmatpush1.msra.mxu0 %v63
    %949 = vmatprep.subr.mxu0 %v67
    %950 = vmatpush1.msra.mxu0 %v66
    %951 = vmatprep.subr.mxu0 %v70
    %952 = vmatpush1.msra.mxu0 %v69
    %953 = vmatprep.subr.mxu0 %v73
    %954 = vmatpush1.msra.mxu0 %v72
    %955 = vmatprep.subr.mxu0 %v76
    %956 = vmatpush1.msra.mxu0 %v75
    %957 = vmatprep.subr.mxu0 %v79
    %958 = vmatpush1.msra.mxu0 %v78
    %959 = vmatprep.subr.mxu0 %v82
    %960 = vmatpush1.msra.mxu0 %v81
    %961 = vmatprep.subr.mxu0 %v85
    %962 = vmatpush1.msra.mxu0 %v84
    %963 = vmatprep.subr.mxu0 %v88
    %964 = vmatpush1.msra.mxu0 %v87
    %965 = vmatprep.subr.mxu0 %v91
    %966 = vmatpush1.msra.mxu0 %v90
    %967 = vmatprep.subr.mxu0 %v94
    %968 = vmatpush1.msra.mxu0 %v93
    %969 = vmatprep.subr.mxu0 0.0
    %970 = vmatpush1.msra.mxu0 0.0
    %971 = vmatprep.subr.mxu0 0.0
    %972 = vmatpush1.msra.mxu0 0.0
    %973 = vmatprep.subr.mxu0 0.0
    %974 = vmatpush1.msra.mxu0 0.0
    %975 = vmatprep.subr.mxu0 0.0
    %976 = vmatpush1.msra.mxu0 0.0
    %977 = vmatprep.subr.mxu0 0.0
    %978 = vmatpush1.msra.mxu0 0.0
    %979 = vmatprep.subr.mxu0 0.0
    %980 = vmatpush1.msra.mxu0 0.0
    %981 = vmatprep.subr.mxu0 0.0
    %982 = vmatpush1.msra.mxu0 0.0
    %983 = vmatprep.subr.mxu0 0.0
    %984 = vmatpush1.msra.mxu0 0.0
    %985 = vmatprep.subr.mxu0 0.0
    %986 = vmatpush1.msra.mxu0 0.0
    %987 = vmatprep.subr.mxu0 0.0
    %988 = vmatpush1.msra.mxu0 0.0
    %989 = vmatprep.subr.mxu0 0.0
    %990 = vmatpush1.msra.mxu0 0.0
    %991 = vmatprep.subr.mxu0 0.0
    %992 = vmatpush1.msra.mxu0 0.0
    %993 = vmatprep.subr.mxu0 0.0
    %994 = vmatpush1.msra.mxu0 0.0
    %995 = vmatprep.subr.mxu0 0.0
    %996 = vmatpush1.msra.mxu0 0.0
    %997 = vmatprep.subr.mxu0 0.0
    %998 = vmatpush1.msra.mxu0 0.0
    %999 = vmatprep.subr.mxu0 0.0
    %1000 = vmatpush1.msra.mxu0 0.0
    %1001 = vmatprep.mubr.f32.mxu0 0.0
    %1002 = vmatmul.mubr.f32.gmra.mrb[0].mxu0 %v932
    %v1003 = vpop.f32.mrb[0].mxu0
    %v1004 = vadd.f32 0.0, %v1003
    %v1005 = vpop.f32.mrb[0].mxu0
    %v1006 = vadd.f32 0.0, %v1005
    %1007 = vdwg.mxu0
    %1008 = vmatprep.subr.mxu0 0.0
    %1009 = vmatpush1.msra.mxu0 %v50
    %1010 = vmatprep.subr.mxu0 0.0
    %1011 = vmatpush1.msra.mxu0 %v53
    %1012 = vmatprep.subr.mxu0 0.0
    %1013 = vmatpush1.msra.mxu0 %v56
    %1014 = vmatprep.subr.mxu0 0.0
    %1015 = vmatpush1.msra.mxu0 %v59
    %1016 = vmatprep.subr.mxu0 0.0
    %1017 = vmatpush1.msra.mxu0 %v62
    %1018 = vmatprep.subr.mxu0 0.0
    %1019 = vmatpush1.msra.mxu0 %v65
    %1020 = vmatprep.subr.mxu0 0.0
    %1021 = vmatpush1.msra.mxu0 %v68
    %1022 = vmatprep.subr.mxu0 0.0
    %1023 = vmatpush1.msra.mxu0 %v71
    %1024 = vmatprep.subr.mxu0 0.0
    %1025 = vmatpush1.msra.mxu0 %v74
    %1026 = vmatprep.subr.mxu0 0.0
    %1027 = vmatpush1.msra.mxu0 %v77
    %1028 = vmatprep.subr.mxu0 0.0
    %1029 = vmatpush1.msra.mxu0 %v80
    %1030 = vmatprep.subr.mxu0 0.0
    %1031 = vmatpush1.msra.mxu0 %v83
    %1032 = vmatprep.subr.mxu0 0.0
    %1033 = vmatpush1.msra.mxu0 %v86
    %1034 = vmatprep.subr.mxu0 0.0
    %1035 = vmatpush1.msra.mxu0 %v89
    %1036 = vmatprep.subr.mxu0 0.0
    %1037 = vmatpush1.msra.mxu0 %v92
    %1038 = vmatprep.subr.mxu0 0.0
    %1039 = vmatpush1.msra.mxu0 %v95
    %1040 = vmatprep.subr.mxu0 0.0
    %1041 = vmatpush1.msra.mxu0 0.0
    %1042 = vmatprep.subr.mxu0 0.0
    %1043 = vmatpush1.msra.mxu0 0.0
    %1044 = vmatprep.subr.mxu0 0.0
    %1045 = vmatpush1.msra.mxu0 0.0
    %1046 = vmatprep.subr.mxu0 0.0
    %1047 = vmatpush1.msra.mxu0 0.0
    %1048 = vmatprep.subr.mxu0 0.0
    %1049 = vmatpush1.msra.mxu0 0.0
    %1050 = vmatprep.subr.mxu0 0.0
    %1051 = vmatpush1.msra.mxu0 0.0
    %1052 = vmatprep.subr.mxu0 0.0
    %1053 = vmatpush1.msra.mxu0 0.0
    %1054 = vmatprep.subr.mxu0 0.0
    %1055 = vmatpush1.msra.mxu0 0.0
    %1056 = vmatprep.subr.mxu0 0.0
    %1057 = vmatpush1.msra.mxu0 0.0
    %1058 = vmatprep.subr.mxu0 0.0
    %1059 = vmatpush1.msra.mxu0 0.0
    %1060 = vmatprep.subr.mxu0 0.0
    %1061 = vmatpush1.msra.mxu0 0.0
    %1062 = vmatprep.subr.mxu0 0.0
    %1063 = vmatpush1.msra.mxu0 0.0
    %1064 = vmatprep.subr.mxu0 0.0
    %1065 = vmatpush1.msra.mxu0 0.0
    %1066 = vmatprep.subr.mxu0 0.0
    %1067 = vmatpush1.msra.mxu0 0.0
    %1068 = vmatprep.subr.mxu0 0.0
    %1069 = vmatpush1.msra.mxu0 0.0
    %1070 = vmatprep.subr.mxu0 0.0
    %1071 = vmatpush1.msra.mxu0 0.0
    %1072 = vmatprep.mubr.f32.mxu0 0.0
    %1073 = vmatmul.mubr.f32.gmra.mrb[0].mxu0 %v932
    %v1074 = vpop.f32.mrb[0].mxu0
    %v1075 = vadd.f32 0.0, %v1074
    %v1076 = vpop.f32.mrb[0].mxu0
    %1077 = vdwg.mxu0
    %v1078 = vadd.f32 %v934, %v1004
    %v1079 = vxor.u32 %v1078, 2147483648
    %v1080 = vmul.f32 %v1079, 1.442695
    %v1081 = vpow.pop %v1080
    %v1082 = vadd.f32 %v1081, 1.0
    %v1083 = vrcp.pop %v1082
    %v1084 = vmul.f32 1.0, %v1083
    %v1085 = vadd.f32 %v935, %v1006
    %v1086 = vxor.u32 %v1085, 2147483648
    %v1087 = vmul.f32 %v1086, 1.442695
    %v1088 = vpow.pop %v1087
    %v1089 = vadd.f32 %v1088, 1.0
    %v1090 = vrcp.pop %v1089
    %v1091 = vmul.f32 1.0, %v1090
    %v1092 = vadd.f32 %v1075, %v101
    %v1093 = vmul.f32 %v1084, %v1092
    %v1094 = vadd.f32 %v936, %v1093
    %v1095 = vtanh.pop %v1094
    %v1096 = vsub.f32 %v932, %v1095
    %v1097 = vmul.f32 %v1091, %v1096
    %v1098 = vadd.f32 %v1095, %v1097
    %s1099 = scalar_lea.vmem [#allocation2], 144
    %v1100 = vld [vmem:[%s1099] sm:$0xff]
    %v1101 = vld [vmem:[%s1099 + $0x8] sm:$0xff]
    %v1102 = vld [vmem:[%s1099 + $0x10] sm:$0xff]
    %1103 = vmatprep.subr.mxu0 %v49
    %1104 = vmatpush1.msra.mxu0 %v48
    %1105 = vmatprep.subr.mxu0 %v52
    %1106 = vmatpush1.msra.mxu0 %v51
    %1107 = vmatprep.subr.mxu0 %v55
    %1108 = vmatpush1.msra.mxu0 %v54
    %1109 = vmatprep.subr.mxu0 %v58
    %1110 = vmatpush1.msra.mxu0 %v57
    %1111 = vmatprep.subr.mxu0 %v61
    %1112 = vmatpush1.msra.mxu0 %v60
    %1113 = vmatprep.subr.mxu0 %v64
    %1114 = vmatpush1.msra.mxu0 %v63
    %1115 = vmatprep.subr.mxu0 %v67
    %1116 = vmatpush1.msra.mxu0 %v66
    %1117 = vmatprep.subr.mxu0 %v70
    %1118 = vmatpush1.msra.mxu0 %v69
    %1119 = vmatprep.subr.mxu0 %v73
    %1120 = vmatpush1.msra.mxu0 %v72
    %1121 = vmatprep.subr.mxu0 %v76
    %1122 = vmatpush1.msra.mxu0 %v75
    %1123 = vmatprep.subr.mxu0 %v79
    %1124 = vmatpush1.msra.mxu0 %v78
    %1125 = vmatprep.subr.mxu0 %v82
    %1126 = vmatpush1.msra.mxu0 %v81
    %1127 = vmatprep.subr.mxu0 %v85
    %1128 = vmatpush1.msra.mxu0 %v84
    %1129 = vmatprep.subr.mxu0 %v88
    %1130 = vmatpush1.msra.mxu0 %v87
    %1131 = vmatprep.subr.mxu0 %v91
    %1132 = vmatpush1.msra.mxu0 %v90
    %1133 = vmatprep.subr.mxu0 %v94
    %1134 = vmatpush1.msra.mxu0 %v93
    %1135 = vmatprep.subr.mxu0 0.0
    %1136 = vmatpush1.msra.mxu0 0.0
    %1137 = vmatprep.subr.mxu0 0.0
    %1138 = vmatpush1.msra.mxu0 0.0
    %1139 = vmatprep.subr.mxu0 0.0
    %1140 = vmatpush1.msra.mxu0 0.0
    %1141 = vmatprep.subr.mxu0 0.0
    %1142 = vmatpush1.msra.mxu0 0.0
    %1143 = vmatprep.subr.mxu0 0.0
    %1144 = vmatpush1.msra.mxu0 0.0
    %1145 = vmatprep.subr.mxu0 0.0
    %1146 = vmatpush1.msra.mxu0 0.0
    %1147 = vmatprep.subr.mxu0 0.0
    %1148 = vmatpush1.msra.mxu0 0.0
    %1149 = vmatprep.subr.mxu0 0.0
    %1150 = vmatpush1.msra.mxu0 0.0
    %1151 = vmatprep.subr.mxu0 0.0
    %1152 = vmatpush1.msra.mxu0 0.0
    %1153 = vmatprep.subr.mxu0 0.0
    %1154 = vmatpush1.msra.mxu0 0.0
    %1155 = vmatprep.subr.mxu0 0.0
    %1156 = vmatpush1.msra.mxu0 0.0
    %1157 = vmatprep.subr.mxu0 0.0
    %1158 = vmatpush1.msra.mxu0 0.0
    %1159 = vmatprep.subr.mxu0 0.0
    %1160 = vmatpush1.msra.mxu0 0.0
    %1161 = vmatprep.subr.mxu0 0.0
    %1162 = vmatpush1.msra.mxu0 0.0
    %1163 = vmatprep.subr.mxu0 0.0
    %1164 = vmatpush1.msra.mxu0 0.0
    %1165 = vmatprep.subr.mxu0 0.0
    %1166 = vmatpush1.msra.mxu0 0.0
    %1167 = vmatprep.mubr.f32.mxu0 0.0
    %1168 = vmatmul.mubr.f32.gmra.mrb[0].mxu0 %v1098
    %v1169 = vpop.f32.mrb[0].mxu0
    %v1170 = vadd.f32 0.0, %v1169
    %v1171 = vpop.f32.mrb[0].mxu0
    %v1172 = vadd.f32 0.0, %v1171
    %1173 = vdwg.mxu0
    %1174 = vmatprep.subr.mxu0 0.0
    %1175 = vmatpush1.msra.mxu0 %v50
    %1176 = vmatprep.subr.mxu0 0.0
    %1177 = vmatpush1.msra.mxu0 %v53
    %1178 = vmatprep.subr.mxu0 0.0
    %1179 = vmatpush1.msra.mxu0 %v56
    %1180 = vmatprep.subr.mxu0 0.0
    %1181 = vmatpush1.msra.mxu0 %v59
    %1182 = vmatprep.subr.mxu0 0.0
    %1183 = vmatpush1.msra.mxu0 %v62
    %1184 = vmatprep.subr.mxu0 0.0
    %1185 = vmatpush1.msra.mxu0 %v65
    %1186 = vmatprep.subr.mxu0 0.0
    %1187 = vmatpush1.msra.mxu0 %v68
    %1188 = vmatprep.subr.mxu0 0.0
    %1189 = vmatpush1.msra.mxu0 %v71
    %1190 = vmatprep.subr.mxu0 0.0
    %1191 = vmatpush1.msra.mxu0 %v74
    %1192 = vmatprep.subr.mxu0 0.0
    %1193 = vmatpush1.msra.mxu0 %v77
    %1194 = vmatprep.subr.mxu0 0.0
    %1195 = vmatpush1.msra.mxu0 %v80
    %1196 = vmatprep.subr.mxu0 0.0
    %1197 = vmatpush1.msra.mxu0 %v83
    %1198 = vmatprep.subr.mxu0 0.0
    %1199 = vmatpush1.msra.mxu0 %v86
    %1200 = vmatprep.subr.mxu0 0.0
    %1201 = vmatpush1.msra.mxu0 %v89
    %1202 = vmatprep.subr.mxu0 0.0
    %1203 = vmatpush1.msra.mxu0 %v92
    %1204 = vmatprep.subr.mxu0 0.0
    %1205 = vmatpush1.msra.mxu0 %v95
    %1206 = vmatprep.subr.mxu0 0.0
    %1207 = vmatpush1.msra.mxu0 0.0
    %1208 = vmatprep.subr.mxu0 0.0
    %1209 = vmatpush1.msra.mxu0 0.0
    %1210 = vmatprep.subr.mxu0 0.0
    %1211 = vmatpush1.msra.mxu0 0.0
    %1212 = vmatprep.subr.mxu0 0.0
    %1213 = vmatpush1.msra.mxu0 0.0
    %1214 = vmatprep.subr.mxu0 0.0
    %1215 = vmatpush1.msra.mxu0 0.0
    %1216 = vmatprep.subr.mxu0 0.0
    %1217 = vmatpush1.msra.mxu0 0.0
    %1218 = vmatprep.subr.mxu0 0.0
    %1219 = vmatpush1.msra.mxu0 0.0
    %1220 = vmatprep.subr.mxu0 0.0
    %1221 = vmatpush1.msra.mxu0 0.0
    %1222 = vmatprep.subr.mxu0 0.0
    %1223 = vmatpush1.msra.mxu0 0.0
    %1224 = vmatprep.subr.mxu0 0.0
    %1225 = vmatpush1.msra.mxu0 0.0
    %1226 = vmatprep.subr.mxu0 0.0
    %1227 = vmatpush1.msra.mxu0 0.0
    %1228 = vmatprep.subr.mxu0 0.0
    %1229 = vmatpush1.msra.mxu0 0.0
    %1230 = vmatprep.subr.mxu0 0.0
    %1231 = vmatpush1.msra.mxu0 0.0
    %1232 = vmatprep.subr.mxu0 0.0
    %1233 = vmatpush1.msra.mxu0 0.0
    %1234 = vmatprep.subr.mxu0 0.0
    %1235 = vmatpush1.msra.mxu0 0.0
    %1236 = vmatprep.subr.mxu0 0.0
    %1237 = vmatpush1.msra.mxu0 0.0
    %1238 = vmatprep.mubr.f32.mxu0 0.0
    %1239 = vmatmul.mubr.f32.gmra.mrb[0].mxu0 %v1098
    %v1240 = vpop.f32.mrb[0].mxu0
    %v1241 = vadd.f32 0.0, %v1240
    %v1242 = vpop.f32.mrb[0].mxu0
    %1243 = vdwg.mxu0
    %v1244 = vadd.f32 %v1100, %v1170
    %v1245 = vxor.u32 %v1244, 2147483648
    %v1246 = vmul.f32 %v1245, 1.442695
    %v1247 = vpow.pop %v1246
    %v1248 = vadd.f32 %v1247, 1.0
    %v1249 = vrcp.pop %v1248
    %v1250 = vmul.f32 1.0, %v1249
    %v1251 = vadd.f32 %v1101, %v1172
    %v1252 = vxor.u32 %v1251, 2147483648
    %v1253 = vmul.f32 %v1252, 1.442695
    %v1254 = vpow.pop %v1253
    %v1255 = vadd.f32 %v1254, 1.0
    %v1256 = vrcp.pop %v1255
    %v1257 = vmul.f32 1.0, %v1256
    %v1258 = vadd.f32 %v1241, %v101
    %v1259 = vmul.f32 %v1250, %v1258
    %v1260 = vadd.f32 %v1102, %v1259
    %v1261 = vtanh.pop %v1260
    %v1262 = vsub.f32 %v1098, %v1261
    %v1263 = vmul.f32 %v1257, %v1262
    %v1264 = vadd.f32 %v1261, %v1263
    %s1265 = scalar_lea.vmem [#allocation2], 168
    %v1266 = vld [vmem:[%s1265] sm:$0xff]
    %v1267 = vld [vmem:[%s1265 + $0x8] sm:$0xff]
    %v1268 = vld [vmem:[%s1265 + $0x10] sm:$0xff]
    %1269 = vmatprep.subr.mxu0 %v49
    %1270 = vmatpush1.msra.mxu0 %v48
    %1271 = vmatprep.subr.mxu0 %v52
    %1272 = vmatpush1.msra.mxu0 %v51
    %1273 = vmatprep.subr.mxu0 %v55
    %1274 = vmatpush1.msra.mxu0 %v54
    %1275 = vmatprep.subr.mxu0 %v58
    %1276 = vmatpush1.msra.mxu0 %v57
    %1277 = vmatprep.subr.mxu0 %v61
    %1278 = vmatpush1.msra.mxu0 %v60
    %1279 = vmatprep.subr.mxu0 %v64
    %1280 = vmatpush1.msra.mxu0 %v63
    %1281 = vmatprep.subr.mxu0 %v67
    %1282 = vmatpush1.msra.mxu0 %v66
    %1283 = vmatprep.subr.mxu0 %v70
    %1284 = vmatpush1.msra.mxu0 %v69
    %1285 = vmatprep.subr.mxu0 %v73
    %1286 = vmatpush1.msra.mxu0 %v72
    %1287 = vmatprep.subr.mxu0 %v76
    %1288 = vmatpush1.msra.mxu0 %v75
    %1289 = vmatprep.subr.mxu0 %v79
    %1290 = vmatpush1.msra.mxu0 %v78
    %1291 = vmatprep.subr.mxu0 %v82
    %1292 = vmatpush1.msra.mxu0 %v81
    %1293 = vmatprep.subr.mxu0 %v85
    %1294 = vmatpush1.msra.mxu0 %v84
    %1295 = vmatprep.subr.mxu0 %v88
    %1296 = vmatpush1.msra.mxu0 %v87
    %1297 = vmatprep.subr.mxu0 %v91
    %1298 = vmatpush1.msra.mxu0 %v90
    %1299 = vmatprep.subr.mxu0 %v94
    %1300 = vmatpush1.msra.mxu0 %v93
    %1301 = vmatprep.subr.mxu0 0.0
    %1302 = vmatpush1.msra.mxu0 0.0
    %1303 = vmatprep.subr.mxu0 0.0
    %1304 = vmatpush1.msra.mxu0 0.0
    %1305 = vmatprep.subr.mxu0 0.0
    %1306 = vmatpush1.msra.mxu0 0.0
    %1307 = vmatprep.subr.mxu0 0.0
    %1308 = vmatpush1.msra.mxu0 0.0
    %1309 = vmatprep.subr.mxu0 0.0
    %1310 = vmatpush1.msra.mxu0 0.0
    %1311 = vmatprep.subr.mxu0 0.0
    %1312 = vmatpush1.msra.mxu0 0.0
    %1313 = vmatprep.subr.mxu0 0.0
    %1314 = vmatpush1.msra.mxu0 0.0
    %1315 = vmatprep.subr.mxu0 0.0
    %1316 = vmatpush1.msra.mxu0 0.0
    %1317 = vmatprep.subr.mxu0 0.0
    %1318 = vmatpush1.msra.mxu0 0.0
    %1319 = vmatprep.subr.mxu0 0.0
    %1320 = vmatpush1.msra.mxu0 0.0
    %1321 = vmatprep.subr.mxu0 0.0
    %1322 = vmatpush1.msra.mxu0 0.0
    %1323 = vmatprep.subr.mxu0 0.0
    %1324 = vmatpush1.msra.mxu0 0.0
    %1325 = vmatprep.subr.mxu0 0.0
    %1326 = vmatpush1.msra.mxu0 0.0
    %1327 = vmatprep.subr.mxu0 0.0
    %1328 = vmatpush1.msra.mxu0 0.0
    %1329 = vmatprep.subr.mxu0 0.0
    %1330 = vmatpush1.msra.mxu0 0.0
    %1331 = vmatprep.subr.mxu0 0.0
    %1332 = vmatpush1.msra.mxu0 0.0
    %1333 = vmatprep.mubr.f32.mxu0 0.0
    %1334 = vmatmul.mubr.f32.gmra.mrb[0].mxu0 %v1264
    %v1335 = vpop.f32.mrb[0].mxu0
    %v1336 = vadd.f32 0.0, %v1335
    %v1337 = vpop.f32.mrb[0].mxu0
    %v1338 = vadd.f32 0.0, %v1337
    %1339 = vdwg.mxu0
    %1340 = vmatprep.subr.mxu0 0.0
    %1341 = vmatpush1.msra.mxu0 %v50
    %1342 = vmatprep.subr.mxu0 0.0
    %1343 = vmatpush1.msra.mxu0 %v53
    %1344 = vmatprep.subr.mxu0 0.0
    %1345 = vmatpush1.msra.mxu0 %v56
    %1346 = vmatprep.subr.mxu0 0.0
    %1347 = vmatpush1.msra.mxu0 %v59
    %1348 = vmatprep.subr.mxu0 0.0
    %1349 = vmatpush1.msra.mxu0 %v62
    %1350 = vmatprep.subr.mxu0 0.0
    %1351 = vmatpush1.msra.mxu0 %v65
    %1352 = vmatprep.subr.mxu0 0.0
    %1353 = vmatpush1.msra.mxu0 %v68
    %1354 = vmatprep.subr.mxu0 0.0
    %1355 = vmatpush1.msra.mxu0 %v71
    %1356 = vmatprep.subr.mxu0 0.0
    %1357 = vmatpush1.msra.mxu0 %v74
    %1358 = vmatprep.subr.mxu0 0.0
    %1359 = vmatpush1.msra.mxu0 %v77
    %1360 = vmatprep.subr.mxu0 0.0
    %1361 = vmatpush1.msra.mxu0 %v80
    %1362 = vmatprep.subr.mxu0 0.0
    %1363 = vmatpush1.msra.mxu0 %v83
    %1364 = vmatprep.subr.mxu0 0.0
    %1365 = vmatpush1.msra.mxu0 %v86
    %1366 = vmatprep.subr.mxu0 0.0
    %1367 = vmatpush1.msra.mxu0 %v89
    %1368 = vmatprep.subr.mxu0 0.0
    %1369 = vmatpush1.msra.mxu0 %v92
    %1370 = vmatprep.subr.mxu0 0.0
    %1371 = vmatpush1.msra.mxu0 %v95
    %1372 = vmatprep.subr.mxu0 0.0
    %1373 = vmatpush1.msra.mxu0 0.0
    %1374 = vmatprep.subr.mxu0 0.0
    %1375 = vmatpush1.msra.mxu0 0.0
    %1376 = vmatprep.subr.mxu0 0.0
    %1377 = vmatpush1.msra.mxu0 0.0
    %1378 = vmatprep.subr.mxu0 0.0
    %1379 = vmatpush1.msra.mxu0 0.0
    %1380 = vmatprep.subr.mxu0 0.0
    %1381 = vmatpush1.msra.mxu0 0.0
    %1382 = vmatprep.subr.mxu0 0.0
    %1383 = vmatpush1.msra.mxu0 0.0
    %1384 = vmatprep.subr.mxu0 0.0
    %1385 = vmatpush1.msra.mxu0 0.0
    %1386 = vmatprep.subr.mxu0 0.0
    %1387 = vmatpush1.msra.mxu0 0.0
    %1388 = vmatprep.subr.mxu0 0.0
    %1389 = vmatpush1.msra.mxu0 0.0
    %1390 = vmatprep.subr.mxu0 0.0
    %1391 = vmatpush1.msra.mxu0 0.0
    %1392 = vmatprep.subr.mxu0 0.0
    %1393 = vmatpush1.msra.mxu0 0.0
    %1394 = vmatprep.subr.mxu0 0.0
    %1395 = vmatpush1.msra.mxu0 0.0
    %1396 = vmatprep.subr.mxu0 0.0
    %1397 = vmatpush1.msra.mxu0 0.0
    %1398 = vmatprep.subr.mxu0 0.0
    %1399 = vmatpush1.msra.mxu0 0.0
    %1400 = vmatprep.subr.mxu0 0.0
    %1401 = vmatpush1.msra.mxu0 0.0
    %1402 = vmatprep.subr.mxu0 0.0
    %1403 = vmatpush1.msra.mxu0 0.0
    %1404 = vmatprep.mubr.f32.mxu0 0.0
    %1405 = vmatmul.mubr.f32.gmra.mrb[0].mxu0 %v1264
    %v1406 = vpop.f32.mrb[0].mxu0
    %v1407 = vadd.f32 0.0, %v1406
    %v1408 = vpop.f32.mrb[0].mxu0
    %1409 = vdwg.mxu0
    %v1410 = vadd.f32 %v1266, %v1336
    %v1411 = vxor.u32 %v1410, 2147483648
    %v1412 = vmul.f32 %v1411, 1.442695
    %v1413 = vpow.pop %v1412
    %v1414 = vadd.f32 %v1413, 1.0
    %v1415 = vrcp.pop %v1414
    %v1416 = vmul.f32 1.0, %v1415
    %v1417 = vadd.f32 %v1267, %v1338
    %v1418 = vxor.u32 %v1417, 2147483648
    %v1419 = vmul.f32 %v1418, 1.442695
    %v1420 = vpow.pop %v1419
    %v1421 = vadd.f32 %v1420, 1.0
    %v1422 = vrcp.pop %v1421
    %v1423 = vmul.f32 1.0, %v1422
    %v1424 = vadd.f32 %v1407, %v101
    %v1425 = vmul.f32 %v1416, %v1424
    %v1426 = vadd.f32 %v1268, %v1425
    %v1427 = vtanh.pop %v1426
    %v1428 = vsub.f32 %v1264, %v1427
    %v1429 = vmul.f32 %v1423, %v1428
    %v1430 = vadd.f32 %v1427, %v1429
    %s1431 = scalar_lea.vmem [#allocation2], 192
    %v1432 = vld [vmem:[%s1431] sm:$0xff]
    %v1433 = vld [vmem:[%s1431 + $0x8] sm:$0xff]
    %v1434 = vld [vmem:[%s1431 + $0x10] sm:$0xff]
    %1435 = vmatprep.subr.mxu0 %v49
    %1436 = vmatpush1.msra.mxu0 %v48
    %1437 = vmatprep.subr.mxu0 %v52
    %1438 = vmatpush1.msra.mxu0 %v51
    %1439 = vmatprep.subr.mxu0 %v55
    %1440 = vmatpush1.msra.mxu0 %v54
    %1441 = vmatprep.subr.mxu0 %v58
    %1442 = vmatpush1.msra.mxu0 %v57
    %1443 = vmatprep.subr.mxu0 %v61
    %1444 = vmatpush1.msra.mxu0 %v60
    %1445 = vmatprep.subr.mxu0 %v64
    %1446 = vmatpush1.msra.mxu0 %v63
    %1447 = vmatprep.subr.mxu0 %v67
    %1448 = vmatpush1.msra.mxu0 %v66
    %1449 = vmatprep.subr.mxu0 %v70
    %1450 = vmatpush1.msra.mxu0 %v69
    %1451 = vmatprep.subr.mxu0 %v73
    %1452 = vmatpush1.msra.mxu0 %v72
    %1453 = vmatprep.subr.mxu0 %v76
    %1454 = vmatpush1.msra.mxu0 %v75
    %1455 = vmatprep.subr.mxu0 %v79
    %1456 = vmatpush1.msra.mxu0 %v78
    %1457 = vmatprep.subr.mxu0 %v82
    %1458 = vmatpush1.msra.mxu0 %v81
    %1459 = vmatprep.subr.mxu0 %v85
    %1460 = vmatpush1.msra.mxu0 %v84
    %1461 = vmatprep.subr.mxu0 %v88
    %1462 = vmatpush1.msra.mxu0 %v87
    %1463 = vmatprep.subr.mxu0 %v91
    %1464 = vmatpush1.msra.mxu0 %v90
    %1465 = vmatprep.subr.mxu0 %v94
    %1466 = vmatpush1.msra.mxu0 %v93
    %1467 = vmatprep.subr.mxu0 0.0
    %1468 = vmatpush1.msra.mxu0 0.0
    %1469 = vmatprep.subr.mxu0 0.0
    %1470 = vmatpush1.msra.mxu0 0.0
    %1471 = vmatprep.subr.mxu0 0.0
    %1472 = vmatpush1.msra.mxu0 0.0
    %1473 = vmatprep.subr.mxu0 0.0
    %1474 = vmatpush1.msra.mxu0 0.0
    %1475 = vmatprep.subr.mxu0 0.0
    %1476 = vmatpush1.msra.mxu0 0.0
    %1477 = vmatprep.subr.mxu0 0.0
    %1478 = vmatpush1.msra.mxu0 0.0
    %1479 = vmatprep.subr.mxu0 0.0
    %1480 = vmatpush1.msra.mxu0 0.0
    %1481 = vmatprep.subr.mxu0 0.0
    %1482 = vmatpush1.msra.mxu0 0.0
    %1483 = vmatprep.subr.mxu0 0.0
    %1484 = vmatpush1.msra.mxu0 0.0
    %1485 = vmatprep.subr.mxu0 0.0
    %1486 = vmatpush1.msra.mxu0 0.0
    %1487 = vmatprep.subr.mxu0 0.0
    %1488 = vmatpush1.msra.mxu0 0.0
    %1489 = vmatprep.subr.mxu0 0.0
    %1490 = vmatpush1.msra.mxu0 0.0
    %1491 = vmatprep.subr.mxu0 0.0
    %1492 = vmatpush1.msra.mxu0 0.0
    %1493 = vmatprep.subr.mxu0 0.0
    %1494 = vmatpush1.msra.mxu0 0.0
    %1495 = vmatprep.subr.mxu0 0.0
    %1496 = vmatpush1.msra.mxu0 0.0
    %1497 = vmatprep.subr.mxu0 0.0
    %1498 = vmatpush1.msra.mxu0 0.0
    %1499 = vmatprep.mubr.f32.mxu0 0.0
    %1500 = vmatmul.mubr.f32.gmra.mrb[0].mxu0 %v1430
    %v1501 = vpop.f32.mrb[0].mxu0
    %v1502 = vadd.f32 0.0, %v1501
    %v1503 = vpop.f32.mrb[0].mxu0
    %v1504 = vadd.f32 0.0, %v1503
    %1505 = vdwg.mxu0
    %1506 = vmatprep.subr.mxu0 0.0
    %1507 = vmatpush1.msra.mxu0 %v50
    %1508 = vmatprep.subr.mxu0 0.0
    %1509 = vmatpush1.msra.mxu0 %v53
    %1510 = vmatprep.subr.mxu0 0.0
    %1511 = vmatpush1.msra.mxu0 %v56
    %1512 = vmatprep.subr.mxu0 0.0
    %1513 = vmatpush1.msra.mxu0 %v59
    %1514 = vmatprep.subr.mxu0 0.0
    %1515 = vmatpush1.msra.mxu0 %v62
    %1516 = vmatprep.subr.mxu0 0.0
    %1517 = vmatpush1.msra.mxu0 %v65
    %1518 = vmatprep.subr.mxu0 0.0
    %1519 = vmatpush1.msra.mxu0 %v68
    %1520 = vmatprep.subr.mxu0 0.0
    %1521 = vmatpush1.msra.mxu0 %v71
    %1522 = vmatprep.subr.mxu0 0.0
    %1523 = vmatpush1.msra.mxu0 %v74
    %1524 = vmatprep.subr.mxu0 0.0
    %1525 = vmatpush1.msra.mxu0 %v77
    %1526 = vmatprep.subr.mxu0 0.0
    %1527 = vmatpush1.msra.mxu0 %v80
    %1528 = vmatprep.subr.mxu0 0.0
    %1529 = vmatpush1.msra.mxu0 %v83
    %1530 = vmatprep.subr.mxu0 0.0
    %1531 = vmatpush1.msra.mxu0 %v86
    %1532 = vmatprep.subr.mxu0 0.0
    %1533 = vmatpush1.msra.mxu0 %v89
    %1534 = vmatprep.subr.mxu0 0.0
    %1535 = vmatpush1.msra.mxu0 %v92
    %1536 = vmatprep.subr.mxu0 0.0
    %1537 = vmatpush1.msra.mxu0 %v95
    %1538 = vmatprep.subr.mxu0 0.0
    %1539 = vmatpush1.msra.mxu0 0.0
    %1540 = vmatprep.subr.mxu0 0.0
    %1541 = vmatpush1.msra.mxu0 0.0
    %1542 = vmatprep.subr.mxu0 0.0
    %1543 = vmatpush1.msra.mxu0 0.0
    %1544 = vmatprep.subr.mxu0 0.0
    %1545 = vmatpush1.msra.mxu0 0.0
    %1546 = vmatprep.subr.mxu0 0.0
    %1547 = vmatpush1.msra.mxu0 0.0
    %1548 = vmatprep.subr.mxu0 0.0
    %1549 = vmatpush1.msra.mxu0 0.0
    %1550 = vmatprep.subr.mxu0 0.0
    %1551 = vmatpush1.msra.mxu0 0.0
    %1552 = vmatprep.subr.mxu0 0.0
    %1553 = vmatpush1.msra.mxu0 0.0
    %1554 = vmatprep.subr.mxu0 0.0
    %1555 = vmatpush1.msra.mxu0 0.0
    %1556 = vmatprep.subr.mxu0 0.0
    %1557 = vmatpush1.msra.mxu0 0.0
    %1558 = vmatprep.subr.mxu0 0.0
    %1559 = vmatpush1.msra.mxu0 0.0
    %1560 = vmatprep.subr.mxu0 0.0
    %1561 = vmatpush1.msra.mxu0 0.0
    %1562 = vmatprep.subr.mxu0 0.0
    %1563 = vmatpush1.msra.mxu0 0.0
    %1564 = vmatprep.subr.mxu0 0.0
    %1565 = vmatpush1.msra.mxu0 0.0
    %1566 = vmatprep.subr.mxu0 0.0
    %1567 = vmatpush1.msra.mxu0 0.0
    %1568 = vmatprep.subr.mxu0 0.0
    %1569 = vmatpush1.msra.mxu0 0.0
    %1570 = vmatprep.mubr.f32.mxu0 0.0
    %1571 = vmatmul.mubr.f32.gmra.mrb[0].mxu0 %v1430
    %v1572 = vpop.f32.mrb[0].mxu0
    %v1573 = vadd.f32 0.0, %v1572
    %v1574 = vpop.f32.mrb[0].mxu0
    %1575 = vdwg.mxu0
    %v1576 = vadd.f32 %v1432, %v1502
    %v1577 = vxor.u32 %v1576, 2147483648
    %v1578 = vmul.f32 %v1577, 1.442695
    %v1579 = vpow.pop %v1578
    %v1580 = vadd.f32 %v1579, 1.0
    %v1581 = vrcp.pop %v1580
    %v1582 = vmul.f32 1.0, %v1581
    %v1583 = vadd.f32 %v1433, %v1504
    %v1584 = vxor.u32 %v1583, 2147483648
    %v1585 = vmul.f32 %v1584, 1.442695
    %v1586 = vpow.pop %v1585
    %v1587 = vadd.f32 %v1586, 1.0
    %v1588 = vrcp.pop %v1587
    %v1589 = vmul.f32 1.0, %v1588
    %v1590 = vadd.f32 %v1573, %v101
    %v1591 = vmul.f32 %v1582, %v1590
    %v1592 = vadd.f32 %v1434, %v1591
    %v1593 = vtanh.pop %v1592
    %v1594 = vsub.f32 %v1430, %v1593
    %v1595 = vmul.f32 %v1589, %v1594
    %v1596 = vadd.f32 %v1593, %v1595
    %s1597 = scalar_lea.vmem [#allocation2], 216
    %v1598 = vld [vmem:[%s1597] sm:$0xff]
    %v1599 = vld [vmem:[%s1597 + $0x8] sm:$0xff]
    %v1600 = vld [vmem:[%s1597 + $0x10] sm:$0xff]
    %1601 = vmatprep.subr.mxu0 %v49
    %1602 = vmatpush1.msra.mxu0 %v48
    %1603 = vmatprep.subr.mxu0 %v52
    %1604 = vmatpush1.msra.mxu0 %v51
    %1605 = vmatprep.subr.mxu0 %v55
    %1606 = vmatpush1.msra.mxu0 %v54
    %1607 = vmatprep.subr.mxu0 %v58
    %1608 = vmatpush1.msra.mxu0 %v57
    %1609 = vmatprep.subr.mxu0 %v61
    %1610 = vmatpush1.msra.mxu0 %v60
    %1611 = vmatprep.subr.mxu0 %v64
    %1612 = vmatpush1.msra.mxu0 %v63
    %1613 = vmatprep.subr.mxu0 %v67
    %1614 = vmatpush1.msra.mxu0 %v66
    %1615 = vmatprep.subr.mxu0 %v70
    %1616 = vmatpush1.msra.mxu0 %v69
    %1617 = vmatprep.subr.mxu0 %v73
    %1618 = vmatpush1.msra.mxu0 %v72
    %1619 = vmatprep.subr.mxu0 %v76
    %1620 = vmatpush1.msra.mxu0 %v75
    %1621 = vmatprep.subr.mxu0 %v79
    %1622 = vmatpush1.msra.mxu0 %v78
    %1623 = vmatprep.subr.mxu0 %v82
    %1624 = vmatpush1.msra.mxu0 %v81
    %1625 = vmatprep.subr.mxu0 %v85
    %1626 = vmatpush1.msra.mxu0 %v84
    %1627 = vmatprep.subr.mxu0 %v88
    %1628 = vmatpush1.msra.mxu0 %v87
    %1629 = vmatprep.subr.mxu0 %v91
    %1630 = vmatpush1.msra.mxu0 %v90
    %1631 = vmatprep.subr.mxu0 %v94
    %1632 = vmatpush1.msra.mxu0 %v93
    %1633 = vmatprep.subr.mxu0 0.0
    %1634 = vmatpush1.msra.mxu0 0.0
    %1635 = vmatprep.subr.mxu0 0.0
    %1636 = vmatpush1.msra.mxu0 0.0
    %1637 = vmatprep.subr.mxu0 0.0
    %1638 = vmatpush1.msra.mxu0 0.0
    %1639 = vmatprep.subr.mxu0 0.0
    %1640 = vmatpush1.msra.mxu0 0.0
    %1641 = vmatprep.subr.mxu0 0.0
    %1642 = vmatpush1.msra.mxu0 0.0
    %1643 = vmatprep.subr.mxu0 0.0
    %1644 = vmatpush1.msra.mxu0 0.0
    %1645 = vmatprep.subr.mxu0 0.0
    %1646 = vmatpush1.msra.mxu0 0.0
    %1647 = vmatprep.subr.mxu0 0.0
    %1648 = vmatpush1.msra.mxu0 0.0
    %1649 = vmatprep.subr.mxu0 0.0
    %1650 = vmatpush1.msra.mxu0 0.0
    %1651 = vmatprep.subr.mxu0 0.0
    %1652 = vmatpush1.msra.mxu0 0.0
    %1653 = vmatprep.subr.mxu0 0.0
    %1654 = vmatpush1.msra.mxu0 0.0
    %1655 = vmatprep.subr.mxu0 0.0
    %1656 = vmatpush1.msra.mxu0 0.0
    %1657 = vmatprep.subr.mxu0 0.0
    %1658 = vmatpush1.msra.mxu0 0.0
    %1659 = vmatprep.subr.mxu0 0.0
    %1660 = vmatpush1.msra.mxu0 0.0
    %1661 = vmatprep.subr.mxu0 0.0
    %1662 = vmatpush1.msra.mxu0 0.0
    %1663 = vmatprep.subr.mxu0 0.0
    %1664 = vmatpush1.msra.mxu0 0.0
    %1665 = vmatprep.mubr.f32.mxu0 0.0
    %1666 = vmatmul.mubr.f32.gmra.mrb[0].mxu0 %v1596
    %v1667 = vpop.f32.mrb[0].mxu0
    %v1668 = vadd.f32 0.0, %v1667
    %v1669 = vpop.f32.mrb[0].mxu0
    %v1670 = vadd.f32 0.0, %v1669
    %1671 = vdwg.mxu0
    %1672 = vmatprep.subr.mxu0 0.0
    %1673 = vmatpush1.msra.mxu0 %v50
    %1674 = vmatprep.subr.mxu0 0.0
    %1675 = vmatpush1.msra.mxu0 %v53
    %1676 = vmatprep.subr.mxu0 0.0
    %1677 = vmatpush1.msra.mxu0 %v56
    %1678 = vmatprep.subr.mxu0 0.0
    %1679 = vmatpush1.msra.mxu0 %v59
    %1680 = vmatprep.subr.mxu0 0.0
    %1681 = vmatpush1.msra.mxu0 %v62
    %1682 = vmatprep.subr.mxu0 0.0
    %1683 = vmatpush1.msra.mxu0 %v65
    %1684 = vmatprep.subr.mxu0 0.0
    %1685 = vmatpush1.msra.mxu0 %v68
    %1686 = vmatprep.subr.mxu0 0.0
    %1687 = vmatpush1.msra.mxu0 %v71
    %1688 = vmatprep.subr.mxu0 0.0
    %1689 = vmatpush1.msra.mxu0 %v74
    %1690 = vmatprep.subr.mxu0 0.0
    %1691 = vmatpush1.msra.mxu0 %v77
    %1692 = vmatprep.subr.mxu0 0.0
    %1693 = vmatpush1.msra.mxu0 %v80
    %1694 = vmatprep.subr.mxu0 0.0
    %1695 = vmatpush1.msra.mxu0 %v83
    %1696 = vmatprep.subr.mxu0 0.0
    %1697 = vmatpush1.msra.mxu0 %v86
    %1698 = vmatprep.subr.mxu0 0.0
    %1699 = vmatpush1.msra.mxu0 %v89
    %1700 = vmatprep.subr.mxu0 0.0
    %1701 = vmatpush1.msra.mxu0 %v92
    %1702 = vmatprep.subr.mxu0 0.0
    %1703 = vmatpush1.msra.mxu0 %v95
    %1704 = vmatprep.subr.mxu0 0.0
    %1705 = vmatpush1.msra.mxu0 0.0
    %1706 = vmatprep.subr.mxu0 0.0
    %1707 = vmatpush1.msra.mxu0 0.0
    %1708 = vmatprep.subr.mxu0 0.0
    %1709 = vmatpush1.msra.mxu0 0.0
    %1710 = vmatprep.subr.mxu0 0.0
    %1711 = vmatpush1.msra.mxu0 0.0
    %1712 = vmatprep.subr.mxu0 0.0
    %1713 = vmatpush1.msra.mxu0 0.0
    %1714 = vmatprep.subr.mxu0 0.0
    %1715 = vmatpush1.msra.mxu0 0.0
    %1716 = vmatprep.subr.mxu0 0.0
    %1717 = vmatpush1.msra.mxu0 0.0
    %1718 = vmatprep.subr.mxu0 0.0
    %1719 = vmatpush1.msra.mxu0 0.0
    %1720 = vmatprep.subr.mxu0 0.0
    %1721 = vmatpush1.msra.mxu0 0.0
    %1722 = vmatprep.subr.mxu0 0.0
    %1723 = vmatpush1.msra.mxu0 0.0
    %1724 = vmatprep.subr.mxu0 0.0
    %1725 = vmatpush1.msra.mxu0 0.0
    %1726 = vmatprep.subr.mxu0 0.0
    %1727 = vmatpush1.msra.mxu0 0.0
    %1728 = vmatprep.subr.mxu0 0.0
    %1729 = vmatpush1.msra.mxu0 0.0
    %1730 = vmatprep.subr.mxu0 0.0
    %1731 = vmatpush1.msra.mxu0 0.0
    %1732 = vmatprep.subr.mxu0 0.0
    %1733 = vmatpush1.msra.mxu0 0.0
    %1734 = vmatprep.subr.mxu0 0.0
    %1735 = vmatpush1.msra.mxu0 0.0
    %1736 = vmatprep.mubr.f32.mxu0 0.0
    %1737 = vmatmul.mubr.f32.gmra.mrb[0].mxu0 %v1596
    %v1738 = vpop.f32.mrb[0].mxu0
    %v1739 = vadd.f32 0.0, %v1738
    %v1740 = vpop.f32.mrb[0].mxu0
    %1741 = vdwg.mxu0
    %v1742 = vadd.f32 %v1598, %v1668
    %v1743 = vxor.u32 %v1742, 2147483648
    %v1744 = vmul.f32 %v1743, 1.442695
    %v1745 = vpow.pop %v1744
    %v1746 = vadd.f32 %v1745, 1.0
    %v1747 = vrcp.pop %v1746
    %v1748 = vmul.f32 1.0, %v1747
    %v1749 = vadd.f32 %v1599, %v1670
    %v1750 = vxor.u32 %v1749, 2147483648
    %v1751 = vmul.f32 %v1750, 1.442695
    %v1752 = vpow.pop %v1751
    %v1753 = vadd.f32 %v1752, 1.0
    %v1754 = vrcp.pop %v1753
    %v1755 = vmul.f32 1.0, %v1754
    %v1756 = vadd.f32 %v1739, %v101
    %v1757 = vmul.f32 %v1748, %v1756
    %v1758 = vadd.f32 %v1600, %v1757
    %v1759 = vtanh.pop %v1758
    %v1760 = vsub.f32 %v1596, %v1759
    %v1761 = vmul.f32 %v1755, %v1760
    %v1762 = vadd.f32 %v1759, %v1761
    %s1763 = scalar_lea.vmem [#allocation2], 240
    %v1764 = vld [vmem:[%s1763] sm:$0xff]
    %v1765 = vld [vmem:[%s1763 + $0x8] sm:$0xff]
    %v1766 = vld [vmem:[%s1763 + $0x10] sm:$0xff]
    %1767 = vmatprep.subr.mxu0 %v49
    %1768 = vmatpush1.msra.mxu0 %v48
    %1769 = vmatprep.subr.mxu0 %v52
    %1770 = vmatpush1.msra.mxu0 %v51
    %1771 = vmatprep.subr.mxu0 %v55
    %1772 = vmatpush1.msra.mxu0 %v54
    %1773 = vmatprep.subr.mxu0 %v58
    %1774 = vmatpush1.msra.mxu0 %v57
    %1775 = vmatprep.subr.mxu0 %v61
    %1776 = vmatpush1.msra.mxu0 %v60
    %1777 = vmatprep.subr.mxu0 %v64
    %1778 = vmatpush1.msra.mxu0 %v63
    %1779 = vmatprep.subr.mxu0 %v67
    %1780 = vmatpush1.msra.mxu0 %v66
    %1781 = vmatprep.subr.mxu0 %v70
    %1782 = vmatpush1.msra.mxu0 %v69
    %1783 = vmatprep.subr.mxu0 %v73
    %1784 = vmatpush1.msra.mxu0 %v72
    %1785 = vmatprep.subr.mxu0 %v76
    %1786 = vmatpush1.msra.mxu0 %v75
    %1787 = vmatprep.subr.mxu0 %v79
    %1788 = vmatpush1.msra.mxu0 %v78
    %1789 = vmatprep.subr.mxu0 %v82
    %1790 = vmatpush1.msra.mxu0 %v81
    %1791 = vmatprep.subr.mxu0 %v85
    %1792 = vmatpush1.msra.mxu0 %v84
    %1793 = vmatprep.subr.mxu0 %v88
    %1794 = vmatpush1.msra.mxu0 %v87
    %1795 = vmatprep.subr.mxu0 %v91
    %1796 = vmatpush1.msra.mxu0 %v90
    %1797 = vmatprep.subr.mxu0 %v94
    %1798 = vmatpush1.msra.mxu0 %v93
    %1799 = vmatprep.subr.mxu0 0.0
    %1800 = vmatpush1.msra.mxu0 0.0
    %1801 = vmatprep.subr.mxu0 0.0
    %1802 = vmatpush1.msra.mxu0 0.0
    %1803 = vmatprep.subr.mxu0 0.0
    %1804 = vmatpush1.msra.mxu0 0.0
    %1805 = vmatprep.subr.mxu0 0.0
    %1806 = vmatpush1.msra.mxu0 0.0
    %1807 = vmatprep.subr.mxu0 0.0
    %1808 = vmatpush1.msra.mxu0 0.0
    %1809 = vmatprep.subr.mxu0 0.0
    %1810 = vmatpush1.msra.mxu0 0.0
    %1811 = vmatprep.subr.mxu0 0.0
    %1812 = vmatpush1.msra.mxu0 0.0
    %1813 = vmatprep.subr.mxu0 0.0
    %1814 = vmatpush1.msra.mxu0 0.0
    %1815 = vmatprep.subr.mxu0 0.0
    %1816 = vmatpush1.msra.mxu0 0.0
    %1817 = vmatprep.subr.mxu0 0.0
    %1818 = vmatpush1.msra.mxu0 0.0
    %1819 = vmatprep.subr.mxu0 0.0
    %1820 = vmatpush1.msra.mxu0 0.0
    %1821 = vmatprep.subr.mxu0 0.0
    %1822 = vmatpush1.msra.mxu0 0.0
    %1823 = vmatprep.subr.mxu0 0.0
    %1824 = vmatpush1.msra.mxu0 0.0
    %1825 = vmatprep.subr.mxu0 0.0
    %1826 = vmatpush1.msra.mxu0 0.0
    %1827 = vmatprep.subr.mxu0 0.0
    %1828 = vmatpush1.msra.mxu0 0.0
    %1829 = vmatprep.subr.mxu0 0.0
    %1830 = vmatpush1.msra.mxu0 0.0
    %1831 = vmatprep.mubr.f32.mxu0 0.0
    %1832 = vmatmul.mubr.f32.gmra.mrb[0].mxu0 %v1762
    %v1833 = vpop.f32.mrb[0].mxu0
    %v1834 = vadd.f32 0.0, %v1833
    %v1835 = vpop.f32.mrb[0].mxu0
    %v1836 = vadd.f32 0.0, %v1835
    %1837 = vdwg.mxu0
    %1838 = vmatprep.subr.mxu0 0.0
    %1839 = vmatpush1.msra.mxu0 %v50
    %1840 = vmatprep.subr.mxu0 0.0
    %1841 = vmatpush1.msra.mxu0 %v53
    %1842 = vmatprep.subr.mxu0 0.0
    %1843 = vmatpush1.msra.mxu0 %v56
    %1844 = vmatprep.subr.mxu0 0.0
    %1845 = vmatpush1.msra.mxu0 %v59
    %1846 = vmatprep.subr.mxu0 0.0
    %1847 = vmatpush1.msra.mxu0 %v62
    %1848 = vmatprep.subr.mxu0 0.0
    %1849 = vmatpush1.msra.mxu0 %v65
    %1850 = vmatprep.subr.mxu0 0.0
    %1851 = vmatpush1.msra.mxu0 %v68
    %1852 = vmatprep.subr.mxu0 0.0
    %1853 = vmatpush1.msra.mxu0 %v71
    %1854 = vmatprep.subr.mxu0 0.0
    %1855 = vmatpush1.msra.mxu0 %v74
    %1856 = vmatprep.subr.mxu0 0.0
    %1857 = vmatpush1.msra.mxu0 %v77
    %1858 = vmatprep.subr.mxu0 0.0
    %1859 = vmatpush1.msra.mxu0 %v80
    %1860 = vmatprep.subr.mxu0 0.0
    %1861 = vmatpush1.msra.mxu0 %v83
    %1862 = vmatprep.subr.mxu0 0.0
    %1863 = vmatpush1.msra.mxu0 %v86
    %1864 = vmatprep.subr.mxu0 0.0
    %1865 = vmatpush1.msra.mxu0 %v89
    %1866 = vmatprep.subr.mxu0 0.0
    %1867 = vmatpush1.msra.mxu0 %v92
    %1868 = vmatprep.subr.mxu0 0.0
    %1869 = vmatpush1.msra.mxu0 %v95
    %1870 = vmatprep.subr.mxu0 0.0
    %1871 = vmatpush1.msra.mxu0 0.0
    %1872 = vmatprep.subr.mxu0 0.0
    %1873 = vmatpush1.msra.mxu0 0.0
    %1874 = vmatprep.subr.mxu0 0.0
    %1875 = vmatpush1.msra.mxu0 0.0
    %1876 = vmatprep.subr.mxu0 0.0
    %1877 = vmatpush1.msra.mxu0 0.0
    %1878 = vmatprep.subr.mxu0 0.0
    %1879 = vmatpush1.msra.mxu0 0.0
    %1880 = vmatprep.subr.mxu0 0.0
    %1881 = vmatpush1.msra.mxu0 0.0
    %1882 = vmatprep.subr.mxu0 0.0
    %1883 = vmatpush1.msra.mxu0 0.0
    %1884 = vmatprep.subr.mxu0 0.0
    %1885 = vmatpush1.msra.mxu0 0.0
    %1886 = vmatprep.subr.mxu0 0.0
    %1887 = vmatpush1.msra.mxu0 0.0
    %1888 = vmatprep.subr.mxu0 0.0
    %1889 = vmatpush1.msra.mxu0 0.0
    %1890 = vmatprep.subr.mxu0 0.0
    %1891 = vmatpush1.msra.mxu0 0.0
    %1892 = vmatprep.subr.mxu0 0.0
    %1893 = vmatpush1.msra.mxu0 0.0
    %1894 = vmatprep.subr.mxu0 0.0
    %1895 = vmatpush1.msra.mxu0 0.0
    %1896 = vmatprep.subr.mxu0 0.0
    %1897 = vmatpush1.msra.mxu0 0.0
    %1898 = vmatprep.subr.mxu0 0.0
    %1899 = vmatpush1.msra.mxu0 0.0
    %1900 = vmatprep.subr.mxu0 0.0
    %1901 = vmatpush1.msra.mxu0 0.0
    %1902 = vmatprep.mubr.f32.mxu0 0.0
    %1903 = vmatmul.mubr.f32.gmra.mrb[0].mxu0 %v1762
    %v1904 = vpop.f32.mrb[0].mxu0
    %v1905 = vadd.f32 0.0, %v1904
    %v1906 = vpop.f32.mrb[0].mxu0
    %1907 = vdwg.mxu0
    %v1908 = vadd.f32 %v1764, %v1834
    %v1909 = vxor.u32 %v1908, 2147483648
    %v1910 = vmul.f32 %v1909, 1.442695
    %v1911 = vpow.pop %v1910
    %v1912 = vadd.f32 %v1911, 1.0
    %v1913 = vrcp.pop %v1912
    %v1914 = vmul.f32 1.0, %v1913
    %v1915 = vadd.f32 %v1765, %v1836
    %v1916 = vxor.u32 %v1915, 2147483648
    %v1917 = vmul.f32 %v1916, 1.442695
    %v1918 = vpow.pop %v1917
    %v1919 = vadd.f32 %v1918, 1.0
    %v1920 = vrcp.pop %v1919
    %v1921 = vmul.f32 1.0, %v1920
    %v1922 = vadd.f32 %v1905, %v101
    %v1923 = vmul.f32 %v1914, %v1922
    %v1924 = vadd.f32 %v1766, %v1923
    %v1925 = vtanh.pop %v1924
    %v1926 = vsub.f32 %v1762, %v1925
    %v1927 = vmul.f32 %v1921, %v1926
    %v1928 = vadd.f32 %v1925, %v1927
    %s1929 = scalar_lea.vmem [#allocation2], 264
    %v1930 = vld [vmem:[%s1929] sm:$0xff]
    %v1931 = vld [vmem:[%s1929 + $0x8] sm:$0xff]
    %v1932 = vld [vmem:[%s1929 + $0x10] sm:$0xff]
    %1933 = vmatprep.subr.mxu0 %v49
    %1934 = vmatpush1.msra.mxu0 %v48
    %1935 = vmatprep.subr.mxu0 %v52
    %1936 = vmatpush1.msra.mxu0 %v51
    %1937 = vmatprep.subr.mxu0 %v55
    %1938 = vmatpush1.msra.mxu0 %v54
    %1939 = vmatprep.subr.mxu0 %v58
    %1940 = vmatpush1.msra.mxu0 %v57
    %1941 = vmatprep.subr.mxu0 %v61
    %1942 = vmatpush1.msra.mxu0 %v60
    %1943 = vmatprep.subr.mxu0 %v64
    %1944 = vmatpush1.msra.mxu0 %v63
    %1945 = vmatprep.subr.mxu0 %v67
    %1946 = vmatpush1.msra.mxu0 %v66
    %1947 = vmatprep.subr.mxu0 %v70
    %1948 = vmatpush1.msra.mxu0 %v69
    %1949 = vmatprep.subr.mxu0 %v73
    %1950 = vmatpush1.msra.mxu0 %v72
    %1951 = vmatprep.subr.mxu0 %v76
    %1952 = vmatpush1.msra.mxu0 %v75
    %1953 = vmatprep.subr.mxu0 %v79
    %1954 = vmatpush1.msra.mxu0 %v78
    %1955 = vmatprep.subr.mxu0 %v82
    %1956 = vmatpush1.msra.mxu0 %v81
    %1957 = vmatprep.subr.mxu0 %v85
    %1958 = vmatpush1.msra.mxu0 %v84
    %1959 = vmatprep.subr.mxu0 %v88
    %1960 = vmatpush1.msra.mxu0 %v87
    %1961 = vmatprep.subr.mxu0 %v91
    %1962 = vmatpush1.msra.mxu0 %v90
    %1963 = vmatprep.subr.mxu0 %v94
    %1964 = vmatpush1.msra.mxu0 %v93
    %1965 = vmatprep.subr.mxu0 0.0
    %1966 = vmatpush1.msra.mxu0 0.0
    %1967 = vmatprep.subr.mxu0 0.0
    %1968 = vmatpush1.msra.mxu0 0.0
    %1969 = vmatprep.subr.mxu0 0.0
    %1970 = vmatpush1.msra.mxu0 0.0
    %1971 = vmatprep.subr.mxu0 0.0
    %1972 = vmatpush1.msra.mxu0 0.0
    %1973 = vmatprep.subr.mxu0 0.0
    %1974 = vmatpush1.msra.mxu0 0.0
    %1975 = vmatprep.subr.mxu0 0.0
    %1976 = vmatpush1.msra.mxu0 0.0
    %1977 = vmatprep.subr.mxu0 0.0
    %1978 = vmatpush1.msra.mxu0 0.0
    %1979 = vmatprep.subr.mxu0 0.0
    %1980 = vmatpush1.msra.mxu0 0.0
    %1981 = vmatprep.subr.mxu0 0.0
    %1982 = vmatpush1.msra.mxu0 0.0
    %1983 = vmatprep.subr.mxu0 0.0
    %1984 = vmatpush1.msra.mxu0 0.0
    %1985 = vmatprep.subr.mxu0 0.0
    %1986 = vmatpush1.msra.mxu0 0.0
    %1987 = vmatprep.subr.mxu0 0.0
    %1988 = vmatpush1.msra.mxu0 0.0
    %1989 = vmatprep.subr.mxu0 0.0
    %1990 = vmatpush1.msra.mxu0 0.0
    %1991 = vmatprep.subr.mxu0 0.0
    %1992 = vmatpush1.msra.mxu0 0.0
    %1993 = vmatprep.subr.mxu0 0.0
    %1994 = vmatpush1.msra.mxu0 0.0
    %1995 = vmatprep.subr.mxu0 0.0
    %1996 = vmatpush1.msra.mxu0 0.0
    %1997 = vmatprep.mubr.f32.mxu0 0.0
    %1998 = vmatmul.mubr.f32.gmra.mrb[0].mxu0 %v1928
    %v1999 = vpop.f32.mrb[0].mxu0
    %v2000 = vadd.f32 0.0, %v1999
    %v2001 = vpop.f32.mrb[0].mxu0
    %v2002 = vadd.f32 0.0, %v2001
    %2003 = vdwg.mxu0
    %2004 = vmatprep.subr.mxu0 0.0
    %2005 = vmatpush1.msra.mxu0 %v50
    %2006 = vmatprep.subr.mxu0 0.0
    %2007 = vmatpush1.msra.mxu0 %v53
    %2008 = vmatprep.subr.mxu0 0.0
    %2009 = vmatpush1.msra.mxu0 %v56
    %2010 = vmatprep.subr.mxu0 0.0
    %2011 = vmatpush1.msra.mxu0 %v59
    %2012 = vmatprep.subr.mxu0 0.0
    %2013 = vmatpush1.msra.mxu0 %v62
    %2014 = vmatprep.subr.mxu0 0.0
    %2015 = vmatpush1.msra.mxu0 %v65
    %2016 = vmatprep.subr.mxu0 0.0
    %2017 = vmatpush1.msra.mxu0 %v68
    %2018 = vmatprep.subr.mxu0 0.0
    %2019 = vmatpush1.msra.mxu0 %v71
    %2020 = vmatprep.subr.mxu0 0.0
    %2021 = vmatpush1.msra.mxu0 %v74
    %2022 = vmatprep.subr.mxu0 0.0
    %2023 = vmatpush1.msra.mxu0 %v77
    %2024 = vmatprep.subr.mxu0 0.0
    %2025 = vmatpush1.msra.mxu0 %v80
    %2026 = vmatprep.subr.mxu0 0.0
    %2027 = vmatpush1.msra.mxu0 %v83
    %2028 = vmatprep.subr.mxu0 0.0
    %2029 = vmatpush1.msra.mxu0 %v86
    %2030 = vmatprep.subr.mxu0 0.0
    %2031 = vmatpush1.msra.mxu0 %v89
    %2032 = vmatprep.subr.mxu0 0.0
    %2033 = vmatpush1.msra.mxu0 %v92
    %2034 = vmatprep.subr.mxu0 0.0
    %2035 = vmatpush1.msra.mxu0 %v95
    %2036 = vmatprep.subr.mxu0 0.0
    %2037 = vmatpush1.msra.mxu0 0.0
    %2038 = vmatprep.subr.mxu0 0.0
    %2039 = vmatpush1.msra.mxu0 0.0
    %2040 = vmatprep.subr.mxu0 0.0
    %2041 = vmatpush1.msra.mxu0 0.0
    %2042 = vmatprep.subr.mxu0 0.0
    %2043 = vmatpush1.msra.mxu0 0.0
    %2044 = vmatprep.subr.mxu0 0.0
    %2045 = vmatpush1.msra.mxu0 0.0
    %2046 = vmatprep.subr.mxu0 0.0
    %2047 = vmatpush1.msra.mxu0 0.0
    %2048 = vmatprep.subr.mxu0 0.0
    %2049 = vmatpush1.msra.mxu0 0.0
    %2050 = vmatprep.subr.mxu0 0.0
    %2051 = vmatpush1.msra.mxu0 0.0
    %2052 = vmatprep.subr.mxu0 0.0
    %2053 = vmatpush1.msra.mxu0 0.0
    %2054 = vmatprep.subr.mxu0 0.0
    %2055 = vmatpush1.msra.mxu0 0.0
    %2056 = vmatprep.subr.mxu0 0.0
    %2057 = vmatpush1.msra.mxu0 0.0
    %2058 = vmatprep.subr.mxu0 0.0
    %2059 = vmatpush1.msra.mxu0 0.0
    %2060 = vmatprep.subr.mxu0 0.0
    %2061 = vmatpush1.msra.mxu0 0.0
    %2062 = vmatprep.subr.mxu0 0.0
    %2063 = vmatpush1.msra.mxu0 0.0
    %2064 = vmatprep.subr.mxu0 0.0
    %2065 = vmatpush1.msra.mxu0 0.0
    %2066 = vmatprep.subr.mxu0 0.0
    %2067 = vmatpush1.msra.mxu0 0.0
    %2068 = vmatprep.mubr.f32.mxu0 0.0
    %2069 = vmatmul.mubr.f32.gmra.mrb[0].mxu0 %v1928
    %v2070 = vpop.f32.mrb[0].mxu0
    %v2071 = vadd.f32 0.0, %v2070
    %v2072 = vpop.f32.mrb[0].mxu0
    %2073 = vdwg.mxu0
    %v2074 = vadd.f32 %v1930, %v2000
    %v2075 = vxor.u32 %v2074, 2147483648
    %v2076 = vmul.f32 %v2075, 1.442695
    %v2077 = vpow.pop %v2076
    %v2078 = vadd.f32 %v2077, 1.0
    %v2079 = vrcp.pop %v2078
    %v2080 = vmul.f32 1.0, %v2079
    %v2081 = vadd.f32 %v1931, %v2002
    %v2082 = vxor.u32 %v2081, 2147483648
    %v2083 = vmul.f32 %v2082, 1.442695
    %v2084 = vpow.pop %v2083
    %v2085 = vadd.f32 %v2084, 1.0
    %v2086 = vrcp.pop %v2085
    %v2087 = vmul.f32 1.0, %v2086
    %v2088 = vadd.f32 %v2071, %v101
    %v2089 = vmul.f32 %v2080, %v2088
    %v2090 = vadd.f32 %v1932, %v2089
    %v2091 = vtanh.pop %v2090
    %v2092 = vsub.f32 %v1928, %v2091
    %v2093 = vmul.f32 %v2087, %v2092
    %v2094 = vadd.f32 %v2091, %v2093
    %s2095 = scalar_lea.vmem [#allocation2], 288
    %v2096 = vld [vmem:[%s2095] sm:$0xff]
    %v2097 = vld [vmem:[%s2095 + $0x8] sm:$0xff]
    %v2098 = vld [vmem:[%s2095 + $0x10] sm:$0xff]
    %2099 = vmatprep.subr.mxu0 %v49
    %2100 = vmatpush1.msra.mxu0 %v48
    %2101 = vmatprep.subr.mxu0 %v52
    %2102 = vmatpush1.msra.mxu0 %v51
    %2103 = vmatprep.subr.mxu0 %v55
    %2104 = vmatpush1.msra.mxu0 %v54
    %2105 = vmatprep.subr.mxu0 %v58
    %2106 = vmatpush1.msra.mxu0 %v57
    %2107 = vmatprep.subr.mxu0 %v61
    %2108 = vmatpush1.msra.mxu0 %v60
    %2109 = vmatprep.subr.mxu0 %v64
    %2110 = vmatpush1.msra.mxu0 %v63
    %2111 = vmatprep.subr.mxu0 %v67
    %2112 = vmatpush1.msra.mxu0 %v66
    %2113 = vmatprep.subr.mxu0 %v70
    %2114 = vmatpush1.msra.mxu0 %v69
    %2115 = vmatprep.subr.mxu0 %v73
    %2116 = vmatpush1.msra.mxu0 %v72
    %2117 = vmatprep.subr.mxu0 %v76
    %2118 = vmatpush1.msra.mxu0 %v75
    %2119 = vmatprep.subr.mxu0 %v79
    %2120 = vmatpush1.msra.mxu0 %v78
    %2121 = vmatprep.subr.mxu0 %v82
    %2122 = vmatpush1.msra.mxu0 %v81
    %2123 = vmatprep.subr.mxu0 %v85
    %2124 = vmatpush1.msra.mxu0 %v84
    %2125 = vmatprep.subr.mxu0 %v88
    %2126 = vmatpush1.msra.mxu0 %v87
    %2127 = vmatprep.subr.mxu0 %v91
    %2128 = vmatpush1.msra.mxu0 %v90
    %2129 = vmatprep.subr.mxu0 %v94
    %2130 = vmatpush1.msra.mxu0 %v93
    %2131 = vmatprep.subr.mxu0 0.0
    %2132 = vmatpush1.msra.mxu0 0.0
    %2133 = vmatprep.subr.mxu0 0.0
    %2134 = vmatpush1.msra.mxu0 0.0
    %2135 = vmatprep.subr.mxu0 0.0
    %2136 = vmatpush1.msra.mxu0 0.0
    %2137 = vmatprep.subr.mxu0 0.0
    %2138 = vmatpush1.msra.mxu0 0.0
    %2139 = vmatprep.subr.mxu0 0.0
    %2140 = vmatpush1.msra.mxu0 0.0
    %2141 = vmatprep.subr.mxu0 0.0
    %2142 = vmatpush1.msra.mxu0 0.0
    %2143 = vmatprep.subr.mxu0 0.0
    %2144 = vmatpush1.msra.mxu0 0.0
    %2145 = vmatprep.subr.mxu0 0.0
    %2146 = vmatpush1.msra.mxu0 0.0
    %2147 = vmatprep.subr.mxu0 0.0
    %2148 = vmatpush1.msra.mxu0 0.0
    %2149 = vmatprep.subr.mxu0 0.0
    %2150 = vmatpush1.msra.mxu0 0.0
    %2151 = vmatprep.subr.mxu0 0.0
    %2152 = vmatpush1.msra.mxu0 0.0
    %2153 = vmatprep.subr.mxu0 0.0
    %2154 = vmatpush1.msra.mxu0 0.0
    %2155 = vmatprep.subr.mxu0 0.0
    %2156 = vmatpush1.msra.mxu0 0.0
    %2157 = vmatprep.subr.mxu0 0.0
    %2158 = vmatpush1.msra.mxu0 0.0
    %2159 = vmatprep.subr.mxu0 0.0
    %2160 = vmatpush1.msra.mxu0 0.0
    %2161 = vmatprep.subr.mxu0 0.0
    %2162 = vmatpush1.msra.mxu0 0.0
    %2163 = vmatprep.mubr.f32.mxu0 0.0
    %2164 = vmatmul.mubr.f32.gmra.mrb[0].mxu0 %v2094
    %v2165 = vpop.f32.mrb[0].mxu0
    %v2166 = vadd.f32 0.0, %v2165
    %v2167 = vpop.f32.mrb[0].mxu0
    %v2168 = vadd.f32 0.0, %v2167
    %2169 = vdwg.mxu0
    %2170 = vmatprep.subr.mxu0 0.0
    %2171 = vmatpush1.msra.mxu0 %v50
    %2172 = vmatprep.subr.mxu0 0.0
    %2173 = vmatpush1.msra.mxu0 %v53
    %2174 = vmatprep.subr.mxu0 0.0
    %2175 = vmatpush1.msra.mxu0 %v56
    %2176 = vmatprep.subr.mxu0 0.0
    %2177 = vmatpush1.msra.mxu0 %v59
    %2178 = vmatprep.subr.mxu0 0.0
    %2179 = vmatpush1.msra.mxu0 %v62
    %2180 = vmatprep.subr.mxu0 0.0
    %2181 = vmatpush1.msra.mxu0 %v65
    %2182 = vmatprep.subr.mxu0 0.0
    %2183 = vmatpush1.msra.mxu0 %v68
    %2184 = vmatprep.subr.mxu0 0.0
    %2185 = vmatpush1.msra.mxu0 %v71
    %2186 = vmatprep.subr.mxu0 0.0
    %2187 = vmatpush1.msra.mxu0 %v74
    %2188 = vmatprep.subr.mxu0 0.0
    %2189 = vmatpush1.msra.mxu0 %v77
    %2190 = vmatprep.subr.mxu0 0.0
    %2191 = vmatpush1.msra.mxu0 %v80
    %2192 = vmatprep.subr.mxu0 0.0
    %2193 = vmatpush1.msra.mxu0 %v83
    %2194 = vmatprep.subr.mxu0 0.0
    %2195 = vmatpush1.msra.mxu0 %v86
    %2196 = vmatprep.subr.mxu0 0.0
    %2197 = vmatpush1.msra.mxu0 %v89
    %2198 = vmatprep.subr.mxu0 0.0
    %2199 = vmatpush1.msra.mxu0 %v92
    %2200 = vmatprep.subr.mxu0 0.0
    %2201 = vmatpush1.msra.mxu0 %v95
    %2202 = vmatprep.subr.mxu0 0.0
    %2203 = vmatpush1.msra.mxu0 0.0
    %2204 = vmatprep.subr.mxu0 0.0
    %2205 = vmatpush1.msra.mxu0 0.0
    %2206 = vmatprep.subr.mxu0 0.0
    %2207 = vmatpush1.msra.mxu0 0.0
    %2208 = vmatprep.subr.mxu0 0.0
    %2209 = vmatpush1.msra.mxu0 0.0
    %2210 = vmatprep.subr.mxu0 0.0
    %2211 = vmatpush1.msra.mxu0 0.0
    %2212 = vmatprep.subr.mxu0 0.0
    %2213 = vmatpush1.msra.mxu0 0.0
    %2214 = vmatprep.subr.mxu0 0.0
    %2215 = vmatpush1.msra.mxu0 0.0
    %2216 = vmatprep.subr.mxu0 0.0
    %2217 = vmatpush1.msra.mxu0 0.0
    %2218 = vmatprep.subr.mxu0 0.0
    %2219 = vmatpush1.msra.mxu0 0.0
    %2220 = vmatprep.subr.mxu0 0.0
    %2221 = vmatpush1.msra.mxu0 0.0
    %2222 = vmatprep.subr.mxu0 0.0
    %2223 = vmatpush1.msra.mxu0 0.0
    %2224 = vmatprep.subr.mxu0 0.0
    %2225 = vmatpush1.msra.mxu0 0.0
    %2226 = vmatprep.subr.mxu0 0.0
    %2227 = vmatpush1.msra.mxu0 0.0
    %2228 = vmatprep.subr.mxu0 0.0
    %2229 = vmatpush1.msra.mxu0 0.0
    %2230 = vmatprep.subr.mxu0 0.0
    %2231 = vmatpush1.msra.mxu0 0.0
    %2232 = vmatprep.subr.mxu0 0.0
    %2233 = vmatpush1.msra.mxu0 0.0
    %2234 = vmatprep.mubr.f32.mxu0 0.0
    %2235 = vmatmul.mubr.f32.gmra.mrb[0].mxu0 %v2094
    %v2236 = vpop.f32.mrb[0].mxu0
    %v2237 = vadd.f32 0.0, %v2236
    %v2238 = vpop.f32.mrb[0].mxu0
    %2239 = vdwg.mxu0
    %v2240 = vadd.f32 %v2096, %v2166
    %v2241 = vxor.u32 %v2240, 2147483648
    %v2242 = vmul.f32 %v2241, 1.442695
    %v2243 = vpow.pop %v2242
    %v2244 = vadd.f32 %v2243, 1.0
    %v2245 = vrcp.pop %v2244
    %v2246 = vmul.f32 1.0, %v2245
    %v2247 = vadd.f32 %v2097, %v2168
    %v2248 = vxor.u32 %v2247, 2147483648
    %v2249 = vmul.f32 %v2248, 1.442695
    %v2250 = vpow.pop %v2249
    %v2251 = vadd.f32 %v2250, 1.0
    %v2252 = vrcp.pop %v2251
    %v2253 = vmul.f32 1.0, %v2252
    %v2254 = vadd.f32 %v2237, %v101
    %v2255 = vmul.f32 %v2246, %v2254
    %v2256 = vadd.f32 %v2098, %v2255
    %v2257 = vtanh.pop %v2256
    %v2258 = vsub.f32 %v2094, %v2257
    %v2259 = vmul.f32 %v2253, %v2258
    %v2260 = vadd.f32 %v2257, %v2259
    %s2261 = scalar_lea.vmem [#allocation2], 312
    %v2262 = vld [vmem:[%s2261] sm:$0xff]
    %v2263 = vld [vmem:[%s2261 + $0x8] sm:$0xff]
    %v2264 = vld [vmem:[%s2261 + $0x10] sm:$0xff]
    %2265 = vmatprep.subr.mxu0 %v49
    %2266 = vmatpush1.msra.mxu0 %v48
    %2267 = vmatprep.subr.mxu0 %v52
    %2268 = vmatpush1.msra.mxu0 %v51
    %2269 = vmatprep.subr.mxu0 %v55
    %2270 = vmatpush1.msra.mxu0 %v54
    %2271 = vmatprep.subr.mxu0 %v58
    %2272 = vmatpush1.msra.mxu0 %v57
    %2273 = vmatprep.subr.mxu0 %v61
    %2274 = vmatpush1.msra.mxu0 %v60
    %2275 = vmatprep.subr.mxu0 %v64
    %2276 = vmatpush1.msra.mxu0 %v63
    %2277 = vmatprep.subr.mxu0 %v67
    %2278 = vmatpush1.msra.mxu0 %v66
    %2279 = vmatprep.subr.mxu0 %v70
    %2280 = vmatpush1.msra.mxu0 %v69
    %2281 = vmatprep.subr.mxu0 %v73
    %2282 = vmatpush1.msra.mxu0 %v72
    %2283 = vmatprep.subr.mxu0 %v76
    %2284 = vmatpush1.msra.mxu0 %v75
    %2285 = vmatprep.subr.mxu0 %v79
    %2286 = vmatpush1.msra.mxu0 %v78
    %2287 = vmatprep.subr.mxu0 %v82
    %2288 = vmatpush1.msra.mxu0 %v81
    %2289 = vmatprep.subr.mxu0 %v85
    %2290 = vmatpush1.msra.mxu0 %v84
    %2291 = vmatprep.subr.mxu0 %v88
    %2292 = vmatpush1.msra.mxu0 %v87
    %2293 = vmatprep.subr.mxu0 %v91
    %2294 = vmatpush1.msra.mxu0 %v90
    %2295 = vmatprep.subr.mxu0 %v94
    %2296 = vmatpush1.msra.mxu0 %v93
    %2297 = vmatprep.subr.mxu0 0.0
    %2298 = vmatpush1.msra.mxu0 0.0
    %2299 = vmatprep.subr.mxu0 0.0
    %2300 = vmatpush1.msra.mxu0 0.0
    %2301 = vmatprep.subr.mxu0 0.0
    %2302 = vmatpush1.msra.mxu0 0.0
    %2303 = vmatprep.subr.mxu0 0.0
    %2304 = vmatpush1.msra.mxu0 0.0
    %2305 = vmatprep.subr.mxu0 0.0
    %2306 = vmatpush1.msra.mxu0 0.0
    %2307 = vmatprep.subr.mxu0 0.0
    %2308 = vmatpush1.msra.mxu0 0.0
    %2309 = vmatprep.subr.mxu0 0.0
    %2310 = vmatpush1.msra.mxu0 0.0
    %2311 = vmatprep.subr.mxu0 0.0
    %2312 = vmatpush1.msra.mxu0 0.0
    %2313 = vmatprep.subr.mxu0 0.0
    %2314 = vmatpush1.msra.mxu0 0.0
    %2315 = vmatprep.subr.mxu0 0.0
    %2316 = vmatpush1.msra.mxu0 0.0
    %2317 = vmatprep.subr.mxu0 0.0
    %2318 = vmatpush1.msra.mxu0 0.0
    %2319 = vmatprep.subr.mxu0 0.0
    %2320 = vmatpush1.msra.mxu0 0.0
    %2321 = vmatprep.subr.mxu0 0.0
    %2322 = vmatpush1.msra.mxu0 0.0
    %2323 = vmatprep.subr.mxu0 0.0
    %2324 = vmatpush1.msra.mxu0 0.0
    %2325 = vmatprep.subr.mxu0 0.0
    %2326 = vmatpush1.msra.mxu0 0.0
    %2327 = vmatprep.subr.mxu0 0.0
    %2328 = vmatpush1.msra.mxu0 0.0
    %2329 = vmatprep.mubr.f32.mxu0 0.0
    %2330 = vmatmul.mubr.f32.gmra.mrb[0].mxu0 %v2260
    %v2331 = vpop.f32.mrb[0].mxu0
    %v2332 = vadd.f32 0.0, %v2331
    %v2333 = vpop.f32.mrb[0].mxu0
    %v2334 = vadd.f32 0.0, %v2333
    %2335 = vdwg.mxu0
    %2336 = vmatprep.subr.mxu0 0.0
    %2337 = vmatpush1.msra.mxu0 %v50
    %2338 = vmatprep.subr.mxu0 0.0
    %2339 = vmatpush1.msra.mxu0 %v53
    %2340 = vmatprep.subr.mxu0 0.0
    %2341 = vmatpush1.msra.mxu0 %v56
    %2342 = vmatprep.subr.mxu0 0.0
    %2343 = vmatpush1.msra.mxu0 %v59
    %2344 = vmatprep.subr.mxu0 0.0
    %2345 = vmatpush1.msra.mxu0 %v62
    %2346 = vmatprep.subr.mxu0 0.0
    %2347 = vmatpush1.msra.mxu0 %v65
    %2348 = vmatprep.subr.mxu0 0.0
    %2349 = vmatpush1.msra.mxu0 %v68
    %2350 = vmatprep.subr.mxu0 0.0
    %2351 = vmatpush1.msra.mxu0 %v71
    %2352 = vmatprep.subr.mxu0 0.0
    %2353 = vmatpush1.msra.mxu0 %v74
    %2354 = vmatprep.subr.mxu0 0.0
    %2355 = vmatpush1.msra.mxu0 %v77
    %2356 = vmatprep.subr.mxu0 0.0
    %2357 = vmatpush1.msra.mxu0 %v80
    %2358 = vmatprep.subr.mxu0 0.0
    %2359 = vmatpush1.msra.mxu0 %v83
    %2360 = vmatprep.subr.mxu0 0.0
    %2361 = vmatpush1.msra.mxu0 %v86
    %2362 = vmatprep.subr.mxu0 0.0
    %2363 = vmatpush1.msra.mxu0 %v89
    %2364 = vmatprep.subr.mxu0 0.0
    %2365 = vmatpush1.msra.mxu0 %v92
    %2366 = vmatprep.subr.mxu0 0.0
    %2367 = vmatpush1.msra.mxu0 %v95
    %2368 = vmatprep.subr.mxu0 0.0
    %2369 = vmatpush1.msra.mxu0 0.0
    %2370 = vmatprep.subr.mxu0 0.0
    %2371 = vmatpush1.msra.mxu0 0.0
    %2372 = vmatprep.subr.mxu0 0.0
    %2373 = vmatpush1.msra.mxu0 0.0
    %2374 = vmatprep.subr.mxu0 0.0
    %2375 = vmatpush1.msra.mxu0 0.0
    %2376 = vmatprep.subr.mxu0 0.0
    %2377 = vmatpush1.msra.mxu0 0.0
    %2378 = vmatprep.subr.mxu0 0.0
    %2379 = vmatpush1.msra.mxu0 0.0
    %2380 = vmatprep.subr.mxu0 0.0
    %2381 = vmatpush1.msra.mxu0 0.0
    %2382 = vmatprep.subr.mxu0 0.0
    %2383 = vmatpush1.msra.mxu0 0.0
    %2384 = vmatprep.subr.mxu0 0.0
    %2385 = vmatpush1.msra.mxu0 0.0
    %2386 = vmatprep.subr.mxu0 0.0
    %2387 = vmatpush1.msra.mxu0 0.0
    %2388 = vmatprep.subr.mxu0 0.0
    %2389 = vmatpush1.msra.mxu0 0.0
    %2390 = vmatprep.subr.mxu0 0.0
    %2391 = vmatpush1.msra.mxu0 0.0
    %2392 = vmatprep.subr.mxu0 0.0
    %2393 = vmatpush1.msra.mxu0 0.0
    %2394 = vmatprep.subr.mxu0 0.0
    %2395 = vmatpush1.msra.mxu0 0.0
    %2396 = vmatprep.subr.mxu0 0.0
    %2397 = vmatpush1.msra.mxu0 0.0
    %2398 = vmatprep.subr.mxu0 0.0
    %2399 = vmatpush1.msra.mxu0 0.0
    %2400 = vmatprep.mubr.f32.mxu0 0.0
    %2401 = vmatmul.mubr.f32.gmra.mrb[0].mxu0 %v2260
    %v2402 = vpop.f32.mrb[0].mxu0
    %v2403 = vadd.f32 0.0, %v2402
    %v2404 = vpop.f32.mrb[0].mxu0
    %2405 = vdwg.mxu0
    %v2406 = vadd.f32 %v2262, %v2332
    %v2407 = vxor.u32 %v2406, 2147483648
    %v2408 = vmul.f32 %v2407, 1.442695
    %v2409 = vpow.pop %v2408
    %v2410 = vadd.f32 %v2409, 1.0
    %v2411 = vrcp.pop %v2410
    %v2412 = vmul.f32 1.0, %v2411
    %v2413 = vadd.f32 %v2263, %v2334
    %v2414 = vxor.u32 %v2413, 2147483648
    %v2415 = vmul.f32 %v2414, 1.442695
    %v2416 = vpow.pop %v2415
    %v2417 = vadd.f32 %v2416, 1.0
    %v2418 = vrcp.pop %v2417
    %v2419 = vmul.f32 1.0, %v2418
    %v2420 = vadd.f32 %v2403, %v101
    %v2421 = vmul.f32 %v2412, %v2420
    %v2422 = vadd.f32 %v2264, %v2421
    %v2423 = vtanh.pop %v2422
    %v2424 = vsub.f32 %v2260, %v2423
    %v2425 = vmul.f32 %v2419, %v2424
    %v2426 = vadd.f32 %v2423, %v2425
    %s2427 = scalar_lea.vmem [#allocation2], 336
    %v2428 = vld [vmem:[%s2427] sm:$0xff]
    %v2429 = vld [vmem:[%s2427 + $0x8] sm:$0xff]
    %v2430 = vld [vmem:[%s2427 + $0x10] sm:$0xff]
    %2431 = vmatprep.subr.mxu0 %v49
    %2432 = vmatpush1.msra.mxu0 %v48
    %2433 = vmatprep.subr.mxu0 %v52
    %2434 = vmatpush1.msra.mxu0 %v51
    %2435 = vmatprep.subr.mxu0 %v55
    %2436 = vmatpush1.msra.mxu0 %v54
    %2437 = vmatprep.subr.mxu0 %v58
    %2438 = vmatpush1.msra.mxu0 %v57
    %2439 = vmatprep.subr.mxu0 %v61
    %2440 = vmatpush1.msra.mxu0 %v60
    %2441 = vmatprep.subr.mxu0 %v64
    %2442 = vmatpush1.msra.mxu0 %v63
    %2443 = vmatprep.subr.mxu0 %v67
    %2444 = vmatpush1.msra.mxu0 %v66
    %2445 = vmatprep.subr.mxu0 %v70
    %2446 = vmatpush1.msra.mxu0 %v69
    %2447 = vmatprep.subr.mxu0 %v73
    %2448 = vmatpush1.msra.mxu0 %v72
    %2449 = vmatprep.subr.mxu0 %v76
    %2450 = vmatpush1.msra.mxu0 %v75
    %2451 = vmatprep.subr.mxu0 %v79
    %2452 = vmatpush1.msra.mxu0 %v78
    %2453 = vmatprep.subr.mxu0 %v82
    %2454 = vmatpush1.msra.mxu0 %v81
    %2455 = vmatprep.subr.mxu0 %v85
    %2456 = vmatpush1.msra.mxu0 %v84
    %2457 = vmatprep.subr.mxu0 %v88
    %2458 = vmatpush1.msra.mxu0 %v87
    %2459 = vmatprep.subr.mxu0 %v91
    %2460 = vmatpush1.msra.mxu0 %v90
    %2461 = vmatprep.subr.mxu0 %v94
    %2462 = vmatpush1.msra.mxu0 %v93
    %2463 = vmatprep.subr.mxu0 0.0
    %2464 = vmatpush1.msra.mxu0 0.0
    %2465 = vmatprep.subr.mxu0 0.0
    %2466 = vmatpush1.msra.mxu0 0.0
    %2467 = vmatprep.subr.mxu0 0.0
    %2468 = vmatpush1.msra.mxu0 0.0
    %2469 = vmatprep.subr.mxu0 0.0
    %2470 = vmatpush1.msra.mxu0 0.0
    %2471 = vmatprep.subr.mxu0 0.0
    %2472 = vmatpush1.msra.mxu0 0.0
    %2473 = vmatprep.subr.mxu0 0.0
    %2474 = vmatpush1.msra.mxu0 0.0
    %2475 = vmatprep.subr.mxu0 0.0
    %2476 = vmatpush1.msra.mxu0 0.0
    %2477 = vmatprep.subr.mxu0 0.0
    %2478 = vmatpush1.msra.mxu0 0.0
    %2479 = vmatprep.subr.mxu0 0.0
    %2480 = vmatpush1.msra.mxu0 0.0
    %2481 = vmatprep.subr.mxu0 0.0
    %2482 = vmatpush1.msra.mxu0 0.0
    %2483 = vmatprep.subr.mxu0 0.0
    %2484 = vmatpush1.msra.mxu0 0.0
    %2485 = vmatprep.subr.mxu0 0.0
    %2486 = vmatpush1.msra.mxu0 0.0
    %2487 = vmatprep.subr.mxu0 0.0
    %2488 = vmatpush1.msra.mxu0 0.0
    %2489 = vmatprep.subr.mxu0 0.0
    %2490 = vmatpush1.msra.mxu0 0.0
    %2491 = vmatprep.subr.mxu0 0.0
    %2492 = vmatpush1.msra.mxu0 0.0
    %2493 = vmatprep.subr.mxu0 0.0
    %2494 = vmatpush1.msra.mxu0 0.0
    %2495 = vmatprep.mubr.f32.mxu0 0.0
    %2496 = vmatmul.mubr.f32.gmra.mrb[0].mxu0 %v2426
    %v2497 = vpop.f32.mrb[0].mxu0
    %v2498 = vadd.f32 0.0, %v2497
    %v2499 = vpop.f32.mrb[0].mxu0
    %v2500 = vadd.f32 0.0, %v2499
    %2501 = vdwg.mxu0
    %2502 = vmatprep.subr.mxu0 0.0
    %2503 = vmatpush1.msra.mxu0 %v50
    %2504 = vmatprep.subr.mxu0 0.0
    %2505 = vmatpush1.msra.mxu0 %v53
    %2506 = vmatprep.subr.mxu0 0.0
    %2507 = vmatpush1.msra.mxu0 %v56
    %2508 = vmatprep.subr.mxu0 0.0
    %2509 = vmatpush1.msra.mxu0 %v59
    %2510 = vmatprep.subr.mxu0 0.0
    %2511 = vmatpush1.msra.mxu0 %v62
    %2512 = vmatprep.subr.mxu0 0.0
    %2513 = vmatpush1.msra.mxu0 %v65
    %2514 = vmatprep.subr.mxu0 0.0
    %2515 = vmatpush1.msra.mxu0 %v68
    %2516 = vmatprep.subr.mxu0 0.0
    %2517 = vmatpush1.msra.mxu0 %v71
    %2518 = vmatprep.subr.mxu0 0.0
    %2519 = vmatpush1.msra.mxu0 %v74
    %2520 = vmatprep.subr.mxu0 0.0
    %2521 = vmatpush1.msra.mxu0 %v77
    %2522 = vmatprep.subr.mxu0 0.0
    %2523 = vmatpush1.msra.mxu0 %v80
    %2524 = vmatprep.subr.mxu0 0.0
    %2525 = vmatpush1.msra.mxu0 %v83
    %2526 = vmatprep.subr.mxu0 0.0
    %2527 = vmatpush1.msra.mxu0 %v86
    %2528 = vmatprep.subr.mxu0 0.0
    %2529 = vmatpush1.msra.mxu0 %v89
    %2530 = vmatprep.subr.mxu0 0.0
    %2531 = vmatpush1.msra.mxu0 %v92
    %2532 = vmatprep.subr.mxu0 0.0
    %2533 = vmatpush1.msra.mxu0 %v95
    %2534 = vmatprep.subr.mxu0 0.0
    %2535 = vmatpush1.msra.mxu0 0.0
    %2536 = vmatprep.subr.mxu0 0.0
    %2537 = vmatpush1.msra.mxu0 0.0
    %2538 = vmatprep.subr.mxu0 0.0
    %2539 = vmatpush1.msra.mxu0 0.0
    %2540 = vmatprep.subr.mxu0 0.0
    %2541 = vmatpush1.msra.mxu0 0.0
    %2542 = vmatprep.subr.mxu0 0.0
    %2543 = vmatpush1.msra.mxu0 0.0
    %2544 = vmatprep.subr.mxu0 0.0
    %2545 = vmatpush1.msra.mxu0 0.0
    %2546 = vmatprep.subr.mxu0 0.0
    %2547 = vmatpush1.msra.mxu0 0.0
    %2548 = vmatprep.subr.mxu0 0.0
    %2549 = vmatpush1.msra.mxu0 0.0
    %2550 = vmatprep.subr.mxu0 0.0
    %2551 = vmatpush1.msra.mxu0 0.0
    %2552 = vmatprep.subr.mxu0 0.0
    %2553 = vmatpush1.msra.mxu0 0.0
    %2554 = vmatprep.subr.mxu0 0.0
    %2555 = vmatpush1.msra.mxu0 0.0
    %2556 = vmatprep.subr.mxu0 0.0
    %2557 = vmatpush1.msra.mxu0 0.0
    %2558 = vmatprep.subr.mxu0 0.0
    %2559 = vmatpush1.msra.mxu0 0.0
    %2560 = vmatprep.subr.mxu0 0.0
    %2561 = vmatpush1.msra.mxu0 0.0
    %2562 = vmatprep.subr.mxu0 0.0
    %2563 = vmatpush1.msra.mxu0 0.0
    %2564 = vmatprep.subr.mxu0 0.0
    %2565 = vmatpush1.msra.mxu0 0.0
    %2566 = vmatprep.mubr.f32.mxu0 0.0
    %2567 = vmatmul.mubr.f32.gmra.mrb[0].mxu0 %v2426
    %v2568 = vpop.f32.mrb[0].mxu0
    %v2569 = vadd.f32 0.0, %v2568
    %v2570 = vpop.f32.mrb[0].mxu0
    %2571 = vdwg.mxu0
    %v2572 = vadd.f32 %v2428, %v2498
    %v2573 = vxor.u32 %v2572, 2147483648
    %v2574 = vmul.f32 %v2573, 1.442695
    %v2575 = vpow.pop %v2574
    %v2576 = vadd.f32 %v2575, 1.0
    %v2577 = vrcp.pop %v2576
    %v2578 = vmul.f32 1.0, %v2577
    %v2579 = vadd.f32 %v2429, %v2500
    %v2580 = vxor.u32 %v2579, 2147483648
    %v2581 = vmul.f32 %v2580, 1.442695
    %v2582 = vpow.pop %v2581
    %v2583 = vadd.f32 %v2582, 1.0
    %v2584 = vrcp.pop %v2583
    %v2585 = vmul.f32 1.0, %v2584
    %v2586 = vadd.f32 %v2569, %v101
    %v2587 = vmul.f32 %v2578, %v2586
    %v2588 = vadd.f32 %v2430, %v2587
    %v2589 = vtanh.pop %v2588
    %v2590 = vsub.f32 %v2426, %v2589
    %v2591 = vmul.f32 %v2585, %v2590
    %v2592 = vadd.f32 %v2589, %v2591
    %s2593 = scalar_lea.vmem [#allocation2], 360
    %v2594 = vld [vmem:[%s2593] sm:$0xff]
    %v2595 = vld [vmem:[%s2593 + $0x8] sm:$0xff]
    %v2596 = vld [vmem:[%s2593 + $0x10] sm:$0xff]
    %2597 = vmatprep.subr.mxu0 %v49
    %2598 = vmatpush1.msra.mxu0 %v48
    %2599 = vmatprep.subr.mxu0 %v52
    %2600 = vmatpush1.msra.mxu0 %v51
    %2601 = vmatprep.subr.mxu0 %v55
    %2602 = vmatpush1.msra.mxu0 %v54
    %2603 = vmatprep.subr.mxu0 %v58
    %2604 = vmatpush1.msra.mxu0 %v57
    %2605 = vmatprep.subr.mxu0 %v61
    %2606 = vmatpush1.msra.mxu0 %v60
    %2607 = vmatprep.subr.mxu0 %v64
    %2608 = vmatpush1.msra.mxu0 %v63
    %2609 = vmatprep.subr.mxu0 %v67
    %2610 = vmatpush1.msra.mxu0 %v66
    %2611 = vmatprep.subr.mxu0 %v70
    %2612 = vmatpush1.msra.mxu0 %v69
    %2613 = vmatprep.subr.mxu0 %v73
    %2614 = vmatpush1.msra.mxu0 %v72
    %2615 = vmatprep.subr.mxu0 %v76
    %2616 = vmatpush1.msra.mxu0 %v75
    %2617 = vmatprep.subr.mxu0 %v79
    %2618 = vmatpush1.msra.mxu0 %v78
    %2619 = vmatprep.subr.mxu0 %v82
    %2620 = vmatpush1.msra.mxu0 %v81
    %2621 = vmatprep.subr.mxu0 %v85
    %2622 = vmatpush1.msra.mxu0 %v84
    %2623 = vmatprep.subr.mxu0 %v88
    %2624 = vmatpush1.msra.mxu0 %v87
    %2625 = vmatprep.subr.mxu0 %v91
    %2626 = vmatpush1.msra.mxu0 %v90
    %2627 = vmatprep.subr.mxu0 %v94
    %2628 = vmatpush1.msra.mxu0 %v93
    %2629 = vmatprep.subr.mxu0 0.0
    %2630 = vmatpush1.msra.mxu0 0.0
    %2631 = vmatprep.subr.mxu0 0.0
    %2632 = vmatpush1.msra.mxu0 0.0
    %2633 = vmatprep.subr.mxu0 0.0
    %2634 = vmatpush1.msra.mxu0 0.0
    %2635 = vmatprep.subr.mxu0 0.0
    %2636 = vmatpush1.msra.mxu0 0.0
    %2637 = vmatprep.subr.mxu0 0.0
    %2638 = vmatpush1.msra.mxu0 0.0
    %2639 = vmatprep.subr.mxu0 0.0
    %2640 = vmatpush1.msra.mxu0 0.0
    %2641 = vmatprep.subr.mxu0 0.0
    %2642 = vmatpush1.msra.mxu0 0.0
    %2643 = vmatprep.subr.mxu0 0.0
    %2644 = vmatpush1.msra.mxu0 0.0
    %2645 = vmatprep.subr.mxu0 0.0
    %2646 = vmatpush1.msra.mxu0 0.0
    %2647 = vmatprep.subr.mxu0 0.0
    %2648 = vmatpush1.msra.mxu0 0.0
    %2649 = vmatprep.subr.mxu0 0.0
    %2650 = vmatpush1.msra.mxu0 0.0
    %2651 = vmatprep.subr.mxu0 0.0
    %2652 = vmatpush1.msra.mxu0 0.0
    %2653 = vmatprep.subr.mxu0 0.0
    %2654 = vmatpush1.msra.mxu0 0.0
    %2655 = vmatprep.subr.mxu0 0.0
    %2656 = vmatpush1.msra.mxu0 0.0
    %2657 = vmatprep.subr.mxu0 0.0
    %2658 = vmatpush1.msra.mxu0 0.0
    %2659 = vmatprep.subr.mxu0 0.0
    %2660 = vmatpush1.msra.mxu0 0.0
    %2661 = vmatprep.mubr.f32.mxu0 0.0
    %2662 = vmatmul.mubr.f32.gmra.mrb[0].mxu0 %v2592
    %v2663 = vpop.f32.mrb[0].mxu0
    %v2664 = vadd.f32 0.0, %v2663
    %v2665 = vpop.f32.mrb[0].mxu0
    %v2666 = vadd.f32 0.0, %v2665
    %2667 = vdwg.mxu0
    %2668 = vmatprep.subr.mxu0 0.0
    %2669 = vmatpush1.msra.mxu0 %v50
    %2670 = vmatprep.subr.mxu0 0.0
    %2671 = vmatpush1.msra.mxu0 %v53
    %2672 = vmatprep.subr.mxu0 0.0
    %2673 = vmatpush1.msra.mxu0 %v56
    %2674 = vmatprep.subr.mxu0 0.0
    %2675 = vmatpush1.msra.mxu0 %v59
    %2676 = vmatprep.subr.mxu0 0.0
    %2677 = vmatpush1.msra.mxu0 %v62
    %2678 = vmatprep.subr.mxu0 0.0
    %2679 = vmatpush1.msra.mxu0 %v65
    %2680 = vmatprep.subr.mxu0 0.0
    %2681 = vmatpush1.msra.mxu0 %v68
    %2682 = vmatprep.subr.mxu0 0.0
    %2683 = vmatpush1.msra.mxu0 %v71
    %2684 = vmatprep.subr.mxu0 0.0
    %2685 = vmatpush1.msra.mxu0 %v74
    %2686 = vmatprep.subr.mxu0 0.0
    %2687 = vmatpush1.msra.mxu0 %v77
    %2688 = vmatprep.subr.mxu0 0.0
    %2689 = vmatpush1.msra.mxu0 %v80
    %2690 = vmatprep.subr.mxu0 0.0
    %2691 = vmatpush1.msra.mxu0 %v83
    %2692 = vmatprep.subr.mxu0 0.0
    %2693 = vmatpush1.msra.mxu0 %v86
    %2694 = vmatprep.subr.mxu0 0.0
    %2695 = vmatpush1.msra.mxu0 %v89
    %2696 = vmatprep.subr.mxu0 0.0
    %2697 = vmatpush1.msra.mxu0 %v92
    %2698 = vmatprep.subr.mxu0 0.0
    %2699 = vmatpush1.msra.mxu0 %v95
    %2700 = vmatprep.subr.mxu0 0.0
    %2701 = vmatpush1.msra.mxu0 0.0
    %2702 = vmatprep.subr.mxu0 0.0
    %2703 = vmatpush1.msra.mxu0 0.0
    %2704 = vmatprep.subr.mxu0 0.0
    %2705 = vmatpush1.msra.mxu0 0.0
    %2706 = vmatprep.subr.mxu0 0.0
    %2707 = vmatpush1.msra.mxu0 0.0
    %2708 = vmatprep.subr.mxu0 0.0
    %2709 = vmatpush1.msra.mxu0 0.0
    %2710 = vmatprep.subr.mxu0 0.0
    %2711 = vmatpush1.msra.mxu0 0.0
    %2712 = vmatprep.subr.mxu0 0.0
    %2713 = vmatpush1.msra.mxu0 0.0
    %2714 = vmatprep.subr.mxu0 0.0
    %2715 = vmatpush1.msra.mxu0 0.0
    %2716 = vmatprep.subr.mxu0 0.0
    %2717 = vmatpush1.msra.mxu0 0.0
    %2718 = vmatprep.subr.mxu0 0.0
    %2719 = vmatpush1.msra.mxu0 0.0
    %2720 = vmatprep.subr.mxu0 0.0
    %2721 = vmatpush1.msra.mxu0 0.0
    %2722 = vmatprep.subr.mxu0 0.0
    %2723 = vmatpush1.msra.mxu0 0.0
    %2724 = vmatprep.subr.mxu0 0.0
    %2725 = vmatpush1.msra.mxu0 0.0
    %2726 = vmatprep.subr.mxu0 0.0
    %2727 = vmatpush1.msra.mxu0 0.0
    %2728 = vmatprep.subr.mxu0 0.0
    %2729 = vmatpush1.msra.mxu0 0.0
    %2730 = vmatprep.subr.mxu0 0.0
    %2731 = vmatpush1.msra.mxu0 0.0
    %2732 = vmatprep.mubr.f32.mxu0 0.0
    %2733 = vmatmul.mubr.f32.gmra.mrb[0].mxu0 %v2592
    %v2734 = vpop.f32.mrb[0].mxu0
    %v2735 = vadd.f32 0.0, %v2734
    %v2736 = vpop.f32.mrb[0].mxu0
    %2737 = vdwg.mxu0
    %v2738 = vadd.f32 %v2594, %v2664
    %v2739 = vxor.u32 %v2738, 2147483648
    %v2740 = vmul.f32 %v2739, 1.442695
    %v2741 = vpow.pop %v2740
    %v2742 = vadd.f32 %v2741, 1.0
    %v2743 = vrcp.pop %v2742
    %v2744 = vmul.f32 1.0, %v2743
    %v2745 = vadd.f32 %v2595, %v2666
    %v2746 = vxor.u32 %v2745, 2147483648
    %v2747 = vmul.f32 %v2746, 1.442695
    %v2748 = vpow.pop %v2747
    %v2749 = vadd.f32 %v2748, 1.0
    %v2750 = vrcp.pop %v2749
    %v2751 = vmul.f32 1.0, %v2750
    %v2752 = vadd.f32 %v2735, %v101
    %v2753 = vmul.f32 %v2744, %v2752
    %v2754 = vadd.f32 %v2596, %v2753
    %v2755 = vtanh.pop %v2754
    %v2756 = vsub.f32 %v2592, %v2755
    %v2757 = vmul.f32 %v2751, %v2756
    %v2758 = vadd.f32 %v2755, %v2757
    %s2759 = scalar_lea.vmem [#allocation2], 384
    %v2760 = vld [vmem:[%s2759] sm:$0xff]
    %v2761 = vld [vmem:[%s2759 + $0x8] sm:$0xff]
    %v2762 = vld [vmem:[%s2759 + $0x10] sm:$0xff]
    %2763 = vmatprep.subr.mxu0 %v49
    %2764 = vmatpush1.msra.mxu0 %v48
    %2765 = vmatprep.subr.mxu0 %v52
    %2766 = vmatpush1.msra.mxu0 %v51
    %2767 = vmatprep.subr.mxu0 %v55
    %2768 = vmatpush1.msra.mxu0 %v54
    %2769 = vmatprep.subr.mxu0 %v58
    %2770 = vmatpush1.msra.mxu0 %v57
    %2771 = vmatprep.subr.mxu0 %v61
    %2772 = vmatpush1.msra.mxu0 %v60
    %2773 = vmatprep.subr.mxu0 %v64
    %2774 = vmatpush1.msra.mxu0 %v63
    %2775 = vmatprep.subr.mxu0 %v67
    %2776 = vmatpush1.msra.mxu0 %v66
    %2777 = vmatprep.subr.mxu0 %v70
    %2778 = vmatpush1.msra.mxu0 %v69
    %2779 = vmatprep.subr.mxu0 %v73
    %2780 = vmatpush1.msra.mxu0 %v72
    %2781 = vmatprep.subr.mxu0 %v76
    %2782 = vmatpush1.msra.mxu0 %v75
    %2783 = vmatprep.subr.mxu0 %v79
    %2784 = vmatpush1.msra.mxu0 %v78
    %2785 = vmatprep.subr.mxu0 %v82
    %2786 = vmatpush1.msra.mxu0 %v81
    %2787 = vmatprep.subr.mxu0 %v85
    %2788 = vmatpush1.msra.mxu0 %v84
    %2789 = vmatprep.subr.mxu0 %v88
    %2790 = vmatpush1.msra.mxu0 %v87
    %2791 = vmatprep.subr.mxu0 %v91
    %2792 = vmatpush1.msra.mxu0 %v90
    %2793 = vmatprep.subr.mxu0 %v94
    %2794 = vmatpush1.msra.mxu0 %v93
    %2795 = vmatprep.subr.mxu0 0.0
    %2796 = vmatpush1.msra.mxu0 0.0
    %2797 = vmatprep.subr.mxu0 0.0
    %2798 = vmatpush1.msra.mxu0 0.0
    %2799 = vmatprep.subr.mxu0 0.0
    %2800 = vmatpush1.msra.mxu0 0.0
    %2801 = vmatprep.subr.mxu0 0.0
    %2802 = vmatpush1.msra.mxu0 0.0
    %2803 = vmatprep.subr.mxu0 0.0
    %2804 = vmatpush1.msra.mxu0 0.0
    %2805 = vmatprep.subr.mxu0 0.0
    %2806 = vmatpush1.msra.mxu0 0.0
    %2807 = vmatprep.subr.mxu0 0.0
    %2808 = vmatpush1.msra.mxu0 0.0
    %2809 = vmatprep.subr.mxu0 0.0
    %2810 = vmatpush1.msra.mxu0 0.0
    %2811 = vmatprep.subr.mxu0 0.0
    %2812 = vmatpush1.msra.mxu0 0.0
    %2813 = vmatprep.subr.mxu0 0.0
    %2814 = vmatpush1.msra.mxu0 0.0
    %2815 = vmatprep.subr.mxu0 0.0
    %2816 = vmatpush1.msra.mxu0 0.0
    %2817 = vmatprep.subr.mxu0 0.0
    %2818 = vmatpush1.msra.mxu0 0.0
    %2819 = vmatprep.subr.mxu0 0.0
    %2820 = vmatpush1.msra.mxu0 0.0
    %2821 = vmatprep.subr.mxu0 0.0
    %2822 = vmatpush1.msra.mxu0 0.0
    %2823 = vmatprep.subr.mxu0 0.0
    %2824 = vmatpush1.msra.mxu0 0.0
    %2825 = vmatprep.subr.mxu0 0.0
    %2826 = vmatpush1.msra.mxu0 0.0
    %2827 = vmatprep.mubr.f32.mxu0 0.0
    %2828 = vmatmul.mubr.f32.gmra.mrb[0].mxu0 %v2758
    %v2829 = vpop.f32.mrb[0].mxu0
    %v2830 = vadd.f32 0.0, %v2829
    %v2831 = vpop.f32.mrb[0].mxu0
    %v2832 = vadd.f32 0.0, %v2831
    %2833 = vdwg.mxu0
    %2834 = vmatprep.subr.mxu0 0.0
    %2835 = vmatpush1.msra.mxu0 %v50
    %2836 = vmatprep.subr.mxu0 0.0
    %2837 = vmatpush1.msra.mxu0 %v53
    %2838 = vmatprep.subr.mxu0 0.0
    %2839 = vmatpush1.msra.mxu0 %v56
    %2840 = vmatprep.subr.mxu0 0.0
    %2841 = vmatpush1.msra.mxu0 %v59
    %2842 = vmatprep.subr.mxu0 0.0
    %2843 = vmatpush1.msra.mxu0 %v62
    %2844 = vmatprep.subr.mxu0 0.0
    %2845 = vmatpush1.msra.mxu0 %v65
    %2846 = vmatprep.subr.mxu0 0.0
    %2847 = vmatpush1.msra.mxu0 %v68
    %2848 = vmatprep.subr.mxu0 0.0
    %2849 = vmatpush1.msra.mxu0 %v71
    %2850 = vmatprep.subr.mxu0 0.0
    %2851 = vmatpush1.msra.mxu0 %v74
    %2852 = vmatprep.subr.mxu0 0.0
    %2853 = vmatpush1.msra.mxu0 %v77
    %2854 = vmatprep.subr.mxu0 0.0
    %2855 = vmatpush1.msra.mxu0 %v80
    %2856 = vmatprep.subr.mxu0 0.0
    %2857 = vmatpush1.msra.mxu0 %v83
    %2858 = vmatprep.subr.mxu0 0.0
    %2859 = vmatpush1.msra.mxu0 %v86
    %2860 = vmatprep.subr.mxu0 0.0
    %2861 = vmatpush1.msra.mxu0 %v89
    %2862 = vmatprep.subr.mxu0 0.0
    %2863 = vmatpush1.msra.mxu0 %v92
    %2864 = vmatprep.subr.mxu0 0.0
    %2865 = vmatpush1.msra.mxu0 %v95
    %2866 = vmatprep.subr.mxu0 0.0
    %2867 = vmatpush1.msra.mxu0 0.0
    %2868 = vmatprep.subr.mxu0 0.0
    %2869 = vmatpush1.msra.mxu0 0.0
    %2870 = vmatprep.subr.mxu0 0.0
    %2871 = vmatpush1.msra.mxu0 0.0
    %2872 = vmatprep.subr.mxu0 0.0
    %2873 = vmatpush1.msra.mxu0 0.0
    %2874 = vmatprep.subr.mxu0 0.0
    %2875 = vmatpush1.msra.mxu0 0.0
    %2876 = vmatprep.subr.mxu0 0.0
    %2877 = vmatpush1.msra.mxu0 0.0
    %2878 = vmatprep.subr.mxu0 0.0
    %2879 = vmatpush1.msra.mxu0 0.0
    %2880 = vmatprep.subr.mxu0 0.0
    %2881 = vmatpush1.msra.mxu0 0.0
    %2882 = vmatprep.subr.mxu0 0.0
    %2883 = vmatpush1.msra.mxu0 0.0
    %2884 = vmatprep.subr.mxu0 0.0
    %2885 = vmatpush1.msra.mxu0 0.0
    %2886 = vmatprep.subr.mxu0 0.0
    %2887 = vmatpush1.msra.mxu0 0.0
    %2888 = vmatprep.subr.mxu0 0.0
    %2889 = vmatpush1.msra.mxu0 0.0
    %2890 = vmatprep.subr.mxu0 0.0
    %2891 = vmatpush1.msra.mxu0 0.0
    %2892 = vmatprep.subr.mxu0 0.0
    %2893 = vmatpush1.msra.mxu0 0.0
    %2894 = vmatprep.subr.mxu0 0.0
    %2895 = vmatpush1.msra.mxu0 0.0
    %2896 = vmatprep.subr.mxu0 0.0
    %2897 = vmatpush1.msra.mxu0 0.0
    %2898 = vmatprep.mubr.f32.mxu0 0.0
    %2899 = vmatmul.mubr.f32.gmra.mrb[0].mxu0 %v2758
    %v2900 = vpop.f32.mrb[0].mxu0
    %v2901 = vadd.f32 0.0, %v2900
    %v2902 = vpop.f32.mrb[0].mxu0
    %2903 = vdwg.mxu0
    %v2904 = vadd.f32 %v2760, %v2830
    %v2905 = vxor.u32 %v2904, 2147483648
    %v2906 = vmul.f32 %v2905, 1.442695
    %v2907 = vpow.pop %v2906
    %v2908 = vadd.f32 %v2907, 1.0
    %v2909 = vrcp.pop %v2908
    %v2910 = vmul.f32 1.0, %v2909
    %v2911 = vadd.f32 %v2761, %v2832
    %v2912 = vxor.u32 %v2911, 2147483648
    %v2913 = vmul.f32 %v2912, 1.442695
    %v2914 = vpow.pop %v2913
    %v2915 = vadd.f32 %v2914, 1.0
    %v2916 = vrcp.pop %v2915
    %v2917 = vmul.f32 1.0, %v2916
    %v2918 = vadd.f32 %v2901, %v101
    %v2919 = vmul.f32 %v2910, %v2918
    %v2920 = vadd.f32 %v2762, %v2919
    %v2921 = vtanh.pop %v2920
    %v2922 = vsub.f32 %v2758, %v2921
    %v2923 = vmul.f32 %v2917, %v2922
    %v2924 = vadd.f32 %v2921, %v2923
    %s2925 = scalar_lea.vmem [#allocation2], 408
    %v2926 = vld [vmem:[%s2925] sm:$0xff]
    %v2927 = vld [vmem:[%s2925 + $0x8] sm:$0xff]
    %v2928 = vld [vmem:[%s2925 + $0x10] sm:$0xff]
    %2929 = vmatprep.subr.mxu0 %v49
    %2930 = vmatpush1.msra.mxu0 %v48
    %2931 = vmatprep.subr.mxu0 %v52
    %2932 = vmatpush1.msra.mxu0 %v51
    %2933 = vmatprep.subr.mxu0 %v55
    %2934 = vmatpush1.msra.mxu0 %v54
    %2935 = vmatprep.subr.mxu0 %v58
    %2936 = vmatpush1.msra.mxu0 %v57
    %2937 = vmatprep.subr.mxu0 %v61
    %2938 = vmatpush1.msra.mxu0 %v60
    %2939 = vmatprep.subr.mxu0 %v64
    %2940 = vmatpush1.msra.mxu0 %v63
    %2941 = vmatprep.subr.mxu0 %v67
    %2942 = vmatpush1.msra.mxu0 %v66
    %2943 = vmatprep.subr.mxu0 %v70
    %2944 = vmatpush1.msra.mxu0 %v69
    %2945 = vmatprep.subr.mxu0 %v73
    %2946 = vmatpush1.msra.mxu0 %v72
    %2947 = vmatprep.subr.mxu0 %v76
    %2948 = vmatpush1.msra.mxu0 %v75
    %2949 = vmatprep.subr.mxu0 %v79
    %2950 = vmatpush1.msra.mxu0 %v78
    %2951 = vmatprep.subr.mxu0 %v82
    %2952 = vmatpush1.msra.mxu0 %v81
    %2953 = vmatprep.subr.mxu0 %v85
    %2954 = vmatpush1.msra.mxu0 %v84
    %2955 = vmatprep.subr.mxu0 %v88
    %2956 = vmatpush1.msra.mxu0 %v87
    %2957 = vmatprep.subr.mxu0 %v91
    %2958 = vmatpush1.msra.mxu0 %v90
    %2959 = vmatprep.subr.mxu0 %v94
    %2960 = vmatpush1.msra.mxu0 %v93
    %2961 = vmatprep.subr.mxu0 0.0
    %2962 = vmatpush1.msra.mxu0 0.0
    %2963 = vmatprep.subr.mxu0 0.0
    %2964 = vmatpush1.msra.mxu0 0.0
    %2965 = vmatprep.subr.mxu0 0.0
    %2966 = vmatpush1.msra.mxu0 0.0
    %2967 = vmatprep.subr.mxu0 0.0
    %2968 = vmatpush1.msra.mxu0 0.0
    %2969 = vmatprep.subr.mxu0 0.0
    %2970 = vmatpush1.msra.mxu0 0.0
    %2971 = vmatprep.subr.mxu0 0.0
    %2972 = vmatpush1.msra.mxu0 0.0
    %2973 = vmatprep.subr.mxu0 0.0
    %2974 = vmatpush1.msra.mxu0 0.0
    %2975 = vmatprep.subr.mxu0 0.0
    %2976 = vmatpush1.msra.mxu0 0.0
    %2977 = vmatprep.subr.mxu0 0.0
    %2978 = vmatpush1.msra.mxu0 0.0
    %2979 = vmatprep.subr.mxu0 0.0
    %2980 = vmatpush1.msra.mxu0 0.0
    %2981 = vmatprep.subr.mxu0 0.0
    %2982 = vmatpush1.msra.mxu0 0.0
    %2983 = vmatprep.subr.mxu0 0.0
    %2984 = vmatpush1.msra.mxu0 0.0
    %2985 = vmatprep.subr.mxu0 0.0
    %2986 = vmatpush1.msra.mxu0 0.0
    %2987 = vmatprep.subr.mxu0 0.0
    %2988 = vmatpush1.msra.mxu0 0.0
    %2989 = vmatprep.subr.mxu0 0.0
    %2990 = vmatpush1.msra.mxu0 0.0
    %2991 = vmatprep.subr.mxu0 0.0
    %2992 = vmatpush1.msra.mxu0 0.0
    %2993 = vmatprep.mubr.f32.mxu0 0.0
    %2994 = vmatmul.mubr.f32.gmra.mrb[0].mxu0 %v2924
    %v2995 = vpop.f32.mrb[0].mxu0
    %v2996 = vadd.f32 0.0, %v2995
    %v2997 = vpop.f32.mrb[0].mxu0
    %v2998 = vadd.f32 0.0, %v2997
    %2999 = vdwg.mxu0
    %3000 = vmatprep.subr.mxu0 0.0
    %3001 = vmatpush1.msra.mxu0 %v50
    %3002 = vmatprep.subr.mxu0 0.0
    %3003 = vmatpush1.msra.mxu0 %v53
    %3004 = vmatprep.subr.mxu0 0.0
    %3005 = vmatpush1.msra.mxu0 %v56
    %3006 = vmatprep.subr.mxu0 0.0
    %3007 = vmatpush1.msra.mxu0 %v59
    %3008 = vmatprep.subr.mxu0 0.0
    %3009 = vmatpush1.msra.mxu0 %v62
    %3010 = vmatprep.subr.mxu0 0.0
    %3011 = vmatpush1.msra.mxu0 %v65
    %3012 = vmatprep.subr.mxu0 0.0
    %3013 = vmatpush1.msra.mxu0 %v68
    %3014 = vmatprep.subr.mxu0 0.0
    %3015 = vmatpush1.msra.mxu0 %v71
    %3016 = vmatprep.subr.mxu0 0.0
    %3017 = vmatpush1.msra.mxu0 %v74
    %3018 = vmatprep.subr.mxu0 0.0
    %3019 = vmatpush1.msra.mxu0 %v77
    %3020 = vmatprep.subr.mxu0 0.0
    %3021 = vmatpush1.msra.mxu0 %v80
    %3022 = vmatprep.subr.mxu0 0.0
    %3023 = vmatpush1.msra.mxu0 %v83
    %3024 = vmatprep.subr.mxu0 0.0
    %3025 = vmatpush1.msra.mxu0 %v86
    %3026 = vmatprep.subr.mxu0 0.0
    %3027 = vmatpush1.msra.mxu0 %v89
    %3028 = vmatprep.subr.mxu0 0.0
    %3029 = vmatpush1.msra.mxu0 %v92
    %3030 = vmatprep.subr.mxu0 0.0
    %3031 = vmatpush1.msra.mxu0 %v95
    %3032 = vmatprep.subr.mxu0 0.0
    %3033 = vmatpush1.msra.mxu0 0.0
    %3034 = vmatprep.subr.mxu0 0.0
    %3035 = vmatpush1.msra.mxu0 0.0
    %3036 = vmatprep.subr.mxu0 0.0
    %3037 = vmatpush1.msra.mxu0 0.0
    %3038 = vmatprep.subr.mxu0 0.0
    %3039 = vmatpush1.msra.mxu0 0.0
    %3040 = vmatprep.subr.mxu0 0.0
    %3041 = vmatpush1.msra.mxu0 0.0
    %3042 = vmatprep.subr.mxu0 0.0
    %3043 = vmatpush1.msra.mxu0 0.0
    %3044 = vmatprep.subr.mxu0 0.0
    %3045 = vmatpush1.msra.mxu0 0.0
    %3046 = vmatprep.subr.mxu0 0.0
    %3047 = vmatpush1.msra.mxu0 0.0
    %3048 = vmatprep.subr.mxu0 0.0
    %3049 = vmatpush1.msra.mxu0 0.0
    %3050 = vmatprep.subr.mxu0 0.0
    %3051 = vmatpush1.msra.mxu0 0.0
    %3052 = vmatprep.subr.mxu0 0.0
    %3053 = vmatpush1.msra.mxu0 0.0
    %3054 = vmatprep.subr.mxu0 0.0
    %3055 = vmatpush1.msra.mxu0 0.0
    %3056 = vmatprep.subr.mxu0 0.0
    %3057 = vmatpush1.msra.mxu0 0.0
    %3058 = vmatprep.subr.mxu0 0.0
    %3059 = vmatpush1.msra.mxu0 0.0
    %3060 = vmatprep.subr.mxu0 0.0
    %3061 = vmatpush1.msra.mxu0 0.0
    %3062 = vmatprep.subr.mxu0 0.0
    %3063 = vmatpush1.msra.mxu0 0.0
    %3064 = vmatprep.mubr.f32.mxu0 0.0
    %3065 = vmatmul.mubr.f32.gmra.mrb[0].mxu0 %v2924
    %v3066 = vpop.f32.mrb[0].mxu0
    %v3067 = vadd.f32 0.0, %v3066
    %v3068 = vpop.f32.mrb[0].mxu0
    %3069 = vdwg.mxu0
    %v3070 = vadd.f32 %v2926, %v2996
    %v3071 = vxor.u32 %v3070, 2147483648
    %v3072 = vmul.f32 %v3071, 1.442695
    %v3073 = vpow.pop %v3072
    %v3074 = vadd.f32 %v3073, 1.0
    %v3075 = vrcp.pop %v3074
    %v3076 = vmul.f32 1.0, %v3075
    %v3077 = vadd.f32 %v2927, %v2998
    %v3078 = vxor.u32 %v3077, 2147483648
    %v3079 = vmul.f32 %v3078, 1.442695
    %v3080 = vpow.pop %v3079
    %v3081 = vadd.f32 %v3080, 1.0
    %v3082 = vrcp.pop %v3081
    %v3083 = vmul.f32 1.0, %v3082
    %v3084 = vadd.f32 %v3067, %v101
    %v3085 = vmul.f32 %v3076, %v3084
    %v3086 = vadd.f32 %v2928, %v3085
    %v3087 = vtanh.pop %v3086
    %v3088 = vsub.f32 %v2924, %v3087
    %v3089 = vmul.f32 %v3083, %v3088
    %v3090 = vadd.f32 %v3087, %v3089
    %s3091 = scalar_lea.vmem [#allocation2], 432
    %v3092 = vld [vmem:[%s3091] sm:$0xff]
    %v3093 = vld [vmem:[%s3091 + $0x8] sm:$0xff]
    %v3094 = vld [vmem:[%s3091 + $0x10] sm:$0xff]
    %3095 = vmatprep.subr.mxu0 %v49
    %3096 = vmatpush1.msra.mxu0 %v48
    %3097 = vmatprep.subr.mxu0 %v52
    %3098 = vmatpush1.msra.mxu0 %v51
    %3099 = vmatprep.subr.mxu0 %v55
    %3100 = vmatpush1.msra.mxu0 %v54
    %3101 = vmatprep.subr.mxu0 %v58
    %3102 = vmatpush1.msra.mxu0 %v57
    %3103 = vmatprep.subr.mxu0 %v61
    %3104 = vmatpush1.msra.mxu0 %v60
    %3105 = vmatprep.subr.mxu0 %v64
    %3106 = vmatpush1.msra.mxu0 %v63
    %3107 = vmatprep.subr.mxu0 %v67
    %3108 = vmatpush1.msra.mxu0 %v66
    %3109 = vmatprep.subr.mxu0 %v70
    %3110 = vmatpush1.msra.mxu0 %v69
    %3111 = vmatprep.subr.mxu0 %v73
    %3112 = vmatpush1.msra.mxu0 %v72
    %3113 = vmatprep.subr.mxu0 %v76
    %3114 = vmatpush1.msra.mxu0 %v75
    %3115 = vmatprep.subr.mxu0 %v79
    %3116 = vmatpush1.msra.mxu0 %v78
    %3117 = vmatprep.subr.mxu0 %v82
    %3118 = vmatpush1.msra.mxu0 %v81
    %3119 = vmatprep.subr.mxu0 %v85
    %3120 = vmatpush1.msra.mxu0 %v84
    %3121 = vmatprep.subr.mxu0 %v88
    %3122 = vmatpush1.msra.mxu0 %v87
    %3123 = vmatprep.subr.mxu0 %v91
    %3124 = vmatpush1.msra.mxu0 %v90
    %3125 = vmatprep.subr.mxu0 %v94
    %3126 = vmatpush1.msra.mxu0 %v93
    %3127 = vmatprep.subr.mxu0 0.0
    %3128 = vmatpush1.msra.mxu0 0.0
    %3129 = vmatprep.subr.mxu0 0.0
    %3130 = vmatpush1.msra.mxu0 0.0
    %3131 = vmatprep.subr.mxu0 0.0
    %3132 = vmatpush1.msra.mxu0 0.0
    %3133 = vmatprep.subr.mxu0 0.0
    %3134 = vmatpush1.msra.mxu0 0.0
    %3135 = vmatprep.subr.mxu0 0.0
    %3136 = vmatpush1.msra.mxu0 0.0
    %3137 = vmatprep.subr.mxu0 0.0
    %3138 = vmatpush1.msra.mxu0 0.0
    %3139 = vmatprep.subr.mxu0 0.0
    %3140 = vmatpush1.msra.mxu0 0.0
    %3141 = vmatprep.subr.mxu0 0.0
    %3142 = vmatpush1.msra.mxu0 0.0
    %3143 = vmatprep.subr.mxu0 0.0
    %3144 = vmatpush1.msra.mxu0 0.0
    %3145 = vmatprep.subr.mxu0 0.0
    %3146 = vmatpush1.msra.mxu0 0.0
    %3147 = vmatprep.subr.mxu0 0.0
    %3148 = vmatpush1.msra.mxu0 0.0
    %3149 = vmatprep.subr.mxu0 0.0
    %3150 = vmatpush1.msra.mxu0 0.0
    %3151 = vmatprep.subr.mxu0 0.0
    %3152 = vmatpush1.msra.mxu0 0.0
    %3153 = vmatprep.subr.mxu0 0.0
    %3154 = vmatpush1.msra.mxu0 0.0
    %3155 = vmatprep.subr.mxu0 0.0
    %3156 = vmatpush1.msra.mxu0 0.0
    %3157 = vmatprep.subr.mxu0 0.0
    %3158 = vmatpush1.msra.mxu0 0.0
    %3159 = vmatprep.mubr.f32.mxu0 0.0
    %3160 = vmatmul.mubr.f32.gmra.mrb[0].mxu0 %v3090
    %v3161 = vpop.f32.mrb[0].mxu0
    %v3162 = vadd.f32 0.0, %v3161
    %v3163 = vpop.f32.mrb[0].mxu0
    %v3164 = vadd.f32 0.0, %v3163
    %3165 = vdwg.mxu0
    %3166 = vmatprep.subr.mxu0 0.0
    %3167 = vmatpush1.msra.mxu0 %v50
    %3168 = vmatprep.subr.mxu0 0.0
    %3169 = vmatpush1.msra.mxu0 %v53
    %3170 = vmatprep.subr.mxu0 0.0
    %3171 = vmatpush1.msra.mxu0 %v56
    %3172 = vmatprep.subr.mxu0 0.0
    %3173 = vmatpush1.msra.mxu0 %v59
    %3174 = vmatprep.subr.mxu0 0.0
    %3175 = vmatpush1.msra.mxu0 %v62
    %3176 = vmatprep.subr.mxu0 0.0
    %3177 = vmatpush1.msra.mxu0 %v65
    %3178 = vmatprep.subr.mxu0 0.0
    %3179 = vmatpush1.msra.mxu0 %v68
    %3180 = vmatprep.subr.mxu0 0.0
    %3181 = vmatpush1.msra.mxu0 %v71
    %3182 = vmatprep.subr.mxu0 0.0
    %3183 = vmatpush1.msra.mxu0 %v74
    %3184 = vmatprep.subr.mxu0 0.0
    %3185 = vmatpush1.msra.mxu0 %v77
    %3186 = vmatprep.subr.mxu0 0.0
    %3187 = vmatpush1.msra.mxu0 %v80
    %3188 = vmatprep.subr.mxu0 0.0
    %3189 = vmatpush1.msra.mxu0 %v83
    %3190 = vmatprep.subr.mxu0 0.0
    %3191 = vmatpush1.msra.mxu0 %v86
    %3192 = vmatprep.subr.mxu0 0.0
    %3193 = vmatpush1.msra.mxu0 %v89
    %3194 = vmatprep.subr.mxu0 0.0
    %3195 = vmatpush1.msra.mxu0 %v92
    %3196 = vmatprep.subr.mxu0 0.0
    %3197 = vmatpush1.msra.mxu0 %v95
    %3198 = vmatprep.subr.mxu0 0.0
    %3199 = vmatpush1.msra.mxu0 0.0
    %3200 = vmatprep.subr.mxu0 0.0
    %3201 = vmatpush1.msra.mxu0 0.0
    %3202 = vmatprep.subr.mxu0 0.0
    %3203 = vmatpush1.msra.mxu0 0.0
    %3204 = vmatprep.subr.mxu0 0.0
    %3205 = vmatpush1.msra.mxu0 0.0
    %3206 = vmatprep.subr.mxu0 0.0
    %3207 = vmatpush1.msra.mxu0 0.0
    %3208 = vmatprep.subr.mxu0 0.0
    %3209 = vmatpush1.msra.mxu0 0.0
    %3210 = vmatprep.subr.mxu0 0.0
    %3211 = vmatpush1.msra.mxu0 0.0
    %3212 = vmatprep.subr.mxu0 0.0
    %3213 = vmatpush1.msra.mxu0 0.0
    %3214 = vmatprep.subr.mxu0 0.0
    %3215 = vmatpush1.msra.mxu0 0.0
    %3216 = vmatprep.subr.mxu0 0.0
    %3217 = vmatpush1.msra.mxu0 0.0
    %3218 = vmatprep.subr.mxu0 0.0
    %3219 = vmatpush1.msra.mxu0 0.0
    %3220 = vmatprep.subr.mxu0 0.0
    %3221 = vmatpush1.msra.mxu0 0.0
    %3222 = vmatprep.subr.mxu0 0.0
    %3223 = vmatpush1.msra.mxu0 0.0
    %3224 = vmatprep.subr.mxu0 0.0
    %3225 = vmatpush1.msra.mxu0 0.0
    %3226 = vmatprep.subr.mxu0 0.0
    %3227 = vmatpush1.msra.mxu0 0.0
    %3228 = vmatprep.subr.mxu0 0.0
    %3229 = vmatpush1.msra.mxu0 0.0
    %3230 = vmatprep.mubr.f32.mxu0 0.0
    %3231 = vmatmul.mubr.f32.gmra.mrb[0].mxu0 %v3090
    %v3232 = vpop.f32.mrb[0].mxu0
    %v3233 = vadd.f32 0.0, %v3232
    %v3234 = vpop.f32.mrb[0].mxu0
    %3235 = vdwg.mxu0
    %v3236 = vadd.f32 %v3092, %v3162
    %v3237 = vxor.u32 %v3236, 2147483648
    %v3238 = vmul.f32 %v3237, 1.442695
    %v3239 = vpow.pop %v3238
    %v3240 = vadd.f32 %v3239, 1.0
    %v3241 = vrcp.pop %v3240
    %v3242 = vmul.f32 1.0, %v3241
    %v3243 = vadd.f32 %v3093, %v3164
    %v3244 = vxor.u32 %v3243, 2147483648
    %v3245 = vmul.f32 %v3244, 1.442695
    %v3246 = vpow.pop %v3245
    %v3247 = vadd.f32 %v3246, 1.0
    %v3248 = vrcp.pop %v3247
    %v3249 = vmul.f32 1.0, %v3248
    %v3250 = vadd.f32 %v3233, %v101
    %v3251 = vmul.f32 %v3242, %v3250
    %v3252 = vadd.f32 %v3094, %v3251
    %v3253 = vtanh.pop %v3252
    %v3254 = vsub.f32 %v3090, %v3253
    %v3255 = vmul.f32 %v3249, %v3254
    %v3256 = vadd.f32 %v3253, %v3255
    %s3257 = scalar_lea.vmem [#allocation2], 456
    %v3258 = vld [vmem:[%s3257] sm:$0xff]
    %v3259 = vld [vmem:[%s3257 + $0x8] sm:$0xff]
    %v3260 = vld [vmem:[%s3257 + $0x10] sm:$0xff]
    %3261 = vmatprep.subr.mxu0 %v49
    %3262 = vmatpush1.msra.mxu0 %v48
    %3263 = vmatprep.subr.mxu0 %v52
    %3264 = vmatpush1.msra.mxu0 %v51
    %3265 = vmatprep.subr.mxu0 %v55
    %3266 = vmatpush1.msra.mxu0 %v54
    %3267 = vmatprep.subr.mxu0 %v58
    %3268 = vmatpush1.msra.mxu0 %v57
    %3269 = vmatprep.subr.mxu0 %v61
    %3270 = vmatpush1.msra.mxu0 %v60
    %3271 = vmatprep.subr.mxu0 %v64
    %3272 = vmatpush1.msra.mxu0 %v63
    %3273 = vmatprep.subr.mxu0 %v67
    %3274 = vmatpush1.msra.mxu0 %v66
    %3275 = vmatprep.subr.mxu0 %v70
    %3276 = vmatpush1.msra.mxu0 %v69
    %3277 = vmatprep.subr.mxu0 %v73
    %3278 = vmatpush1.msra.mxu0 %v72
    %3279 = vmatprep.subr.mxu0 %v76
    %3280 = vmatpush1.msra.mxu0 %v75
    %3281 = vmatprep.subr.mxu0 %v79
    %3282 = vmatpush1.msra.mxu0 %v78
    %3283 = vmatprep.subr.mxu0 %v82
    %3284 = vmatpush1.msra.mxu0 %v81
    %3285 = vmatprep.subr.mxu0 %v85
    %3286 = vmatpush1.msra.mxu0 %v84
    %3287 = vmatprep.subr.mxu0 %v88
    %3288 = vmatpush1.msra.mxu0 %v87
    %3289 = vmatprep.subr.mxu0 %v91
    %3290 = vmatpush1.msra.mxu0 %v90
    %3291 = vmatprep.subr.mxu0 %v94
    %3292 = vmatpush1.msra.mxu0 %v93
    %3293 = vmatprep.subr.mxu0 0.0
    %3294 = vmatpush1.msra.mxu0 0.0
    %3295 = vmatprep.subr.mxu0 0.0
    %3296 = vmatpush1.msra.mxu0 0.0
    %3297 = vmatprep.subr.mxu0 0.0
    %3298 = vmatpush1.msra.mxu0 0.0
    %3299 = vmatprep.subr.mxu0 0.0
    %3300 = vmatpush1.msra.mxu0 0.0
    %3301 = vmatprep.subr.mxu0 0.0
    %3302 = vmatpush1.msra.mxu0 0.0
    %3303 = vmatprep.subr.mxu0 0.0
    %3304 = vmatpush1.msra.mxu0 0.0
    %3305 = vmatprep.subr.mxu0 0.0
    %3306 = vmatpush1.msra.mxu0 0.0
    %3307 = vmatprep.subr.mxu0 0.0
    %3308 = vmatpush1.msra.mxu0 0.0
    %3309 = vmatprep.subr.mxu0 0.0
    %3310 = vmatpush1.msra.mxu0 0.0
    %3311 = vmatprep.subr.mxu0 0.0
    %3312 = vmatpush1.msra.mxu0 0.0
    %3313 = vmatprep.subr.mxu0 0.0
    %3314 = vmatpush1.msra.mxu0 0.0
    %3315 = vmatprep.subr.mxu0 0.0
    %3316 = vmatpush1.msra.mxu0 0.0
    %3317 = vmatprep.subr.mxu0 0.0
    %3318 = vmatpush1.msra.mxu0 0.0
    %3319 = vmatprep.subr.mxu0 0.0
    %3320 = vmatpush1.msra.mxu0 0.0
    %3321 = vmatprep.subr.mxu0 0.0
    %3322 = vmatpush1.msra.mxu0 0.0
    %3323 = vmatprep.subr.mxu0 0.0
    %3324 = vmatpush1.msra.mxu0 0.0
    %3325 = vmatprep.mubr.f32.mxu0 0.0
    %3326 = vmatmul.mubr.f32.gmra.mrb[0].mxu0 %v3256
    %v3327 = vpop.f32.mrb[0].mxu0
    %v3328 = vadd.f32 0.0, %v3327
    %v3329 = vpop.f32.mrb[0].mxu0
    %v3330 = vadd.f32 0.0, %v3329
    %3331 = vdwg.mxu0
    %3332 = vmatprep.subr.mxu0 0.0
    %3333 = vmatpush1.msra.mxu0 %v50
    %3334 = vmatprep.subr.mxu0 0.0
    %3335 = vmatpush1.msra.mxu0 %v53
    %3336 = vmatprep.subr.mxu0 0.0
    %3337 = vmatpush1.msra.mxu0 %v56
    %3338 = vmatprep.subr.mxu0 0.0
    %3339 = vmatpush1.msra.mxu0 %v59
    %3340 = vmatprep.subr.mxu0 0.0
    %3341 = vmatpush1.msra.mxu0 %v62
    %3342 = vmatprep.subr.mxu0 0.0
    %3343 = vmatpush1.msra.mxu0 %v65
    %3344 = vmatprep.subr.mxu0 0.0
    %3345 = vmatpush1.msra.mxu0 %v68
    %3346 = vmatprep.subr.mxu0 0.0
    %3347 = vmatpush1.msra.mxu0 %v71
    %3348 = vmatprep.subr.mxu0 0.0
    %3349 = vmatpush1.msra.mxu0 %v74
    %3350 = vmatprep.subr.mxu0 0.0
    %3351 = vmatpush1.msra.mxu0 %v77
    %3352 = vmatprep.subr.mxu0 0.0
    %3353 = vmatpush1.msra.mxu0 %v80
    %3354 = vmatprep.subr.mxu0 0.0
    %3355 = vmatpush1.msra.mxu0 %v83
    %3356 = vmatprep.subr.mxu0 0.0
    %3357 = vmatpush1.msra.mxu0 %v86
    %3358 = vmatprep.subr.mxu0 0.0
    %3359 = vmatpush1.msra.mxu0 %v89
    %3360 = vmatprep.subr.mxu0 0.0
    %3361 = vmatpush1.msra.mxu0 %v92
    %3362 = vmatprep.subr.mxu0 0.0
    %3363 = vmatpush1.msra.mxu0 %v95
    %3364 = vmatprep.subr.mxu0 0.0
    %3365 = vmatpush1.msra.mxu0 0.0
    %3366 = vmatprep.subr.mxu0 0.0
    %3367 = vmatpush1.msra.mxu0 0.0
    %3368 = vmatprep.subr.mxu0 0.0
    %3369 = vmatpush1.msra.mxu0 0.0
    %3370 = vmatprep.subr.mxu0 0.0
    %3371 = vmatpush1.msra.mxu0 0.0
    %3372 = vmatprep.subr.mxu0 0.0
    %3373 = vmatpush1.msra.mxu0 0.0
    %3374 = vmatprep.subr.mxu0 0.0
    %3375 = vmatpush1.msra.mxu0 0.0
    %3376 = vmatprep.subr.mxu0 0.0
    %3377 = vmatpush1.msra.mxu0 0.0
    %3378 = vmatprep.subr.mxu0 0.0
    %3379 = vmatpush1.msra.mxu0 0.0
    %3380 = vmatprep.subr.mxu0 0.0
    %3381 = vmatpush1.msra.mxu0 0.0
    %3382 = vmatprep.subr.mxu0 0.0
    %3383 = vmatpush1.msra.mxu0 0.0
    %3384 = vmatprep.subr.mxu0 0.0
    %3385 = vmatpush1.msra.mxu0 0.0
    %3386 = vmatprep.subr.mxu0 0.0
    %3387 = vmatpush1.msra.mxu0 0.0
    %3388 = vmatprep.subr.mxu0 0.0
    %3389 = vmatpush1.msra.mxu0 0.0
    %3390 = vmatprep.subr.mxu0 0.0
    %3391 = vmatpush1.msra.mxu0 0.0
    %3392 = vmatprep.subr.mxu0 0.0
    %3393 = vmatpush1.msra.mxu0 0.0
    %3394 = vmatprep.subr.mxu0 0.0
    %3395 = vmatpush1.msra.mxu0 0.0
    %3396 = vmatprep.mubr.f32.mxu0 0.0
    %3397 = vmatmul.mubr.f32.gmra.mrb[0].mxu0 %v3256
    %v3398 = vpop.f32.mrb[0].mxu0
    %v3399 = vadd.f32 0.0, %v3398
    %v3400 = vpop.f32.mrb[0].mxu0
    %3401 = vdwg.mxu0
    %v3402 = vadd.f32 %v3258, %v3328
    %v3403 = vxor.u32 %v3402, 2147483648
    %v3404 = vmul.f32 %v3403, 1.442695
    %v3405 = vpow.pop %v3404
    %v3406 = vadd.f32 %v3405, 1.0
    %v3407 = vrcp.pop %v3406
    %v3408 = vmul.f32 1.0, %v3407
    %v3409 = vadd.f32 %v3259, %v3330
    %v3410 = vxor.u32 %v3409, 2147483648
    %v3411 = vmul.f32 %v3410, 1.442695
    %v3412 = vpow.pop %v3411
    %v3413 = vadd.f32 %v3412, 1.0
    %v3414 = vrcp.pop %v3413
    %v3415 = vmul.f32 1.0, %v3414
    %v3416 = vadd.f32 %v3399, %v101
    %v3417 = vmul.f32 %v3408, %v3416
    %v3418 = vadd.f32 %v3260, %v3417
    %v3419 = vtanh.pop %v3418
    %v3420 = vsub.f32 %v3256, %v3419
    %v3421 = vmul.f32 %v3415, %v3420
    %v3422 = vadd.f32 %v3419, %v3421
    %s3423 = scalar_lea.vmem [#allocation2], 480
    %v3424 = vld [vmem:[%s3423] sm:$0xff]
    %v3425 = vld [vmem:[%s3423 + $0x8] sm:$0xff]
    %v3426 = vld [vmem:[%s3423 + $0x10] sm:$0xff]
    %3427 = vmatprep.subr.mxu0 %v49
    %3428 = vmatpush1.msra.mxu0 %v48
    %3429 = vmatprep.subr.mxu0 %v52
    %3430 = vmatpush1.msra.mxu0 %v51
    %3431 = vmatprep.subr.mxu0 %v55
    %3432 = vmatpush1.msra.mxu0 %v54
    %3433 = vmatprep.subr.mxu0 %v58
    %3434 = vmatpush1.msra.mxu0 %v57
    %3435 = vmatprep.subr.mxu0 %v61
    %3436 = vmatpush1.msra.mxu0 %v60
    %3437 = vmatprep.subr.mxu0 %v64
    %3438 = vmatpush1.msra.mxu0 %v63
    %3439 = vmatprep.subr.mxu0 %v67
    %3440 = vmatpush1.msra.mxu0 %v66
    %3441 = vmatprep.subr.mxu0 %v70
    %3442 = vmatpush1.msra.mxu0 %v69
    %3443 = vmatprep.subr.mxu0 %v73
    %3444 = vmatpush1.msra.mxu0 %v72
    %3445 = vmatprep.subr.mxu0 %v76
    %3446 = vmatpush1.msra.mxu0 %v75
    %3447 = vmatprep.subr.mxu0 %v79
    %3448 = vmatpush1.msra.mxu0 %v78
    %3449 = vmatprep.subr.mxu0 %v82
    %3450 = vmatpush1.msra.mxu0 %v81
    %3451 = vmatprep.subr.mxu0 %v85
    %3452 = vmatpush1.msra.mxu0 %v84
    %3453 = vmatprep.subr.mxu0 %v88
    %3454 = vmatpush1.msra.mxu0 %v87
    %3455 = vmatprep.subr.mxu0 %v91
    %3456 = vmatpush1.msra.mxu0 %v90
    %3457 = vmatprep.subr.mxu0 %v94
    %3458 = vmatpush1.msra.mxu0 %v93
    %3459 = vmatprep.subr.mxu0 0.0
    %3460 = vmatpush1.msra.mxu0 0.0
    %3461 = vmatprep.subr.mxu0 0.0
    %3462 = vmatpush1.msra.mxu0 0.0
    %3463 = vmatprep.subr.mxu0 0.0
    %3464 = vmatpush1.msra.mxu0 0.0
    %3465 = vmatprep.subr.mxu0 0.0
    %3466 = vmatpush1.msra.mxu0 0.0
    %3467 = vmatprep.subr.mxu0 0.0
    %3468 = vmatpush1.msra.mxu0 0.0
    %3469 = vmatprep.subr.mxu0 0.0
    %3470 = vmatpush1.msra.mxu0 0.0
    %3471 = vmatprep.subr.mxu0 0.0
    %3472 = vmatpush1.msra.mxu0 0.0
    %3473 = vmatprep.subr.mxu0 0.0
    %3474 = vmatpush1.msra.mxu0 0.0
    %3475 = vmatprep.subr.mxu0 0.0
    %3476 = vmatpush1.msra.mxu0 0.0
    %3477 = vmatprep.subr.mxu0 0.0
    %3478 = vmatpush1.msra.mxu0 0.0
    %3479 = vmatprep.subr.mxu0 0.0
    %3480 = vmatpush1.msra.mxu0 0.0
    %3481 = vmatprep.subr.mxu0 0.0
    %3482 = vmatpush1.msra.mxu0 0.0
    %3483 = vmatprep.subr.mxu0 0.0
    %3484 = vmatpush1.msra.mxu0 0.0
    %3485 = vmatprep.subr.mxu0 0.0
    %3486 = vmatpush1.msra.mxu0 0.0
    %3487 = vmatprep.subr.mxu0 0.0
    %3488 = vmatpush1.msra.mxu0 0.0
    %3489 = vmatprep.subr.mxu0 0.0
    %3490 = vmatpush1.msra.mxu0 0.0
    %3491 = vmatprep.mubr.f32.mxu0 0.0
    %3492 = vmatmul.mubr.f32.gmra.mrb[0].mxu0 %v3422
    %v3493 = vpop.f32.mrb[0].mxu0
    %v3494 = vadd.f32 0.0, %v3493
    %v3495 = vpop.f32.mrb[0].mxu0
    %v3496 = vadd.f32 0.0, %v3495
    %3497 = vdwg.mxu0
    %3498 = vmatprep.subr.mxu0 0.0
    %3499 = vmatpush1.msra.mxu0 %v50
    %3500 = vmatprep.subr.mxu0 0.0
    %3501 = vmatpush1.msra.mxu0 %v53
    %3502 = vmatprep.subr.mxu0 0.0
    %3503 = vmatpush1.msra.mxu0 %v56
    %3504 = vmatprep.subr.mxu0 0.0
    %3505 = vmatpush1.msra.mxu0 %v59
    %3506 = vmatprep.subr.mxu0 0.0
    %3507 = vmatpush1.msra.mxu0 %v62
    %3508 = vmatprep.subr.mxu0 0.0
    %3509 = vmatpush1.msra.mxu0 %v65
    %3510 = vmatprep.subr.mxu0 0.0
    %3511 = vmatpush1.msra.mxu0 %v68
    %3512 = vmatprep.subr.mxu0 0.0
    %3513 = vmatpush1.msra.mxu0 %v71
    %3514 = vmatprep.subr.mxu0 0.0
    %3515 = vmatpush1.msra.mxu0 %v74
    %3516 = vmatprep.subr.mxu0 0.0
    %3517 = vmatpush1.msra.mxu0 %v77
    %3518 = vmatprep.subr.mxu0 0.0
    %3519 = vmatpush1.msra.mxu0 %v80
    %3520 = vmatprep.subr.mxu0 0.0
    %3521 = vmatpush1.msra.mxu0 %v83
    %3522 = vmatprep.subr.mxu0 0.0
    %3523 = vmatpush1.msra.mxu0 %v86
    %3524 = vmatprep.subr.mxu0 0.0
    %3525 = vmatpush1.msra.mxu0 %v89
    %3526 = vmatprep.subr.mxu0 0.0
    %3527 = vmatpush1.msra.mxu0 %v92
    %3528 = vmatprep.subr.mxu0 0.0
    %3529 = vmatpush1.msra.mxu0 %v95
    %3530 = vmatprep.subr.mxu0 0.0
    %3531 = vmatpush1.msra.mxu0 0.0
    %3532 = vmatprep.subr.mxu0 0.0
    %3533 = vmatpush1.msra.mxu0 0.0
    %3534 = vmatprep.subr.mxu0 0.0
    %3535 = vmatpush1.msra.mxu0 0.0
    %3536 = vmatprep.subr.mxu0 0.0
    %3537 = vmatpush1.msra.mxu0 0.0
    %3538 = vmatprep.subr.mxu0 0.0
    %3539 = vmatpush1.msra.mxu0 0.0
    %3540 = vmatprep.subr.mxu0 0.0
    %3541 = vmatpush1.msra.mxu0 0.0
    %3542 = vmatprep.subr.mxu0 0.0
    %3543 = vmatpush1.msra.mxu0 0.0
    %3544 = vmatprep.subr.mxu0 0.0
    %3545 = vmatpush1.msra.mxu0 0.0
    %3546 = vmatprep.subr.mxu0 0.0
    %3547 = vmatpush1.msra.mxu0 0.0
    %3548 = vmatprep.subr.mxu0 0.0
    %3549 = vmatpush1.msra.mxu0 0.0
    %3550 = vmatprep.subr.mxu0 0.0
    %3551 = vmatpush1.msra.mxu0 0.0
    %3552 = vmatprep.subr.mxu0 0.0
    %3553 = vmatpush1.msra.mxu0 0.0
    %3554 = vmatprep.subr.mxu0 0.0
    %3555 = vmatpush1.msra.mxu0 0.0
    %3556 = vmatprep.subr.mxu0 0.0
    %3557 = vmatpush1.msra.mxu0 0.0
    %3558 = vmatprep.subr.mxu0 0.0
    %3559 = vmatpush1.msra.mxu0 0.0
    %3560 = vmatprep.subr.mxu0 0.0
    %3561 = vmatpush1.msra.mxu0 0.0
    %3562 = vmatprep.mubr.f32.mxu0 0.0
    %3563 = vmatmul.mubr.f32.gmra.mrb[0].mxu0 %v3422
    %v3564 = vpop.f32.mrb[0].mxu0
    %v3565 = vadd.f32 0.0, %v3564
    %v3566 = vpop.f32.mrb[0].mxu0
    %3567 = vdwg.mxu0
    %v3568 = vadd.f32 %v3424, %v3494
    %v3569 = vxor.u32 %v3568, 2147483648
    %v3570 = vmul.f32 %v3569, 1.442695
    %v3571 = vpow.pop %v3570
    %v3572 = vadd.f32 %v3571, 1.0
    %v3573 = vrcp.pop %v3572
    %v3574 = vmul.f32 1.0, %v3573
    %v3575 = vadd.f32 %v3425, %v3496
    %v3576 = vxor.u32 %v3575, 2147483648
    %v3577 = vmul.f32 %v3576, 1.442695
    %v3578 = vpow.pop %v3577
    %v3579 = vadd.f32 %v3578, 1.0
    %v3580 = vrcp.pop %v3579
    %v3581 = vmul.f32 1.0, %v3580
    %v3582 = vadd.f32 %v3565, %v101
    %v3583 = vmul.f32 %v3574, %v3582
    %v3584 = vadd.f32 %v3426, %v3583
    %v3585 = vtanh.pop %v3584
    %v3586 = vsub.f32 %v3422, %v3585
    %v3587 = vmul.f32 %v3581, %v3586
    %v3588 = vadd.f32 %v3585, %v3587
    %s3589 = scalar_lea.vmem [#allocation2], 504
    %v3590 = vld [vmem:[%s3589] sm:$0xff]
    %v3591 = vld [vmem:[%s3589 + $0x8] sm:$0xff]
    %v3592 = vld [vmem:[%s3589 + $0x10] sm:$0xff]
    %3593 = vmatprep.subr.mxu0 %v49
    %3594 = vmatpush1.msra.mxu0 %v48
    %3595 = vmatprep.subr.mxu0 %v52
    %3596 = vmatpush1.msra.mxu0 %v51
    %3597 = vmatprep.subr.mxu0 %v55
    %3598 = vmatpush1.msra.mxu0 %v54
    %3599 = vmatprep.subr.mxu0 %v58
    %3600 = vmatpush1.msra.mxu0 %v57
    %3601 = vmatprep.subr.mxu0 %v61
    %3602 = vmatpush1.msra.mxu0 %v60
    %3603 = vmatprep.subr.mxu0 %v64
    %3604 = vmatpush1.msra.mxu0 %v63
    %3605 = vmatprep.subr.mxu0 %v67
    %3606 = vmatpush1.msra.mxu0 %v66
    %3607 = vmatprep.subr.mxu0 %v70
    %3608 = vmatpush1.msra.mxu0 %v69
    %3609 = vmatprep.subr.mxu0 %v73
    %3610 = vmatpush1.msra.mxu0 %v72
    %3611 = vmatprep.subr.mxu0 %v76
    %3612 = vmatpush1.msra.mxu0 %v75
    %3613 = vmatprep.subr.mxu0 %v79
    %3614 = vmatpush1.msra.mxu0 %v78
    %3615 = vmatprep.subr.mxu0 %v82
    %3616 = vmatpush1.msra.mxu0 %v81
    %3617 = vmatprep.subr.mxu0 %v85
    %3618 = vmatpush1.msra.mxu0 %v84
    %3619 = vmatprep.subr.mxu0 %v88
    %3620 = vmatpush1.msra.mxu0 %v87
    %3621 = vmatprep.subr.mxu0 %v91
    %3622 = vmatpush1.msra.mxu0 %v90
    %3623 = vmatprep.subr.mxu0 %v94
    %3624 = vmatpush1.msra.mxu0 %v93
    %3625 = vmatprep.subr.mxu0 0.0
    %3626 = vmatpush1.msra.mxu0 0.0
    %3627 = vmatprep.subr.mxu0 0.0
    %3628 = vmatpush1.msra.mxu0 0.0
    %3629 = vmatprep.subr.mxu0 0.0
    %3630 = vmatpush1.msra.mxu0 0.0
    %3631 = vmatprep.subr.mxu0 0.0
    %3632 = vmatpush1.msra.mxu0 0.0
    %3633 = vmatprep.subr.mxu0 0.0
    %3634 = vmatpush1.msra.mxu0 0.0
    %3635 = vmatprep.subr.mxu0 0.0
    %3636 = vmatpush1.msra.mxu0 0.0
    %3637 = vmatprep.subr.mxu0 0.0
    %3638 = vmatpush1.msra.mxu0 0.0
    %3639 = vmatprep.subr.mxu0 0.0
    %3640 = vmatpush1.msra.mxu0 0.0
    %3641 = vmatprep.subr.mxu0 0.0
    %3642 = vmatpush1.msra.mxu0 0.0
    %3643 = vmatprep.subr.mxu0 0.0
    %3644 = vmatpush1.msra.mxu0 0.0
    %3645 = vmatprep.subr.mxu0 0.0
    %3646 = vmatpush1.msra.mxu0 0.0
    %3647 = vmatprep.subr.mxu0 0.0
    %3648 = vmatpush1.msra.mxu0 0.0
    %3649 = vmatprep.subr.mxu0 0.0
    %3650 = vmatpush1.msra.mxu0 0.0
    %3651 = vmatprep.subr.mxu0 0.0
    %3652 = vmatpush1.msra.mxu0 0.0
    %3653 = vmatprep.subr.mxu0 0.0
    %3654 = vmatpush1.msra.mxu0 0.0
    %3655 = vmatprep.subr.mxu0 0.0
    %3656 = vmatpush1.msra.mxu0 0.0
    %3657 = vmatprep.mubr.f32.mxu0 0.0
    %3658 = vmatmul.mubr.f32.gmra.mrb[0].mxu0 %v3588
    %v3659 = vpop.f32.mrb[0].mxu0
    %v3660 = vadd.f32 0.0, %v3659
    %v3661 = vpop.f32.mrb[0].mxu0
    %v3662 = vadd.f32 0.0, %v3661
    %3663 = vdwg.mxu0
    %3664 = vmatprep.subr.mxu0 0.0
    %3665 = vmatpush1.msra.mxu0 %v50
    %3666 = vmatprep.subr.mxu0 0.0
    %3667 = vmatpush1.msra.mxu0 %v53
    %3668 = vmatprep.subr.mxu0 0.0
    %3669 = vmatpush1.msra.mxu0 %v56
    %3670 = vmatprep.subr.mxu0 0.0
    %3671 = vmatpush1.msra.mxu0 %v59
    %3672 = vmatprep.subr.mxu0 0.0
    %3673 = vmatpush1.msra.mxu0 %v62
    %3674 = vmatprep.subr.mxu0 0.0
    %3675 = vmatpush1.msra.mxu0 %v65
    %3676 = vmatprep.subr.mxu0 0.0
    %3677 = vmatpush1.msra.mxu0 %v68
    %3678 = vmatprep.subr.mxu0 0.0
    %3679 = vmatpush1.msra.mxu0 %v71
    %3680 = vmatprep.subr.mxu0 0.0
    %3681 = vmatpush1.msra.mxu0 %v74
    %3682 = vmatprep.subr.mxu0 0.0
    %3683 = vmatpush1.msra.mxu0 %v77
    %3684 = vmatprep.subr.mxu0 0.0
    %3685 = vmatpush1.msra.mxu0 %v80
    %3686 = vmatprep.subr.mxu0 0.0
    %3687 = vmatpush1.msra.mxu0 %v83
    %3688 = vmatprep.subr.mxu0 0.0
    %3689 = vmatpush1.msra.mxu0 %v86
    %3690 = vmatprep.subr.mxu0 0.0
    %3691 = vmatpush1.msra.mxu0 %v89
    %3692 = vmatprep.subr.mxu0 0.0
    %3693 = vmatpush1.msra.mxu0 %v92
    %3694 = vmatprep.subr.mxu0 0.0
    %3695 = vmatpush1.msra.mxu0 %v95
    %3696 = vmatprep.subr.mxu0 0.0
    %3697 = vmatpush1.msra.mxu0 0.0
    %3698 = vmatprep.subr.mxu0 0.0
    %3699 = vmatpush1.msra.mxu0 0.0
    %3700 = vmatprep.subr.mxu0 0.0
    %3701 = vmatpush1.msra.mxu0 0.0
    %3702 = vmatprep.subr.mxu0 0.0
    %3703 = vmatpush1.msra.mxu0 0.0
    %3704 = vmatprep.subr.mxu0 0.0
    %3705 = vmatpush1.msra.mxu0 0.0
    %3706 = vmatprep.subr.mxu0 0.0
    %3707 = vmatpush1.msra.mxu0 0.0
    %3708 = vmatprep.subr.mxu0 0.0
    %3709 = vmatpush1.msra.mxu0 0.0
    %3710 = vmatprep.subr.mxu0 0.0
    %3711 = vmatpush1.msra.mxu0 0.0
    %3712 = vmatprep.subr.mxu0 0.0
    %3713 = vmatpush1.msra.mxu0 0.0
    %3714 = vmatprep.subr.mxu0 0.0
    %3715 = vmatpush1.msra.mxu0 0.0
    %3716 = vmatprep.subr.mxu0 0.0
    %3717 = vmatpush1.msra.mxu0 0.0
    %3718 = vmatprep.subr.mxu0 0.0
    %3719 = vmatpush1.msra.mxu0 0.0
    %3720 = vmatprep.subr.mxu0 0.0
    %3721 = vmatpush1.msra.mxu0 0.0
    %3722 = vmatprep.subr.mxu0 0.0
    %3723 = vmatpush1.msra.mxu0 0.0
    %3724 = vmatprep.subr.mxu0 0.0
    %3725 = vmatpush1.msra.mxu0 0.0
    %3726 = vmatprep.subr.mxu0 0.0
    %3727 = vmatpush1.msra.mxu0 0.0
    %3728 = vmatprep.mubr.f32.mxu0 0.0
    %3729 = vmatmul.mubr.f32.gmra.mrb[0].mxu0 %v3588
    %v3730 = vpop.f32.mrb[0].mxu0
    %v3731 = vadd.f32 0.0, %v3730
    %v3732 = vpop.f32.mrb[0].mxu0
    %3733 = vdwg.mxu0
    %v3734 = vadd.f32 %v3590, %v3660
    %v3735 = vxor.u32 %v3734, 2147483648
    %v3736 = vmul.f32 %v3735, 1.442695
    %v3737 = vpow.pop %v3736
    %v3738 = vadd.f32 %v3737, 1.0
    %v3739 = vrcp.pop %v3738
    %v3740 = vmul.f32 1.0, %v3739
    %v3741 = vadd.f32 %v3591, %v3662
    %v3742 = vxor.u32 %v3741, 2147483648
    %v3743 = vmul.f32 %v3742, 1.442695
    %v3744 = vpow.pop %v3743
    %v3745 = vadd.f32 %v3744, 1.0
    %v3746 = vrcp.pop %v3745
    %v3747 = vmul.f32 1.0, %v3746
    %v3748 = vadd.f32 %v3731, %v101
    %v3749 = vmul.f32 %v3740, %v3748
    %v3750 = vadd.f32 %v3592, %v3749
    %v3751 = vtanh.pop %v3750
    %v3752 = vsub.f32 %v3588, %v3751
    %v3753 = vmul.f32 %v3747, %v3752
    %v3754 = vadd.f32 %v3751, %v3753
    %s3755 = scalar_lea.vmem [#allocation2], 528
    %v3756 = vld [vmem:[%s3755] sm:$0xff]
    %v3757 = vld [vmem:[%s3755 + $0x8] sm:$0xff]
    %v3758 = vld [vmem:[%s3755 + $0x10] sm:$0xff]
    %3759 = vmatprep.subr.mxu0 %v49
    %3760 = vmatpush1.msra.mxu0 %v48
    %3761 = vmatprep.subr.mxu0 %v52
    %3762 = vmatpush1.msra.mxu0 %v51
    %3763 = vmatprep.subr.mxu0 %v55
    %3764 = vmatpush1.msra.mxu0 %v54
    %3765 = vmatprep.subr.mxu0 %v58
    %3766 = vmatpush1.msra.mxu0 %v57
    %3767 = vmatprep.subr.mxu0 %v61
    %3768 = vmatpush1.msra.mxu0 %v60
    %3769 = vmatprep.subr.mxu0 %v64
    %3770 = vmatpush1.msra.mxu0 %v63
    %3771 = vmatprep.subr.mxu0 %v67
    %3772 = vmatpush1.msra.mxu0 %v66
    %3773 = vmatprep.subr.mxu0 %v70
    %3774 = vmatpush1.msra.mxu0 %v69
    %3775 = vmatprep.subr.mxu0 %v73
    %3776 = vmatpush1.msra.mxu0 %v72
    %3777 = vmatprep.subr.mxu0 %v76
    %3778 = vmatpush1.msra.mxu0 %v75
    %3779 = vmatprep.subr.mxu0 %v79
    %3780 = vmatpush1.msra.mxu0 %v78
    %3781 = vmatprep.subr.mxu0 %v82
    %3782 = vmatpush1.msra.mxu0 %v81
    %3783 = vmatprep.subr.mxu0 %v85
    %3784 = vmatpush1.msra.mxu0 %v84
    %3785 = vmatprep.subr.mxu0 %v88
    %3786 = vmatpush1.msra.mxu0 %v87
    %3787 = vmatprep.subr.mxu0 %v91
    %3788 = vmatpush1.msra.mxu0 %v90
    %3789 = vmatprep.subr.mxu0 %v94
    %3790 = vmatpush1.msra.mxu0 %v93
    %3791 = vmatprep.subr.mxu0 0.0
    %3792 = vmatpush1.msra.mxu0 0.0
    %3793 = vmatprep.subr.mxu0 0.0
    %3794 = vmatpush1.msra.mxu0 0.0
    %3795 = vmatprep.subr.mxu0 0.0
    %3796 = vmatpush1.msra.mxu0 0.0
    %3797 = vmatprep.subr.mxu0 0.0
    %3798 = vmatpush1.msra.mxu0 0.0
    %3799 = vmatprep.subr.mxu0 0.0
    %3800 = vmatpush1.msra.mxu0 0.0
    %3801 = vmatprep.subr.mxu0 0.0
    %3802 = vmatpush1.msra.mxu0 0.0
    %3803 = vmatprep.subr.mxu0 0.0
    %3804 = vmatpush1.msra.mxu0 0.0
    %3805 = vmatprep.subr.mxu0 0.0
    %3806 = vmatpush1.msra.mxu0 0.0
    %3807 = vmatprep.subr.mxu0 0.0
    %3808 = vmatpush1.msra.mxu0 0.0
    %3809 = vmatprep.subr.mxu0 0.0
    %3810 = vmatpush1.msra.mxu0 0.0
    %3811 = vmatprep.subr.mxu0 0.0
    %3812 = vmatpush1.msra.mxu0 0.0
    %3813 = vmatprep.subr.mxu0 0.0
    %3814 = vmatpush1.msra.mxu0 0.0
    %3815 = vmatprep.subr.mxu0 0.0
    %3816 = vmatpush1.msra.mxu0 0.0
    %3817 = vmatprep.subr.mxu0 0.0
    %3818 = vmatpush1.msra.mxu0 0.0
    %3819 = vmatprep.subr.mxu0 0.0
    %3820 = vmatpush1.msra.mxu0 0.0
    %3821 = vmatprep.subr.mxu0 0.0
    %3822 = vmatpush1.msra.mxu0 0.0
    %3823 = vmatprep.mubr.f32.mxu0 0.0
    %3824 = vmatmul.mubr.f32.gmra.mrb[0].mxu0 %v3754
    %v3825 = vpop.f32.mrb[0].mxu0
    %v3826 = vadd.f32 0.0, %v3825
    %v3827 = vpop.f32.mrb[0].mxu0
    %v3828 = vadd.f32 0.0, %v3827
    %3829 = vdwg.mxu0
    %3830 = vmatprep.subr.mxu0 0.0
    %3831 = vmatpush1.msra.mxu0 %v50
    %3832 = vmatprep.subr.mxu0 0.0
    %3833 = vmatpush1.msra.mxu0 %v53
    %3834 = vmatprep.subr.mxu0 0.0
    %3835 = vmatpush1.msra.mxu0 %v56
    %3836 = vmatprep.subr.mxu0 0.0
    %3837 = vmatpush1.msra.mxu0 %v59
    %3838 = vmatprep.subr.mxu0 0.0
    %3839 = vmatpush1.msra.mxu0 %v62
    %3840 = vmatprep.subr.mxu0 0.0
    %3841 = vmatpush1.msra.mxu0 %v65
    %3842 = vmatprep.subr.mxu0 0.0
    %3843 = vmatpush1.msra.mxu0 %v68
    %3844 = vmatprep.subr.mxu0 0.0
    %3845 = vmatpush1.msra.mxu0 %v71
    %3846 = vmatprep.subr.mxu0 0.0
    %3847 = vmatpush1.msra.mxu0 %v74
    %3848 = vmatprep.subr.mxu0 0.0
    %3849 = vmatpush1.msra.mxu0 %v77
    %3850 = vmatprep.subr.mxu0 0.0
    %3851 = vmatpush1.msra.mxu0 %v80
    %3852 = vmatprep.subr.mxu0 0.0
    %3853 = vmatpush1.msra.mxu0 %v83
    %3854 = vmatprep.subr.mxu0 0.0
    %3855 = vmatpush1.msra.mxu0 %v86
    %3856 = vmatprep.subr.mxu0 0.0
    %3857 = vmatpush1.msra.mxu0 %v89
    %3858 = vmatprep.subr.mxu0 0.0
    %3859 = vmatpush1.msra.mxu0 %v92
    %3860 = vmatprep.subr.mxu0 0.0
    %3861 = vmatpush1.msra.mxu0 %v95
    %3862 = vmatprep.subr.mxu0 0.0
    %3863 = vmatpush1.msra.mxu0 0.0
    %3864 = vmatprep.subr.mxu0 0.0
    %3865 = vmatpush1.msra.mxu0 0.0
    %3866 = vmatprep.subr.mxu0 0.0
    %3867 = vmatpush1.msra.mxu0 0.0
    %3868 = vmatprep.subr.mxu0 0.0
    %3869 = vmatpush1.msra.mxu0 0.0
    %3870 = vmatprep.subr.mxu0 0.0
    %3871 = vmatpush1.msra.mxu0 0.0
    %3872 = vmatprep.subr.mxu0 0.0
    %3873 = vmatpush1.msra.mxu0 0.0
    %3874 = vmatprep.subr.mxu0 0.0
    %3875 = vmatpush1.msra.mxu0 0.0
    %3876 = vmatprep.subr.mxu0 0.0
    %3877 = vmatpush1.msra.mxu0 0.0
    %3878 = vmatprep.subr.mxu0 0.0
    %3879 = vmatpush1.msra.mxu0 0.0
    %3880 = vmatprep.subr.mxu0 0.0
    %3881 = vmatpush1.msra.mxu0 0.0
    %3882 = vmatprep.subr.mxu0 0.0
    %3883 = vmatpush1.msra.mxu0 0.0
    %3884 = vmatprep.subr.mxu0 0.0
    %3885 = vmatpush1.msra.mxu0 0.0
    %3886 = vmatprep.subr.mxu0 0.0
    %3887 = vmatpush1.msra.mxu0 0.0
    %3888 = vmatprep.subr.mxu0 0.0
    %3889 = vmatpush1.msra.mxu0 0.0
    %3890 = vmatprep.subr.mxu0 0.0
    %3891 = vmatpush1.msra.mxu0 0.0
    %3892 = vmatprep.subr.mxu0 0.0
    %3893 = vmatpush1.msra.mxu0 0.0
    %3894 = vmatprep.mubr.f32.mxu0 0.0
    %3895 = vmatmul.mubr.f32.gmra.mrb[0].mxu0 %v3754
    %v3896 = vpop.f32.mrb[0].mxu0
    %v3897 = vadd.f32 0.0, %v3896
    %v3898 = vpop.f32.mrb[0].mxu0
    %3899 = vdwg.mxu0
    %v3900 = vadd.f32 %v3756, %v3826
    %v3901 = vxor.u32 %v3900, 2147483648
    %v3902 = vmul.f32 %v3901, 1.442695
    %v3903 = vpow.pop %v3902
    %v3904 = vadd.f32 %v3903, 1.0
    %v3905 = vrcp.pop %v3904
    %v3906 = vmul.f32 1.0, %v3905
    %v3907 = vadd.f32 %v3757, %v3828
    %v3908 = vxor.u32 %v3907, 2147483648
    %v3909 = vmul.f32 %v3908, 1.442695
    %v3910 = vpow.pop %v3909
    %v3911 = vadd.f32 %v3910, 1.0
    %v3912 = vrcp.pop %v3911
    %v3913 = vmul.f32 1.0, %v3912
    %v3914 = vadd.f32 %v3897, %v101
    %v3915 = vmul.f32 %v3906, %v3914
    %v3916 = vadd.f32 %v3758, %v3915
    %v3917 = vtanh.pop %v3916
    %v3918 = vsub.f32 %v3754, %v3917
    %v3919 = vmul.f32 %v3913, %v3918
    %v3920 = vadd.f32 %v3917, %v3919
    %s3921 = scalar_lea.vmem [#allocation2], 552
    %v3922 = vld [vmem:[%s3921] sm:$0xff]
    %v3923 = vld [vmem:[%s3921 + $0x8] sm:$0xff]
    %v3924 = vld [vmem:[%s3921 + $0x10] sm:$0xff]
    %3925 = vmatprep.subr.mxu0 %v49
    %3926 = vmatpush1.msra.mxu0 %v48
    %3927 = vmatprep.subr.mxu0 %v52
    %3928 = vmatpush1.msra.mxu0 %v51
    %3929 = vmatprep.subr.mxu0 %v55
    %3930 = vmatpush1.msra.mxu0 %v54
    %3931 = vmatprep.subr.mxu0 %v58
    %3932 = vmatpush1.msra.mxu0 %v57
    %3933 = vmatprep.subr.mxu0 %v61
    %3934 = vmatpush1.msra.mxu0 %v60
    %3935 = vmatprep.subr.mxu0 %v64
    %3936 = vmatpush1.msra.mxu0 %v63
    %3937 = vmatprep.subr.mxu0 %v67
    %3938 = vmatpush1.msra.mxu0 %v66
    %3939 = vmatprep.subr.mxu0 %v70
    %3940 = vmatpush1.msra.mxu0 %v69
    %3941 = vmatprep.subr.mxu0 %v73
    %3942 = vmatpush1.msra.mxu0 %v72
    %3943 = vmatprep.subr.mxu0 %v76
    %3944 = vmatpush1.msra.mxu0 %v75
    %3945 = vmatprep.subr.mxu0 %v79
    %3946 = vmatpush1.msra.mxu0 %v78
    %3947 = vmatprep.subr.mxu0 %v82
    %3948 = vmatpush1.msra.mxu0 %v81
    %3949 = vmatprep.subr.mxu0 %v85
    %3950 = vmatpush1.msra.mxu0 %v84
    %3951 = vmatprep.subr.mxu0 %v88
    %3952 = vmatpush1.msra.mxu0 %v87
    %3953 = vmatprep.subr.mxu0 %v91
    %3954 = vmatpush1.msra.mxu0 %v90
    %3955 = vmatprep.subr.mxu0 %v94
    %3956 = vmatpush1.msra.mxu0 %v93
    %3957 = vmatprep.subr.mxu0 0.0
    %3958 = vmatpush1.msra.mxu0 0.0
    %3959 = vmatprep.subr.mxu0 0.0
    %3960 = vmatpush1.msra.mxu0 0.0
    %3961 = vmatprep.subr.mxu0 0.0
    %3962 = vmatpush1.msra.mxu0 0.0
    %3963 = vmatprep.subr.mxu0 0.0
    %3964 = vmatpush1.msra.mxu0 0.0
    %3965 = vmatprep.subr.mxu0 0.0
    %3966 = vmatpush1.msra.mxu0 0.0
    %3967 = vmatprep.subr.mxu0 0.0
    %3968 = vmatpush1.msra.mxu0 0.0
    %3969 = vmatprep.subr.mxu0 0.0
    %3970 = vmatpush1.msra.mxu0 0.0
    %3971 = vmatprep.subr.mxu0 0.0
    %3972 = vmatpush1.msra.mxu0 0.0
    %3973 = vmatprep.subr.mxu0 0.0
    %3974 = vmatpush1.msra.mxu0 0.0
    %3975 = vmatprep.subr.mxu0 0.0
    %3976 = vmatpush1.msra.mxu0 0.0
    %3977 = vmatprep.subr.mxu0 0.0
    %3978 = vmatpush1.msra.mxu0 0.0
    %3979 = vmatprep.subr.mxu0 0.0
    %3980 = vmatpush1.msra.mxu0 0.0
    %3981 = vmatprep.subr.mxu0 0.0
    %3982 = vmatpush1.msra.mxu0 0.0
    %3983 = vmatprep.subr.mxu0 0.0
    %3984 = vmatpush1.msra.mxu0 0.0
    %3985 = vmatprep.subr.mxu0 0.0
    %3986 = vmatpush1.msra.mxu0 0.0
    %3987 = vmatprep.subr.mxu0 0.0
    %3988 = vmatpush1.msra.mxu0 0.0
    %3989 = vmatprep.mubr.f32.mxu0 0.0
    %3990 = vmatmul.mubr.f32.gmra.mrb[0].mxu0 %v3920
    %v3991 = vpop.f32.mrb[0].mxu0
    %v3992 = vadd.f32 0.0, %v3991
    %v3993 = vpop.f32.mrb[0].mxu0
    %v3994 = vadd.f32 0.0, %v3993
    %3995 = vdwg.mxu0
    %3996 = vmatprep.subr.mxu0 0.0
    %3997 = vmatpush1.msra.mxu0 %v50
    %3998 = vmatprep.subr.mxu0 0.0
    %3999 = vmatpush1.msra.mxu0 %v53
    %4000 = vmatprep.subr.mxu0 0.0
    %4001 = vmatpush1.msra.mxu0 %v56
    %4002 = vmatprep.subr.mxu0 0.0
    %4003 = vmatpush1.msra.mxu0 %v59
    %4004 = vmatprep.subr.mxu0 0.0
    %4005 = vmatpush1.msra.mxu0 %v62
    %4006 = vmatprep.subr.mxu0 0.0
    %4007 = vmatpush1.msra.mxu0 %v65
    %4008 = vmatprep.subr.mxu0 0.0
    %4009 = vmatpush1.msra.mxu0 %v68
    %4010 = vmatprep.subr.mxu0 0.0
    %4011 = vmatpush1.msra.mxu0 %v71
    %4012 = vmatprep.subr.mxu0 0.0
    %4013 = vmatpush1.msra.mxu0 %v74
    %4014 = vmatprep.subr.mxu0 0.0
    %4015 = vmatpush1.msra.mxu0 %v77
    %4016 = vmatprep.subr.mxu0 0.0
    %4017 = vmatpush1.msra.mxu0 %v80
    %4018 = vmatprep.subr.mxu0 0.0
    %4019 = vmatpush1.msra.mxu0 %v83
    %4020 = vmatprep.subr.mxu0 0.0
    %4021 = vmatpush1.msra.mxu0 %v86
    %4022 = vmatprep.subr.mxu0 0.0
    %4023 = vmatpush1.msra.mxu0 %v89
    %4024 = vmatprep.subr.mxu0 0.0
    %4025 = vmatpush1.msra.mxu0 %v92
    %4026 = vmatprep.subr.mxu0 0.0
    %4027 = vmatpush1.msra.mxu0 %v95
    %4028 = vmatprep.subr.mxu0 0.0
    %4029 = vmatpush1.msra.mxu0 0.0
    %4030 = vmatprep.subr.mxu0 0.0
    %4031 = vmatpush1.msra.mxu0 0.0
    %4032 = vmatprep.subr.mxu0 0.0
    %4033 = vmatpush1.msra.mxu0 0.0
    %4034 = vmatprep.subr.mxu0 0.0
    %4035 = vmatpush1.msra.mxu0 0.0
    %4036 = vmatprep.subr.mxu0 0.0
    %4037 = vmatpush1.msra.mxu0 0.0
    %4038 = vmatprep.subr.mxu0 0.0
    %4039 = vmatpush1.msra.mxu0 0.0
    %4040 = vmatprep.subr.mxu0 0.0
    %4041 = vmatpush1.msra.mxu0 0.0
    %4042 = vmatprep.subr.mxu0 0.0
    %4043 = vmatpush1.msra.mxu0 0.0
    %4044 = vmatprep.subr.mxu0 0.0
    %4045 = vmatpush1.msra.mxu0 0.0
    %4046 = vmatprep.subr.mxu0 0.0
    %4047 = vmatpush1.msra.mxu0 0.0
    %4048 = vmatprep.subr.mxu0 0.0
    %4049 = vmatpush1.msra.mxu0 0.0
    %4050 = vmatprep.subr.mxu0 0.0
    %4051 = vmatpush1.msra.mxu0 0.0
    %4052 = vmatprep.subr.mxu0 0.0
    %4053 = vmatpush1.msra.mxu0 0.0
    %4054 = vmatprep.subr.mxu0 0.0
    %4055 = vmatpush1.msra.mxu0 0.0
    %4056 = vmatprep.subr.mxu0 0.0
    %4057 = vmatpush1.msra.mxu0 0.0
    %4058 = vmatprep.subr.mxu0 0.0
    %4059 = vmatpush1.msra.mxu0 0.0
    %4060 = vmatprep.mubr.f32.mxu0 0.0
    %4061 = vmatmul.mubr.f32.gmra.mrb[0].mxu0 %v3920
    %v4062 = vpop.f32.mrb[0].mxu0
    %v4063 = vadd.f32 0.0, %v4062
    %v4064 = vpop.f32.mrb[0].mxu0
    %4065 = vdwg.mxu0
    %v4066 = vadd.f32 %v3922, %v3992
    %v4067 = vxor.u32 %v4066, 2147483648
    %v4068 = vmul.f32 %v4067, 1.442695
    %v4069 = vpow.pop %v4068
    %v4070 = vadd.f32 %v4069, 1.0
    %v4071 = vrcp.pop %v4070
    %v4072 = vmul.f32 1.0, %v4071
    %v4073 = vadd.f32 %v3923, %v3994
    %v4074 = vxor.u32 %v4073, 2147483648
    %v4075 = vmul.f32 %v4074, 1.442695
    %v4076 = vpow.pop %v4075
    %v4077 = vadd.f32 %v4076, 1.0
    %v4078 = vrcp.pop %v4077
    %v4079 = vmul.f32 1.0, %v4078
    %v4080 = vadd.f32 %v4063, %v101
    %v4081 = vmul.f32 %v4072, %v4080
    %v4082 = vadd.f32 %v3924, %v4081
    %v4083 = vtanh.pop %v4082
    %v4084 = vsub.f32 %v3920, %v4083
    %v4085 = vmul.f32 %v4079, %v4084
    %v4086 = vadd.f32 %v4083, %v4085
    %4087 = vst [vmem:[#allocation7] sm:$0xff] %v4086
    // Predicated region
    $region26: #{tpu_custom_call.1} parent=1 // pred_check
      _
    $region27: #{tpu_custom_call.1} parent=1 // pred_check_branch
      %4089 = sbr.rel (0) target = $region29
    $region28: #{tpu_custom_call.1} parent=1 // pred_region
      %s4091 = ssub.s32 128, 128
      %4092 = vsyncadd [#allocation4], %s4091
      %s4094 = sshll.u32 [#allocation7], 4
      %s4095 = int_to_ptr.vmem [resolvable:$true] %s4094
      %4097 = dma.vmem_to_hbm [thread:$0]  %s4095, 128, %s3, [#allocation4]
    $region29: #{tpu_custom_call.1} parent=1 // pred_fallthru
      _
    // Predicated region
    $region30: #{tpu_custom_call.1} parent=1 // pred_check
      _
    $region31: #{tpu_custom_call.1} parent=1 // pred_check_branch
      %4099 = sbr.rel (0) target = $region33
    $region32: #{tpu_custom_call.1} parent=1 // pred_region
      %4100 = dma.done [#allocation4], 128
    $region33: #{tpu_custom_call.1} parent=1 // pred_fallthru
      _
    %4101 = vsyncpa [#allocation3], 1
    %4102 = vsyncpa [#allocation6], 1
    %4103 = vsyncpa [#allocation4], 1

</llo_original>
